<compile_context>
chip_gen: v6e
topology: v6e:2x2x1
jax: 0.10.0
libtpu: 0.0.40
codegen_flags: <defaults>
</compile_context>

<pallas_src>
import math

import jax
import jax.numpy as jnp
from jax.experimental import pallas as pl
from jax.experimental.pallas import tpu as pltpu

# ---- small synthetic CLIP text-tower config ----
VOCAB = 64
SEQ = 8          # context length
WIDTH = 32       # transformer width (D)
HEADS = 4
HEAD_DIM = WIDTH // HEADS
LAYERS = 2
PROJ = 32        # text_projection output dim
BATCH = 2
EPS = 1e-5
NEG_INF = -1e9   # finite causal-mask value (safe under bf16 too)

# bf16 on v6e/v7x at real CLIP widths (halves weight DMA/VMEM, 2x MXU throughput);
# f32 here keeps the toy-size numerical check tight.
MATMUL_DTYPE = jnp.float32


def _layer_norm(x, g, b):
    mu = jnp.mean(x, axis=-1, keepdims=True)
    var = jnp.mean((x - mu) ** 2, axis=-1, keepdims=True)
    return (x - mu) * jax.lax.rsqrt(var + EPS) * g + b


def _mm(a, b):
    return jnp.dot(a.astype(MATMUL_DTYPE), b.astype(MATMUL_DTYPE),
                   preferred_element_type=jnp.float32)


def _bmm(eq, a, b):
    return jnp.einsum(eq, a.astype(MATMUL_DTYPE), b.astype(MATMUL_DTYPE),
                      preferred_element_type=jnp.float32)


# ------------------------------------------------------------------
# Fused kernel: whole text tower, whole batch per step, one layer per grid step.
#   grid = (LAYERS,)  ("arbitrary": sequential dependency through the residual stream)
#   x_ref (VMEM scratch, (B*S, D)) carries the residual stream across layer steps.
# ------------------------------------------------------------------
def _text_tower_kernel(
    eot_ref,                                  # SMEM (B,) int32   [scalar prefetch]
    x0_ref,                                   # (B*S, D)  token+pos embeddings, whole batch
    ln1g_ref, ln1b_ref,                       # (1, D)
    wqkv_ref, bqkv_ref,                       # (D, 3D), (1, 3D)   lane-dense
    wo_ref, bo_ref,                           # (D, D),  (1, D)
    ln2g_ref, ln2b_ref,                       # (1, D)
    wfc_ref, bfc_ref,                         # (D, 4D), (1, 4D)
    wpr_ref, bpr_ref,                         # (4D, D), (1, D)
    lnfg_ref, lnfb_ref,                       # (1, D)     final LayerNorm
    proj_ref,                                 # (D, P)     text projection
    o_ref,                                    # (B, P)     whole-batch output slab
    x_ref,                                    # VMEM scratch (B*S, D) f32: residual stream
):
    l = pl.program_id(0)

    @pl.when(l == 0)
    def _():
        x_ref[...] = x0_ref[...]

    x = x_ref[...]                                                  # (B*S, D) f32

    # ---- attention branch ----
    h = _layer_norm(x, ln1g_ref[...], ln1b_ref[...])                # (B*S, D)
    qkv = _mm(h, wqkv_ref[...]) + bqkv_ref[...]                     # ONE (B*S,D)@(D,3D)
    qkv = qkv.reshape(BATCH, SEQ, 3 * WIDTH)

    q_all = qkv[:, :, :WIDTH] * (1.0 / math.sqrt(HEAD_DIM))         # (B, S, D)
    k_all = qkv[:, :, WIDTH:2 * WIDTH]
    v_all = qkv[:, :, 2 * WIDTH:]

    # causal mask built in-kernel (finite negative; no input DMA)
    rows = jax.lax.broadcasted_iota(jnp.int32, (SEQ, SEQ), 0)
    cols = jax.lax.broadcasted_iota(jnp.int32, (SEQ, SEQ), 1)
    mask = jnp.where(cols > rows, NEG_INF, 0.0).astype(jnp.float32)

    # heads split only here (static lane slices); out-proj accumulated per head against
    # the matching sublane-aligned row block of W_out  == concat(ctx) @ W_out.
    attn = jnp.zeros((BATCH * SEQ, WIDTH), jnp.float32)
    for hh in range(HEADS):
        sl = slice(hh * HEAD_DIM, (hh + 1) * HEAD_DIM)
        q_h = q_all[:, :, sl]                                       # (B, S, hd)
        k_h = k_all[:, :, sl]
        v_h = v_all[:, :, sl]
        s = _bmm('bqd,bkd->bqk', q_h, k_h) + mask                   # (B, S, S)
        s = s - jnp.max(s, axis=-1, keepdims=True)
        p = jnp.exp(s)
        p = p / jnp.sum(p, axis=-1, keepdims=True)                  # exact softmax
        ctx_h = _bmm('bqk,bkd->bqd', p, v_h).reshape(BATCH * SEQ, HEAD_DIM)
        attn = attn + _mm(ctx_h, wo_ref[sl, :])                     # row block of W_out
    x = x + attn + bo_ref[...]

    # ---- MLP branch (QuickGELU, as in CLIP) ----
    h2 = _layer_norm(x, ln2g_ref[...], ln2b_ref[...])
    f = _mm(h2, wfc_ref[...]) + bfc_ref[...]                        # (B*S, 4D) lane-dense
    f = f * jax.nn.sigmoid(1.702 * f)
    x = x + _mm(f, wpr_ref[...]) + bpr_ref[...]

    x_ref[...] = x

    # ---- final LN + EOT-token select + text projection, fused into last layer step ----
    @pl.when(l == LAYERS - 1)
    def _():
        # dynamic sublane slice of the residual scratch (no one-hot matmul); rows stay f32
        rows_sel = jnp.concatenate(
            [x_ref[pl.ds(b * SEQ + eot_ref[b], 1), :] for b in range(BATCH)], axis=0)
        rows_sel = _layer_norm(rows_sel, lnfg_ref[...], lnfb_ref[...])   # (B, D)
        o_ref[...] = _mm(rows_sel, proj_ref[...])                        # (B, P) one slab


def _layer_spec(rest):
    # stacked-per-layer weight: leading LAYERS axis squeezed away, full block otherwise
    return pl.BlockSpec((None,) + rest, lambda l, e: (l,) + (0,) * len(rest))


def _shared_spec(shape):
    return pl.BlockSpec(shape, lambda l, e: (0,) * len(shape))


def _pack_for_kernel(params):
    """Stack per-layer weights on a leading LAYERS axis (lane-dense layouts kept)."""
    L = params['layers']
    return tuple(jnp.stack([lyr[i] for lyr in L], axis=0) for i in range(12))


def encode_text_pallas(text, params):
    x0 = params['token_embedding'][text] + params['positional_embedding'][None]  # (B,S,D)
    x0 = x0.reshape(BATCH * SEQ, WIDTH).astype(jnp.float32)
    # CLIP tokenizer: the EOT token has the largest id, so argmax finds its position.
    eot = jnp.argmax(text, axis=-1).astype(jnp.int32)                            # (B,)

    layer_inputs = _pack_for_kernel(params)
    layer_specs = [
        _layer_spec((1, WIDTH)), _layer_spec((1, WIDTH)),                        # ln1 g/b
        _layer_spec((WIDTH, 3 * WIDTH)), _layer_spec((1, 3 * WIDTH)),            # W_qkv/b_qkv
        _layer_spec((WIDTH, WIDTH)), _layer_spec((1, WIDTH)),                    # W_out/b_out
        _layer_spec((1, WIDTH)), _layer_spec((1, WIDTH)),                        # ln2 g/b
        _layer_spec((WIDTH, 4 * WIDTH)), _layer_spec((1, 4 * WIDTH)),            # W_fc/b_fc
        _layer_spec((4 * WIDTH, WIDTH)), _layer_spec((1, WIDTH)),                # W_proj/b_proj
    ]

    grid_spec = pltpu.PrefetchScalarGridSpec(
        num_scalar_prefetch=1,                       # eot indices -> SMEM
        grid=(LAYERS,),                              # layer loop only; whole batch per step
        in_specs=[
            pl.BlockSpec((BATCH * SEQ, WIDTH), lambda l, e: (0, 0)),   # x0 (whole batch)
            *layer_specs,
            _shared_spec((1, WIDTH)),                # ln_final gamma
            _shared_spec((1, WIDTH)),                # ln_final beta
            _shared_spec((WIDTH, PROJ)),             # text projection
        ],
        out_specs=pl.BlockSpec((BATCH, PROJ), lambda l, e: (0, 0)),
        scratch_shapes=[pltpu.VMEM((BATCH * SEQ, WIDTH), jnp.float32)],
    )

    out = pl.pallas_call(
        _text_tower_kernel,
        out_shape=jax.ShapeDtypeStruct((BATCH, PROJ), jnp.float32),
        grid_spec=grid_spec,
        compiler_params=pltpu.CompilerParams(
            dimension_semantics=("arbitrary",),      # layer axis is sequential
            # safe everywhere (fits v7x's 64 MiB); raise toward ~100 MiB on v5e/v6e at
            # real CLIP widths to keep more weights resident / bigger batch tiles.
            vmem_limit_bytes=32 * 1024 * 1024,
        ),
    )(eot, x0, *layer_inputs,
      params['ln_final_g'], params['ln_final_b'], params['text_projection'])
    return out                                       # (B, P)


# ------------------------------------------------------------------
# Parameters (deterministic synthetic init; weights stored (in, out) so kernels
# compute y = x @ W + b, matching PyTorch's y = x @ W_pt.T + b).
# ------------------------------------------------------------------
def make_params(key):
    ks = jax.random.split(key, 4 + LAYERS)
    params = {
        'token_embedding': 0.02 * jax.random.normal(ks[0], (VOCAB, WIDTH), jnp.float32),
        'positional_embedding': 0.01 * jax.random.normal(ks[1], (SEQ, WIDTH), jnp.float32),
        'ln_final_g': (1.0 + 0.1 * jax.random.normal(ks[2], (1, WIDTH), jnp.float32)),
        'ln_final_b': 0.1 * jax.random.normal(ks[3], (1, WIDTH), jnp.float32),
        'text_projection': 0.05 * jax.random.normal(ks[-1], (WIDTH, PROJ), jnp.float32),
        'layers': [],
    }
    for l in range(LAYERS):
        lk = jax.random.split(jax.random.fold_in(key, 100 + l), 12)
        layer = [
            1.0 + 0.1 * jax.random.normal(lk[0], (1, WIDTH), jnp.float32),        # ln1 gamma
            0.1 * jax.random.normal(lk[1], (1, WIDTH), jnp.float32),              # ln1 beta
            0.05 * jax.random.normal(lk[2], (WIDTH, 3 * WIDTH), jnp.float32),     # W_qkv
            0.01 * jax.random.normal(lk[3], (1, 3 * WIDTH), jnp.float32),         # b_qkv
            0.05 * jax.random.normal(lk[4], (WIDTH, WIDTH), jnp.float32),         # W_out
            0.01 * jax.random.normal(lk[5], (1, WIDTH), jnp.float32),             # b_out
            1.0 + 0.1 * jax.random.normal(lk[6], (1, WIDTH), jnp.float32),        # ln2 gamma
            0.1 * jax.random.normal(lk[7], (1, WIDTH), jnp.float32),              # ln2 beta
            0.05 * jax.random.normal(lk[8], (WIDTH, 4 * WIDTH), jnp.float32),     # W_fc
            0.01 * jax.random.normal(lk[9], (1, 4 * WIDTH), jnp.float32),         # b_fc
            0.05 * jax.random.normal(lk[10], (4 * WIDTH, WIDTH), jnp.float32),    # W_proj
            0.01 * jax.random.normal(lk[11], (1, WIDTH), jnp.float32),            # b_proj
        ]
        params['layers'].append(layer)
    return params


# ------------------------------------------------------------------
# Pure-JAX reference (canonical weight layout, exact softmax division).
# ------------------------------------------------------------------
def encode_text_ref(text, params):
    x = params['token_embedding'][text] + params['positional_embedding'][None]
    B, S, D = x.shape
    rows = jax.lax.broadcasted_iota(jnp.int32, (S, S), 0)
    cols = jax.lax.broadcasted_iota(jnp.int32, (S, S), 1)
    mask = jnp.where(cols > rows, NEG_INF, 0.0).astype(jnp.float32)
    for (g1, b1, wqkv, bqkv, wo, bo, g2, b2, wfc, bfc, wpr, bpr) in params['layers']:
        h = _layer_norm(x, g1, b1)
        qkv = jnp.einsum('bsd,de->bse', h, wqkv) + bqkv
        q, k, v = qkv[..., :D], qkv[..., D:2 * D], qkv[..., 2 * D:]
        q = q.reshape(B, S, HEADS, HEAD_DIM) / math.sqrt(HEAD_DIM)
        k = k.reshape(B, S, HEADS, HEAD_DIM)
        v = v.reshape(B, S, HEADS, HEAD_DIM)
        s = jnp.einsum('bqhd,bkhd->bhqk', q, k) + mask
        p = jax.nn.softmax(s, axis=-1)
        a = jnp.einsum('bhqk,bkhd->bqhd', p, v).reshape(B, S, D)
        x = x + jnp.einsum('bsd,de->bse', a, wo) + bo
        h2 = _layer_norm(x, g2, b2)
        f = jnp.einsum('bsd,de->bse', h2, wfc) + bfc
        f = f * jax.nn.sigmoid(1.702 * f)
        x = x + jnp.einsum('bsd,de->bse', f, wpr) + bpr
    x = _layer_norm(x, params['ln_final_g'], params['ln_final_b'])
    eot = jnp.argmax(text, axis=-1)
    return x[jnp.arange(B), eot] @ params['text_projection']


if __name__ == "__main__":
    key = jax.random.PRNGKey(0)
    params = make_params(key)
    text = jax.random.randint(jax.random.fold_in(key, 999), (BATCH, SEQ), 1, VOCAB,
                              dtype=jnp.int32)

    out = jax.jit(encode_text_pallas)(text, params)
    out = jax.block_until_ready(out)

    ref = encode_text_ref(text, params)
    assert out.shape == (BATCH, PROJ), out.shape
    err = float(jnp.max(jnp.abs(out - ref)))
    assert jnp.allclose(out, ref, atol=2e-4, rtol=2e-4), f"max abs err {err}"
    print("KERNEL_OK")
</pallas_src>

<mosaic_0001>
module attributes {stable_mosaic.version = 11 : i64} {
  func.func @_text_tower_kernel(%arg0: i32, %arg1: memref<2xi32, #tpu.memory_space<smem>>, %arg2: memref<16x32xf32, #tpu.memory_space<vmem>>, %arg3: memref<1x1x32xf32, #tpu.memory_space<vmem>>, %arg4: memref<1x1x32xf32, #tpu.memory_space<vmem>>, %arg5: memref<1x32x96xf32, #tpu.memory_space<vmem>>, %arg6: memref<1x1x96xf32, #tpu.memory_space<vmem>>, %arg7: memref<1x32x32xf32, #tpu.memory_space<vmem>>, %arg8: memref<1x1x32xf32, #tpu.memory_space<vmem>>, %arg9: memref<1x1x32xf32, #tpu.memory_space<vmem>>, %arg10: memref<1x1x32xf32, #tpu.memory_space<vmem>>, %arg11: memref<1x32x128xf32, #tpu.memory_space<vmem>>, %arg12: memref<1x1x128xf32, #tpu.memory_space<vmem>>, %arg13: memref<1x128x32xf32, #tpu.memory_space<vmem>>, %arg14: memref<1x1x32xf32, #tpu.memory_space<vmem>>, %arg15: memref<1x32xf32, #tpu.memory_space<vmem>>, %arg16: memref<1x32xf32, #tpu.memory_space<vmem>>, %arg17: memref<32x32xf32, #tpu.memory_space<vmem>>, %arg18: memref<2x32xf32, #tpu.memory_space<vmem>>, %arg19: memref<16x32xf32, #tpu.memory_space<vmem>>) attributes {dimension_semantics = [#tpu.dimension_semantics<arbitrary>], iteration_bounds = array<i64: 2>, scalar_prefetch = 1 : i64, scratch_operands = 1 : i64, tpu.core_type = #tpu.core_type<tc>, window_params = [{pipeline_mode = #tpu.pipeline_mode<synchronous>, transform_indices = @transform_0, window_bounds = array<i64: 16, 32>}, {transform_indices = @transform_1, window_bounds = array<i64: 1, 1, 32>}, {transform_indices = @transform_2, window_bounds = array<i64: 1, 1, 32>}, {transform_indices = @transform_3, window_bounds = array<i64: 1, 32, 96>}, {transform_indices = @transform_4, window_bounds = array<i64: 1, 1, 96>}, {transform_indices = @transform_5, window_bounds = array<i64: 1, 32, 32>}, {transform_indices = @transform_6, window_bounds = array<i64: 1, 1, 32>}, {transform_indices = @transform_7, window_bounds = array<i64: 1, 1, 32>}, {transform_indices = @transform_8, window_bounds = array<i64: 1, 1, 32>}, {transform_indices = @transform_9, window_bounds = array<i64: 1, 32, 128>}, {transform_indices = @transform_10, window_bounds = array<i64: 1, 1, 128>}, {transform_indices = @transform_11, window_bounds = array<i64: 1, 128, 32>}, {transform_indices = @transform_12, window_bounds = array<i64: 1, 1, 32>}, {pipeline_mode = #tpu.pipeline_mode<synchronous>, transform_indices = @transform_13, window_bounds = array<i64: 1, 32>}, {pipeline_mode = #tpu.pipeline_mode<synchronous>, transform_indices = @transform_14, window_bounds = array<i64: 1, 32>}, {pipeline_mode = #tpu.pipeline_mode<synchronous>, transform_indices = @transform_15, window_bounds = array<i64: 32, 32>}, {pipeline_mode = #tpu.pipeline_mode<synchronous>, transform_indices = @transform_16, window_bounds = array<i64: 2, 32>}]} {
    %c0_i32 = arith.constant 0 : i32
    %0 = arith.cmpi eq, %arg0, %c0_i32 : i32
    %1 = arith.extui %0 : i1 to i32
    %c0_i32_0 = arith.constant 0 : i32
    %2 = arith.cmpi ne, %1, %c0_i32_0 : i32
    scf.if %2 {
      %c0_85 = arith.constant 0 : index
      %c0_86 = arith.constant 0 : index
      %196 = vector.load %arg2[%c0_85, %c0_86] : memref<16x32xf32, #tpu.memory_space<vmem>>, vector<16x32xf32>
      %c0_87 = arith.constant 0 : index
      %c0_88 = arith.constant 0 : index
      %197 = vector.load %arg19[%c0_87, %c0_88] : memref<16x32xf32, #tpu.memory_space<vmem>>, vector<16x32xf32>
      tpu.vector_store %arg19[%c0_87, %c0_88], %196 {strides = array<i32>} : memref<16x32xf32, #tpu.memory_space<vmem>>, vector<16x32xf32>,
    } else {
    }
    %c0 = arith.constant 0 : index
    %c0_1 = arith.constant 0 : index
    %3 = vector.load %arg19[%c0, %c0_1] : memref<16x32xf32, #tpu.memory_space<vmem>>, vector<16x32xf32>
    %c0_2 = arith.constant 0 : index
    %c0_3 = arith.constant 0 : index
    %c0_4 = arith.constant 0 : index
    %4 = vector.load %arg3[%c0_2, %c0_3, %c0_4] : memref<1x1x32xf32, #tpu.memory_space<vmem>>, vector<1x1x32xf32>
    %5 = vector.shape_cast %4 : vector<1x1x32xf32> to vector<1x32xf32>
    %c0_5 = arith.constant 0 : index
    %c0_6 = arith.constant 0 : index
    %c0_7 = arith.constant 0 : index
    %6 = vector.load %arg4[%c0_5, %c0_6, %c0_7] : memref<1x1x32xf32, #tpu.memory_space<vmem>>, vector<1x1x32xf32>
    %7 = vector.shape_cast %6 : vector<1x1x32xf32> to vector<1x32xf32>
    %cst = arith.constant dense<0.000000e+00> : vector<16xf32>
    %8 = vector.multi_reduction <add>, %3, %cst [1] : vector<16x32xf32> to vector<16xf32>
    %9 = vector.shape_cast %8 : vector<16xf32> to vector<16x1xf32>
    %cst_8 = arith.constant 3.200000e+01 : f32
    %10 = vector.broadcast %cst_8 : f32 to vector<16x1xf32>
    %11 = arith.divf %9, %10 : vector<16x1xf32>
    %12 = vector.broadcast %11 : vector<16x1xf32> to vector<16x32xf32>
    %13 = arith.subf %3, %12 : vector<16x32xf32>
    %14 = arith.mulf %13, %13 : vector<16x32xf32>
    %cst_9 = arith.constant dense<0.000000e+00> : vector<16xf32>
    %15 = vector.multi_reduction <add>, %14, %cst_9 [1] : vector<16x32xf32> to vector<16xf32>
    %16 = vector.shape_cast %15 : vector<16xf32> to vector<16x1xf32>
    %cst_10 = arith.constant 3.200000e+01 : f32
    %17 = vector.broadcast %cst_10 : f32 to vector<16x1xf32>
    %18 = arith.divf %16, %17 : vector<16x1xf32>
    %19 = vector.broadcast %11 : vector<16x1xf32> to vector<16x32xf32>
    %20 = arith.subf %3, %19 : vector<16x32xf32>
    %cst_11 = arith.constant 9.99999974E-6 : f32
    %21 = vector.broadcast %cst_11 : f32 to vector<16x1xf32>
    %22 = arith.addf %18, %21 : vector<16x1xf32>
    %23 = math.rsqrt %22 : vector<16x1xf32>
    %24 = vector.broadcast %23 : vector<16x1xf32> to vector<16x32xf32>
    %25 = arith.mulf %20, %24 : vector<16x32xf32>
    %26 = vector.broadcast %5 : vector<1x32xf32> to vector<16x32xf32>
    %27 = arith.mulf %25, %26 : vector<16x32xf32>
    %28 = vector.broadcast %7 : vector<1x32xf32> to vector<16x32xf32>
    %29 = arith.addf %27, %28 : vector<16x32xf32>
    %c0_12 = arith.constant 0 : index
    %c0_13 = arith.constant 0 : index
    %c0_14 = arith.constant 0 : index
    %30 = vector.load %arg5[%c0_12, %c0_13, %c0_14] : memref<1x32x96xf32, #tpu.memory_space<vmem>>, vector<1x32x96xf32>
    %31 = vector.shape_cast %30 : vector<1x32x96xf32> to vector<32x96xf32>
    %cst_15 = arith.constant dense<0.000000e+00> : vector<16x96xf32>
    %32 = tpu.matmul %29, %31, %cst_15 {dimension_numbers = #tpu.dot_dimension_numbers<[1], [0], [0], [1], [0, 0, 1, 1], [], []>} : vector<16x32xf32>, vector<32x96xf32>, vector<16x96xf32> -> vector<16x96xf32>
    %c0_16 = arith.constant 0 : index
    %c0_17 = arith.constant 0 : index
    %c0_18 = arith.constant 0 : index
    %33 = vector.load %arg6[%c0_16, %c0_17, %c0_18] : memref<1x1x96xf32, #tpu.memory_space<vmem>>, vector<1x1x96xf32>
    %34 = vector.shape_cast %33 : vector<1x1x96xf32> to vector<1x96xf32>
    %35 = vector.broadcast %34 : vector<1x96xf32> to vector<16x96xf32>
    %36 = arith.addf %32, %35 : vector<16x96xf32>
    %37 = vector.shape_cast %36 : vector<16x96xf32> to vector<2x8x96xf32>
    %38 = vector.extract_strided_slice %37 {offsets = [0, 0, 0], sizes = [2, 8, 32], strides = [1, 1, 1]} : vector<2x8x96xf32> to vector<2x8x32xf32>
    %cst_19 = arith.constant 0.353553385 : f32
    %39 = vector.broadcast %cst_19 : f32 to vector<2x8x32xf32>
    %40 = arith.mulf %38, %39 : vector<2x8x32xf32>
    %41 = vector.extract_strided_slice %37 {offsets = [0, 0, 32], sizes = [2, 8, 32], strides = [1, 1, 1]} : vector<2x8x96xf32> to vector<2x8x32xf32>
    %42 = vector.extract_strided_slice %37 {offsets = [0, 0, 64], sizes = [2, 8, 32], strides = [1, 1, 1]} : vector<2x8x96xf32> to vector<2x8x32xf32>
    %43 = tpu.iota {dimensions = array<i32: 0>} : vector<8x8xi32>
    %44 = tpu.iota {dimensions = array<i32: 1>} : vector<8x8xi32>
    %45 = arith.cmpi sgt, %44, %43 : vector<8x8xi32>
    %cst_20 = arith.constant -1.000000e+09 : f32
    %cst_21 = arith.constant 0.000000e+00 : f32
    %46 = vector.broadcast %cst_20 : f32 to vector<8x8xf32>
    %47 = vector.broadcast %cst_21 : f32 to vector<8x8xf32>
    %48 = arith.select %45, %46, %47 : vector<8x8xi1>, vector<8x8xf32>
    %cst_22 = arith.constant 0.000000e+00 : f32
    %49 = vector.broadcast %cst_22 : f32 to vector<16x32xf32>
    %50 = vector.extract_strided_slice %40 {offsets = [0, 0, 0], sizes = [2, 8, 8], strides = [1, 1, 1]} : vector<2x8x32xf32> to vector<2x8x8xf32>
    %51 = vector.extract_strided_slice %41 {offsets = [0, 0, 0], sizes = [2, 8, 8], strides = [1, 1, 1]} : vector<2x8x32xf32> to vector<2x8x8xf32>
    %52 = vector.extract_strided_slice %42 {offsets = [0, 0, 0], sizes = [2, 8, 8], strides = [1, 1, 1]} : vector<2x8x32xf32> to vector<2x8x8xf32>
    "tpu.trace_start"() <{level = 10 : i32, message = "bqd,bkd->bqk"}> : () -> ()
    %cst_23 = arith.constant dense<0.000000e+00> : vector<2x8x8xf32>
    %53 = tpu.matmul %50, %51, %cst_23 {dimension_numbers = #tpu.dot_dimension_numbers<[2], [2], [1], [1], [0, 0, 0, 1, 1, 1], [0], [0]>} : vector<2x8x8xf32>, vector<2x8x8xf32>, vector<2x8x8xf32> -> vector<2x8x8xf32>
    "tpu.trace_stop"() : () -> ()
    %54 = vector.shape_cast %48 : vector<8x8xf32> to vector<1x8x8xf32>
    %55 = vector.broadcast %54 : vector<1x8x8xf32> to vector<2x8x8xf32>
    %56 = arith.addf %53, %55 : vector<2x8x8xf32>
    %cst_24 = arith.constant dense<0xFF800000> : vector<2x8xf32>
    %57 = vector.multi_reduction <maximumf>, %56, %cst_24 [2] : vector<2x8x8xf32> to vector<2x8xf32>
    %58 = vector.shape_cast %57 : vector<2x8xf32> to vector<2x8x1xf32>
    %59 = vector.broadcast %58 : vector<2x8x1xf32> to vector<2x8x8xf32>
    %60 = arith.subf %56, %59 : vector<2x8x8xf32>
    %61 = math.exp %60 : vector<2x8x8xf32>
    %cst_25 = arith.constant dense<0.000000e+00> : vector<2x8xf32>
    %62 = vector.multi_reduction <add>, %61, %cst_25 [2] : vector<2x8x8xf32> to vector<2x8xf32>
    %63 = vector.shape_cast %62 : vector<2x8xf32> to vector<2x8x1xf32>
    %64 = vector.broadcast %63 : vector<2x8x1xf32> to vector<2x8x8xf32>
    %65 = arith.divf %61, %64 : vector<2x8x8xf32>
    "tpu.trace_start"() <{level = 10 : i32, message = "bqk,bkd->bqd"}> : () -> ()
    %cst_26 = arith.constant dense<0.000000e+00> : vector<2x8x8xf32>
    %66 = tpu.matmul %65, %52, %cst_26 {dimension_numbers = #tpu.dot_dimension_numbers<[2], [1], [1], [2], [0, 0, 0, 1, 1, 2], [0], [0]>} : vector<2x8x8xf32>, vector<2x8x8xf32>, vector<2x8x8xf32> -> vector<2x8x8xf32>
    "tpu.trace_stop"() : () -> ()
    %67 = vector.shape_cast %66 : vector<2x8x8xf32> to vector<16x8xf32>
    %c0_27 = arith.constant 0 : index
    %c0_28 = arith.constant 0 : index
    %c0_29 = arith.constant 0 : index
    %68 = vector.load %arg7[%c0_27, %c0_28, %c0_29] : memref<1x32x32xf32, #tpu.memory_space<vmem>>, vector<1x8x32xf32>
    %69 = vector.shape_cast %68 : vector<1x8x32xf32> to vector<8x32xf32>
    %cst_30 = arith.constant dense<0.000000e+00> : vector<16x32xf32>
    %70 = tpu.matmul %67, %69, %cst_30 {dimension_numbers = #tpu.dot_dimension_numbers<[1], [0], [0], [1], [0, 0, 1, 1], [], []>} : vector<16x8xf32>, vector<8x32xf32>, vector<16x32xf32> -> vector<16x32xf32>
    %71 = arith.addf %49, %70 : vector<16x32xf32>
    %72 = vector.extract_strided_slice %40 {offsets = [0, 0, 8], sizes = [2, 8, 8], strides = [1, 1, 1]} : vector<2x8x32xf32> to vector<2x8x8xf32>
    %73 = vector.extract_strided_slice %41 {offsets = [0, 0, 8], sizes = [2, 8, 8], strides = [1, 1, 1]} : vector<2x8x32xf32> to vector<2x8x8xf32>
    %74 = vector.extract_strided_slice %42 {offsets = [0, 0, 8], sizes = [2, 8, 8], strides = [1, 1, 1]} : vector<2x8x32xf32> to vector<2x8x8xf32>
    "tpu.trace_start"() <{level = 10 : i32, message = "bqd,bkd->bqk"}> : () -> ()
    %cst_31 = arith.constant dense<0.000000e+00> : vector<2x8x8xf32>
    %75 = tpu.matmul %72, %73, %cst_31 {dimension_numbers = #tpu.dot_dimension_numbers<[2], [2], [1], [1], [0, 0, 0, 1, 1, 1], [0], [0]>} : vector<2x8x8xf32>, vector<2x8x8xf32>, vector<2x8x8xf32> -> vector<2x8x8xf32>
    "tpu.trace_stop"() : () -> ()
    %76 = vector.shape_cast %48 : vector<8x8xf32> to vector<1x8x8xf32>
    %77 = vector.broadcast %76 : vector<1x8x8xf32> to vector<2x8x8xf32>
    %78 = arith.addf %75, %77 : vector<2x8x8xf32>
    %cst_32 = arith.constant dense<0xFF800000> : vector<2x8xf32>
    %79 = vector.multi_reduction <maximumf>, %78, %cst_32 [2] : vector<2x8x8xf32> to vector<2x8xf32>
    %80 = vector.shape_cast %79 : vector<2x8xf32> to vector<2x8x1xf32>
    %81 = vector.broadcast %80 : vector<2x8x1xf32> to vector<2x8x8xf32>
    %82 = arith.subf %78, %81 : vector<2x8x8xf32>
    %83 = math.exp %82 : vector<2x8x8xf32>
    %cst_33 = arith.constant dense<0.000000e+00> : vector<2x8xf32>
    %84 = vector.multi_reduction <add>, %83, %cst_33 [2] : vector<2x8x8xf32> to vector<2x8xf32>
    %85 = vector.shape_cast %84 : vector<2x8xf32> to vector<2x8x1xf32>
    %86 = vector.broadcast %85 : vector<2x8x1xf32> to vector<2x8x8xf32>
    %87 = arith.divf %83, %86 : vector<2x8x8xf32>
    "tpu.trace_start"() <{level = 10 : i32, message = "bqk,bkd->bqd"}> : () -> ()
    %cst_34 = arith.constant dense<0.000000e+00> : vector<2x8x8xf32>
    %88 = tpu.matmul %87, %74, %cst_34 {dimension_numbers = #tpu.dot_dimension_numbers<[2], [1], [1], [2], [0, 0, 0, 1, 1, 2], [0], [0]>} : vector<2x8x8xf32>, vector<2x8x8xf32>, vector<2x8x8xf32> -> vector<2x8x8xf32>
    "tpu.trace_stop"() : () -> ()
    %89 = vector.shape_cast %88 : vector<2x8x8xf32> to vector<16x8xf32>
    %c0_35 = arith.constant 0 : index
    %c8 = arith.constant 8 : index
    %c0_36 = arith.constant 0 : index
    %90 = vector.load %arg7[%c0_35, %c8, %c0_36] : memref<1x32x32xf32, #tpu.memory_space<vmem>>, vector<1x8x32xf32>
    %91 = vector.shape_cast %90 : vector<1x8x32xf32> to vector<8x32xf32>
    %cst_37 = arith.constant dense<0.000000e+00> : vector<16x32xf32>
    %92 = tpu.matmul %89, %91, %cst_37 {dimension_numbers = #tpu.dot_dimension_numbers<[1], [0], [0], [1], [0, 0, 1, 1], [], []>} : vector<16x8xf32>, vector<8x32xf32>, vector<16x32xf32> -> vector<16x32xf32>
    %93 = arith.addf %71, %92 : vector<16x32xf32>
    %94 = vector.extract_strided_slice %40 {offsets = [0, 0, 16], sizes = [2, 8, 8], strides = [1, 1, 1]} : vector<2x8x32xf32> to vector<2x8x8xf32>
    %95 = vector.extract_strided_slice %41 {offsets = [0, 0, 16], sizes = [2, 8, 8], strides = [1, 1, 1]} : vector<2x8x32xf32> to vector<2x8x8xf32>
    %96 = vector.extract_strided_slice %42 {offsets = [0, 0, 16], sizes = [2, 8, 8], strides = [1, 1, 1]} : vector<2x8x32xf32> to vector<2x8x8xf32>
    "tpu.trace_start"() <{level = 10 : i32, message = "bqd,bkd->bqk"}> : () -> ()
    %cst_38 = arith.constant dense<0.000000e+00> : vector<2x8x8xf32>
    %97 = tpu.matmul %94, %95, %cst_38 {dimension_numbers = #tpu.dot_dimension_numbers<[2], [2], [1], [1], [0, 0, 0, 1, 1, 1], [0], [0]>} : vector<2x8x8xf32>, vector<2x8x8xf32>, vector<2x8x8xf32> -> vector<2x8x8xf32>
    "tpu.trace_stop"() : () -> ()
    %98 = vector.shape_cast %48 : vector<8x8xf32> to vector<1x8x8xf32>
    %99 = vector.broadcast %98 : vector<1x8x8xf32> to vector<2x8x8xf32>
    %100 = arith.addf %97, %99 : vector<2x8x8xf32>
    %cst_39 = arith.constant dense<0xFF800000> : vector<2x8xf32>
    %101 = vector.multi_reduction <maximumf>, %100, %cst_39 [2] : vector<2x8x8xf32> to vector<2x8xf32>
    %102 = vector.shape_cast %101 : vector<2x8xf32> to vector<2x8x1xf32>
    %103 = vector.broadcast %102 : vector<2x8x1xf32> to vector<2x8x8xf32>
    %104 = arith.subf %100, %103 : vector<2x8x8xf32>
    %105 = math.exp %104 : vector<2x8x8xf32>
    %cst_40 = arith.constant dense<0.000000e+00> : vector<2x8xf32>
    %106 = vector.multi_reduction <add>, %105, %cst_40 [2] : vector<2x8x8xf32> to vector<2x8xf32>
    %107 = vector.shape_cast %106 : vector<2x8xf32> to vector<2x8x1xf32>
    %108 = vector.broadcast %107 : vector<2x8x1xf32> to vector<2x8x8xf32>
    %109 = arith.divf %105, %108 : vector<2x8x8xf32>
    "tpu.trace_start"() <{level = 10 : i32, message = "bqk,bkd->bqd"}> : () -> ()
    %cst_41 = arith.constant dense<0.000000e+00> : vector<2x8x8xf32>
    %110 = tpu.matmul %109, %96, %cst_41 {dimension_numbers = #tpu.dot_dimension_numbers<[2], [1], [1], [2], [0, 0, 0, 1, 1, 2], [0], [0]>} : vector<2x8x8xf32>, vector<2x8x8xf32>, vector<2x8x8xf32> -> vector<2x8x8xf32>
    "tpu.trace_stop"() : () -> ()
    %111 = vector.shape_cast %110 : vector<2x8x8xf32> to vector<16x8xf32>
    %c0_42 = arith.constant 0 : index
    %c16 = arith.constant 16 : index
    %c0_43 = arith.constant 0 : index
    %112 = vector.load %arg7[%c0_42, %c16, %c0_43] : memref<1x32x32xf32, #tpu.memory_space<vmem>>, vector<1x8x32xf32>
    %113 = vector.shape_cast %112 : vector<1x8x32xf32> to vector<8x32xf32>
    %cst_44 = arith.constant dense<0.000000e+00> : vector<16x32xf32>
    %114 = tpu.matmul %111, %113, %cst_44 {dimension_numbers = #tpu.dot_dimension_numbers<[1], [0], [0], [1], [0, 0, 1, 1], [], []>} : vector<16x8xf32>, vector<8x32xf32>, vector<16x32xf32> -> vector<16x32xf32>
    %115 = arith.addf %93, %114 : vector<16x32xf32>
    %116 = vector.extract_strided_slice %40 {offsets = [0, 0, 24], sizes = [2, 8, 8], strides = [1, 1, 1]} : vector<2x8x32xf32> to vector<2x8x8xf32>
    %117 = vector.extract_strided_slice %41 {offsets = [0, 0, 24], sizes = [2, 8, 8], strides = [1, 1, 1]} : vector<2x8x32xf32> to vector<2x8x8xf32>
    %118 = vector.extract_strided_slice %42 {offsets = [0, 0, 24], sizes = [2, 8, 8], strides = [1, 1, 1]} : vector<2x8x32xf32> to vector<2x8x8xf32>
    "tpu.trace_start"() <{level = 10 : i32, message = "bqd,bkd->bqk"}> : () -> ()
    %cst_45 = arith.constant dense<0.000000e+00> : vector<2x8x8xf32>
    %119 = tpu.matmul %116, %117, %cst_45 {dimension_numbers = #tpu.dot_dimension_numbers<[2], [2], [1], [1], [0, 0, 0, 1, 1, 1], [0], [0]>} : vector<2x8x8xf32>, vector<2x8x8xf32>, vector<2x8x8xf32> -> vector<2x8x8xf32>
    "tpu.trace_stop"() : () -> ()
    %120 = vector.shape_cast %48 : vector<8x8xf32> to vector<1x8x8xf32>
    %121 = vector.broadcast %120 : vector<1x8x8xf32> to vector<2x8x8xf32>
    %122 = arith.addf %119, %121 : vector<2x8x8xf32>
    %cst_46 = arith.constant dense<0xFF800000> : vector<2x8xf32>
    %123 = vector.multi_reduction <maximumf>, %122, %cst_46 [2] : vector<2x8x8xf32> to vector<2x8xf32>
    %124 = vector.shape_cast %123 : vector<2x8xf32> to vector<2x8x1xf32>
    %125 = vector.broadcast %124 : vector<2x8x1xf32> to vector<2x8x8xf32>
    %126 = arith.subf %122, %125 : vector<2x8x8xf32>
    %127 = math.exp %126 : vector<2x8x8xf32>
    %cst_47 = arith.constant dense<0.000000e+00> : vector<2x8xf32>
    %128 = vector.multi_reduction <add>, %127, %cst_47 [2] : vector<2x8x8xf32> to vector<2x8xf32>
    %129 = vector.shape_cast %128 : vector<2x8xf32> to vector<2x8x1xf32>
    %130 = vector.broadcast %129 : vector<2x8x1xf32> to vector<2x8x8xf32>
    %131 = arith.divf %127, %130 : vector<2x8x8xf32>
    "tpu.trace_start"() <{level = 10 : i32, message = "bqk,bkd->bqd"}> : () -> ()
    %cst_48 = arith.constant dense<0.000000e+00> : vector<2x8x8xf32>
    %132 = tpu.matmul %131, %118, %cst_48 {dimension_numbers = #tpu.dot_dimension_numbers<[2], [1], [1], [2], [0, 0, 0, 1, 1, 2], [0], [0]>} : vector<2x8x8xf32>, vector<2x8x8xf32>, vector<2x8x8xf32> -> vector<2x8x8xf32>
    "tpu.trace_stop"() : () -> ()
    %133 = vector.shape_cast %132 : vector<2x8x8xf32> to vector<16x8xf32>
    %c0_49 = arith.constant 0 : index
    %c24 = arith.constant 24 : index
    %c0_50 = arith.constant 0 : index
    %134 = vector.load %arg7[%c0_49, %c24, %c0_50] : memref<1x32x32xf32, #tpu.memory_space<vmem>>, vector<1x8x32xf32>
    %135 = vector.shape_cast %134 : vector<1x8x32xf32> to vector<8x32xf32>
    %cst_51 = arith.constant dense<0.000000e+00> : vector<16x32xf32>
    %136 = tpu.matmul %133, %135, %cst_51 {dimension_numbers = #tpu.dot_dimension_numbers<[1], [0], [0], [1], [0, 0, 1, 1], [], []>} : vector<16x8xf32>, vector<8x32xf32>, vector<16x32xf32> -> vector<16x32xf32>
    %137 = arith.addf %115, %136 : vector<16x32xf32>
    %138 = arith.addf %3, %137 : vector<16x32xf32>
    %c0_52 = arith.constant 0 : index
    %c0_53 = arith.constant 0 : index
    %c0_54 = arith.constant 0 : index
    %139 = vector.load %arg8[%c0_52, %c0_53, %c0_54] : memref<1x1x32xf32, #tpu.memory_space<vmem>>, vector<1x1x32xf32>
    %140 = vector.shape_cast %139 : vector<1x1x32xf32> to vector<1x32xf32>
    %141 = vector.broadcast %140 : vector<1x32xf32> to vector<16x32xf32>
    %142 = arith.addf %138, %141 : vector<16x32xf32>
    %c0_55 = arith.constant 0 : index
    %c0_56 = arith.constant 0 : index
    %c0_57 = arith.constant 0 : index
    %143 = vector.load %arg9[%c0_55, %c0_56, %c0_57] : memref<1x1x32xf32, #tpu.memory_space<vmem>>, vector<1x1x32xf32>
    %144 = vector.shape_cast %143 : vector<1x1x32xf32> to vector<1x32xf32>
    %c0_58 = arith.constant 0 : index
    %c0_59 = arith.constant 0 : index
    %c0_60 = arith.constant 0 : index
    %145 = vector.load %arg10[%c0_58, %c0_59, %c0_60] : memref<1x1x32xf32, #tpu.memory_space<vmem>>, vector<1x1x32xf32>
    %146 = vector.shape_cast %145 : vector<1x1x32xf32> to vector<1x32xf32>
    %cst_61 = arith.constant dense<0.000000e+00> : vector<16xf32>
    %147 = vector.multi_reduction <add>, %142, %cst_61 [1] : vector<16x32xf32> to vector<16xf32>
    %148 = vector.shape_cast %147 : vector<16xf32> to vector<16x1xf32>
    %cst_62 = arith.constant 3.200000e+01 : f32
    %149 = vector.broadcast %cst_62 : f32 to vector<16x1xf32>
    %150 = arith.divf %148, %149 : vector<16x1xf32>
    %151 = vector.broadcast %150 : vector<16x1xf32> to vector<16x32xf32>
    %152 = arith.subf %142, %151 : vector<16x32xf32>
    %153 = arith.mulf %152, %152 : vector<16x32xf32>
    %cst_63 = arith.constant dense<0.000000e+00> : vector<16xf32>
    %154 = vector.multi_reduction <add>, %153, %cst_63 [1] : vector<16x32xf32> to vector<16xf32>
    %155 = vector.shape_cast %154 : vector<16xf32> to vector<16x1xf32>
    %cst_64 = arith.constant 3.200000e+01 : f32
    %156 = vector.broadcast %cst_64 : f32 to vector<16x1xf32>
    %157 = arith.divf %155, %156 : vector<16x1xf32>
    %158 = vector.broadcast %150 : vector<16x1xf32> to vector<16x32xf32>
    %159 = arith.subf %142, %158 : vector<16x32xf32>
    %cst_65 = arith.constant 9.99999974E-6 : f32
    %160 = vector.broadcast %cst_65 : f32 to vector<16x1xf32>
    %161 = arith.addf %157, %160 : vector<16x1xf32>
    %162 = math.rsqrt %161 : vector<16x1xf32>
    %163 = vector.broadcast %162 : vector<16x1xf32> to vector<16x32xf32>
    %164 = arith.mulf %159, %163 : vector<16x32xf32>
    %165 = vector.broadcast %144 : vector<1x32xf32> to vector<16x32xf32>
    %166 = arith.mulf %164, %165 : vector<16x32xf32>
    %167 = vector.broadcast %146 : vector<1x32xf32> to vector<16x32xf32>
    %168 = arith.addf %166, %167 : vector<16x32xf32>
    %c0_66 = arith.constant 0 : index
    %c0_67 = arith.constant 0 : index
    %c0_68 = arith.constant 0 : index
    %169 = vector.load %arg11[%c0_66, %c0_67, %c0_68] : memref<1x32x128xf32, #tpu.memory_space<vmem>>, vector<1x32x128xf32>
    %170 = vector.shape_cast %169 : vector<1x32x128xf32> to vector<32x128xf32>
    %cst_69 = arith.constant dense<0.000000e+00> : vector<16x128xf32>
    %171 = tpu.matmul %168, %170, %cst_69 {dimension_numbers = #tpu.dot_dimension_numbers<[1], [0], [0], [1], [0, 0, 1, 1], [], []>} : vector<16x32xf32>, vector<32x128xf32>, vector<16x128xf32> -> vector<16x128xf32>
    %c0_70 = arith.constant 0 : index
    %c0_71 = arith.constant 0 : index
    %c0_72 = arith.constant 0 : index
    %172 = vector.load %arg12[%c0_70, %c0_71, %c0_72] : memref<1x1x128xf32, #tpu.memory_space<vmem>>, vector<1x1x128xf32>
    %173 = vector.shape_cast %172 : vector<1x1x128xf32> to vector<1x128xf32>
    %174 = vector.broadcast %173 : vector<1x128xf32> to vector<16x128xf32>
    %175 = arith.addf %171, %174 : vector<16x128xf32>
    %cst_73 = arith.constant 1.702000e+00 : f32
    %176 = vector.broadcast %cst_73 : f32 to vector<16x128xf32>
    %177 = arith.mulf %176, %175 : vector<16x128xf32>
    %178 = arith.negf %177 : vector<16x128xf32>
    %179 = math.exp %178 : vector<16x128xf32>
    %cst_74 = arith.constant 1.000000e+00 : f32
    %180 = vector.broadcast %cst_74 : f32 to vector<16x128xf32>
    %181 = arith.addf %180, %179 : vector<16x128xf32>
    %182 = arith.divf %180, %181 : vector<16x128xf32>
    %183 = arith.mulf %175, %182 : vector<16x128xf32>
    %c0_75 = arith.constant 0 : index
    %c0_76 = arith.constant 0 : index
    %c0_77 = arith.constant 0 : index
    %184 = vector.load %arg13[%c0_75, %c0_76, %c0_77] : memref<1x128x32xf32, #tpu.memory_space<vmem>>, vector<1x128x32xf32>
    %185 = vector.shape_cast %184 : vector<1x128x32xf32> to vector<128x32xf32>
    %cst_78 = arith.constant dense<0.000000e+00> : vector<16x32xf32>
    %186 = tpu.matmul %183, %185, %cst_78 {dimension_numbers = #tpu.dot_dimension_numbers<[1], [0], [0], [1], [0, 0, 1, 1], [], []>} : vector<16x128xf32>, vector<128x32xf32>, vector<16x32xf32> -> vector<16x32xf32>
    %187 = arith.addf %142, %186 : vector<16x32xf32>
    %c0_79 = arith.constant 0 : index
    %c0_80 = arith.constant 0 : index
    %c0_81 = arith.constant 0 : index
    %188 = vector.load %arg14[%c0_79, %c0_80, %c0_81] : memref<1x1x32xf32, #tpu.memory_space<vmem>>, vector<1x1x32xf32>
    %189 = vector.shape_cast %188 : vector<1x1x32xf32> to vector<1x32xf32>
    %190 = vector.broadcast %189 : vector<1x32xf32> to vector<16x32xf32>
    %191 = arith.addf %187, %190 : vector<16x32xf32>
    %c0_82 = arith.constant 0 : index
    %c0_83 = arith.constant 0 : index
    %192 = vector.load %arg19[%c0_82, %c0_83] : memref<16x32xf32, #tpu.memory_space<vmem>>, vector<16x32xf32>
    tpu.vector_store %arg19[%c0_82, %c0_83], %191 {strides = array<i32>} : memref<16x32xf32, #tpu.memory_space<vmem>>, vector<16x32xf32>,
    %c1_i32 = arith.constant 1 : i32
    %193 = arith.cmpi eq, %arg0, %c1_i32 : i32
    %194 = arith.extui %193 : i1 to i32
    %c0_i32_84 = arith.constant 0 : i32
    %195 = arith.cmpi ne, %194, %c0_i32_84 : i32
    scf.if %195 {
      %c0_85 = arith.constant 0 : index
      %196 = memref.load %arg1[%c0_85] : memref<2xi32, #tpu.memory_space<smem>>
      %c0_i32_86 = arith.constant 0 : i32
      %197 = arith.addi %c0_i32_86, %196 : i32
      %198 = arith.index_cast %197 : i32 to index
      %c0_87 = arith.constant 0 : index
      %199 = vector.load %arg19[%198, %c0_87] : memref<16x32xf32, #tpu.memory_space<vmem>>, vector<1x32xf32>
      %c1 = arith.constant 1 : index
      %200 = memref.load %arg1[%c1] : memref<2xi32, #tpu.memory_space<smem>>
      %c8_i32 = arith.constant 8 : i32
      %201 = arith.addi %c8_i32, %200 : i32
      %202 = arith.index_cast %201 : i32 to index
      %c0_88 = arith.constant 0 : index
      %203 = vector.load %arg19[%202, %c0_88] : memref<16x32xf32, #tpu.memory_space<vmem>>, vector<1x32xf32>
      %204 = tpu.concatenate %199, %203 in 0 : vector<1x32xf32>, vector<1x32xf32> -> vector<2x32xf32>
      %c0_89 = arith.constant 0 : index
      %c0_90 = arith.constant 0 : index
      %205 = vector.load %arg15[%c0_89, %c0_90] : memref<1x32xf32, #tpu.memory_space<vmem>>, vector<1x32xf32>
      %c0_91 = arith.constant 0 : index
      %c0_92 = arith.constant 0 : index
      %206 = vector.load %arg16[%c0_91, %c0_92] : memref<1x32xf32, #tpu.memory_space<vmem>>, vector<1x32xf32>
      %cst_93 = arith.constant dense<0.000000e+00> : vector<2xf32>
      %207 = vector.multi_reduction <add>, %204, %cst_93 [1] : vector<2x32xf32> to vector<2xf32>
      %208 = vector.shape_cast %207 : vector<2xf32> to vector<2x1xf32>
      %cst_94 = arith.constant 3.200000e+01 : f32
      %209 = vector.broadcast %cst_94 : f32 to vector<2x1xf32>
      %210 = arith.divf %208, %209 : vector<2x1xf32>
      %211 = vector.broadcast %210 : vector<2x1xf32> to vector<2x32xf32>
      %212 = arith.subf %204, %211 : vector<2x32xf32>
      %213 = arith.mulf %212, %212 : vector<2x32xf32>
      %cst_95 = arith.constant dense<0.000000e+00> : vector<2xf32>
      %214 = vector.multi_reduction <add>, %213, %cst_95 [1] : vector<2x32xf32> to vector<2xf32>
      %215 = vector.shape_cast %214 : vector<2xf32> to vector<2x1xf32>
      %cst_96 = arith.constant 3.200000e+01 : f32
      %216 = vector.broadcast %cst_96 : f32 to vector<2x1xf32>
      %217 = arith.divf %215, %216 : vector<2x1xf32>
      %218 = vector.broadcast %210 : vector<2x1xf32> to vector<2x32xf32>
      %219 = arith.subf %204, %218 : vector<2x32xf32>
      %cst_97 = arith.constant 9.99999974E-6 : f32
      %220 = vector.broadcast %cst_97 : f32 to vector<2x1xf32>
      %221 = arith.addf %217, %220 : vector<2x1xf32>
      %222 = math.rsqrt %221 : vector<2x1xf32>
      %223 = vector.broadcast %222 : vector<2x1xf32> to vector<2x32xf32>
      %224 = arith.mulf %219, %223 : vector<2x32xf32>
      %225 = vector.broadcast %205 : vector<1x32xf32> to vector<2x32xf32>
      %226 = arith.mulf %224, %225 : vector<2x32xf32>
      %227 = vector.broadcast %206 : vector<1x32xf32> to vector<2x32xf32>
      %228 = arith.addf %226, %227 : vector<2x32xf32>
      %c0_98 = arith.constant 0 : index
      %c0_99 = arith.constant 0 : index
      %229 = vector.load %arg17[%c0_98, %c0_99] : memref<32x32xf32, #tpu.memory_space<vmem>>, vector<32x32xf32>
      %cst_100 = arith.constant dense<0.000000e+00> : vector<2x32xf32>
      %230 = tpu.matmul %228, %229, %cst_100 {dimension_numbers = #tpu.dot_dimension_numbers<[1], [0], [0], [1], [0, 0, 1, 1], [], []>} : vector<2x32xf32>, vector<32x32xf32>, vector<2x32xf32> -> vector<2x32xf32>
      %c0_101 = arith.constant 0 : index
      %c0_102 = arith.constant 0 : index
      %231 = vector.load %arg18[%c0_101, %c0_102] : memref<2x32xf32, #tpu.memory_space<vmem>>, vector<2x32xf32>
      tpu.vector_store %arg18[%c0_101, %c0_102], %230 {strides = array<i32>} : memref<2x32xf32, #tpu.memory_space<vmem>>, vector<2x32xf32>,
    } else {
    }
    return
  }
  func.func @transform_0(%arg0: i32, %arg1: memref<2xi32, #tpu.memory_space<smem>>) -> (i32, i32) {
    %c0_i32 = arith.constant 0 : i32
    %c0_i32_0 = arith.constant 0 : i32
    %c0_i32_1 = arith.constant 0 : i32
    return %c0_i32, %c0_i32_0 : i32, i32
  }
  func.func @transform_1(%arg0: i32, %arg1: memref<2xi32, #tpu.memory_space<smem>>) -> (i32, i32, i32) {
    %c0_i32 = arith.constant 0 : i32
    %c0_i32_0 = arith.constant 0 : i32
    %c0_i32_1 = arith.constant 0 : i32
    return %arg0, %c0_i32, %c0_i32_0 : i32, i32, i32
  }
  func.func @transform_2(%arg0: i32, %arg1: memref<2xi32, #tpu.memory_space<smem>>) -> (i32, i32, i32) {
    %c0_i32 = arith.constant 0 : i32
    %c0_i32_0 = arith.constant 0 : i32
    %c0_i32_1 = arith.constant 0 : i32
    return %arg0, %c0_i32, %c0_i32_0 : i32, i32, i32
  }
  func.func @transform_3(%arg0: i32, %arg1: memref<2xi32, #tpu.memory_space<smem>>) -> (i32, i32, i32) {
    %c0_i32 = arith.constant 0 : i32
    %c0_i32_0 = arith.constant 0 : i32
    %c0_i32_1 = arith.constant 0 : i32
    return %arg0, %c0_i32, %c0_i32_0 : i32, i32, i32
  }
  func.func @transform_4(%arg0: i32, %arg1: memref<2xi32, #tpu.memory_space<smem>>) -> (i32, i32, i32) {
    %c0_i32 = arith.constant 0 : i32
    %c0_i32_0 = arith.constant 0 : i32
    %c0_i32_1 = arith.constant 0 : i32
    return %arg0, %c0_i32, %c0_i32_0 : i32, i32, i32
  }
  func.func @transform_5(%arg0: i32, %arg1: memref<2xi32, #tpu.memory_space<smem>>) -> (i32, i32, i32) {
    %c0_i32 = arith.constant 0 : i32
    %c0_i32_0 = arith.constant 0 : i32
    %c0_i32_1 = arith.constant 0 : i32
    return %arg0, %c0_i32, %c0_i32_0 : i32, i32, i32
  }
  func.func @transform_6(%arg0: i32, %arg1: memref<2xi32, #tpu.memory_space<smem>>) -> (i32, i32, i32) {
    %c0_i32 = arith.constant 0 : i32
    %c0_i32_0 = arith.constant 0 : i32
    %c0_i32_1 = arith.constant 0 : i32
    return %arg0, %c0_i32, %c0_i32_0 : i32, i32, i32
  }
  func.func @transform_7(%arg0: i32, %arg1: memref<2xi32, #tpu.memory_space<smem>>) -> (i32, i32, i32) {
    %c0_i32 = arith.constant 0 : i32
    %c0_i32_0 = arith.constant 0 : i32
    %c0_i32_1 = arith.constant 0 : i32
    return %arg0, %c0_i32, %c0_i32_0 : i32, i32, i32
  }
  func.func @transform_8(%arg0: i32, %arg1: memref<2xi32, #tpu.memory_space<smem>>) -> (i32, i32, i32) {
    %c0_i32 = arith.constant 0 : i32
    %c0_i32_0 = arith.constant 0 : i32
    %c0_i32_1 = arith.constant 0 : i32
    return %arg0, %c0_i32, %c0_i32_0 : i32, i32, i32
  }
  func.func @transform_9(%arg0: i32, %arg1: memref<2xi32, #tpu.memory_space<smem>>) -> (i32, i32, i32) {
    %c0_i32 = arith.constant 0 : i32
    %c0_i32_0 = arith.constant 0 : i32
    %c0_i32_1 = arith.constant 0 : i32
    return %arg0, %c0_i32, %c0_i32_0 : i32, i32, i32
  }
  func.func @transform_10(%arg0: i32, %arg1: memref<2xi32, #tpu.memory_space<smem>>) -> (i32, i32, i32) {
    %c0_i32 = arith.constant 0 : i32
    %c0_i32_0 = arith.constant 0 : i32
    %c0_i32_1 = arith.constant 0 : i32
    return %arg0, %c0_i32, %c0_i32_0 : i32, i32, i32
  }
  func.func @transform_11(%arg0: i32, %arg1: memref<2xi32, #tpu.memory_space<smem>>) -> (i32, i32, i32) {
    %c0_i32 = arith.constant 0 : i32
    %c0_i32_0 = arith.constant 0 : i32
    %c0_i32_1 = arith.constant 0 : i32
    return %arg0, %c0_i32, %c0_i32_0 : i32, i32, i32
  }
  func.func @transform_12(%arg0: i32, %arg1: memref<2xi32, #tpu.memory_space<smem>>) -> (i32, i32, i32) {
    %c0_i32 = arith.constant 0 : i32
    %c0_i32_0 = arith.constant 0 : i32
    %c0_i32_1 = arith.constant 0 : i32
    return %arg0, %c0_i32, %c0_i32_0 : i32, i32, i32
  }
  func.func @transform_13(%arg0: i32, %arg1: memref<2xi32, #tpu.memory_space<smem>>) -> (i32, i32) {
    %c0_i32 = arith.constant 0 : i32
    %c0_i32_0 = arith.constant 0 : i32
    %c0_i32_1 = arith.constant 0 : i32
    return %c0_i32, %c0_i32_0 : i32, i32
  }
  func.func @transform_14(%arg0: i32, %arg1: memref<2xi32, #tpu.memory_space<smem>>) -> (i32, i32) {
    %c0_i32 = arith.constant 0 : i32
    %c0_i32_0 = arith.constant 0 : i32
    %c0_i32_1 = arith.constant 0 : i32
    return %c0_i32, %c0_i32_0 : i32, i32
  }
  func.func @transform_15(%arg0: i32, %arg1: memref<2xi32, #tpu.memory_space<smem>>) -> (i32, i32) {
    %c0_i32 = arith.constant 0 : i32
    %c0_i32_0 = arith.constant 0 : i32
    %c0_i32_1 = arith.constant 0 : i32
    return %c0_i32, %c0_i32_0 : i32, i32
  }
  func.func @transform_16(%arg0: i32, %arg1: memref<2xi32, #tpu.memory_space<smem>>) -> (i32, i32) {
    %c0_i32 = arith.constant 0 : i32
    %c0_i32_0 = arith.constant 0 : i32
    %c0_i32_1 = arith.constant 0 : i32
    return %c0_i32, %c0_i32_0 : i32, i32
  }
}

</mosaic_0001>

<llo_original>
// kernel: encode_text_pallas.1
$region0: #{encode_text_pallas.1}
  #allocation0 [shape = 'u32[]', space=smem, size = 0x4, offset = 0x4, fixed_abs, tag = 'smem constant byte address 0x4 - core index']
  #allocation1 [shape = 'u32[144,128]{1,0:T(1,128)}', space=vmem, size = 0x12000, scoped, tag = 'internal scratch']
  #allocation2 [shape = 'f32[16,32]{1,0:T(8,128)}', space=vmem, size = 0x2000, scoped, tag = 'scratch operand']
  #allocation3 [shape = 's32[1]{0}', space=sflag, size = 0x4, scoped, tag = 'scoped memory for encode_text_pallas.1']
  #allocation4 [shape = 'u8[512]{0}', space=smem, size = 0x200, scoped, tag = 'prefetched SMEM operand 0']
  %s0 = inlined_call_operand.vmem [shape: s32[2], index: 0, kind: input, shape index: {}]
  %s1 = inlined_call_operand.vmem [shape: f32[16,32], index: 1, kind: input, shape index: {}]
  %s2 = inlined_call_operand.vmem [shape: f32[2,1,32], index: 2, kind: input, shape index: {}]
  %s3 = inlined_call_operand.vmem [shape: f32[2,1,32], index: 3, kind: input, shape index: {}]
  %s4 = inlined_call_operand.vmem [shape: f32[2,32,96], index: 4, kind: input, shape index: {}]
  %s5 = inlined_call_operand.vmem [shape: f32[2,1,96], index: 5, kind: input, shape index: {}]
  %s6 = inlined_call_operand.vmem [shape: f32[2,32,32], index: 6, kind: input, shape index: {}]
  %s7 = inlined_call_operand.vmem [shape: f32[2,1,32], index: 7, kind: input, shape index: {}]
  %s8 = inlined_call_operand.vmem [shape: f32[2,1,32], index: 8, kind: input, shape index: {}]
  %s9 = inlined_call_operand.vmem [shape: f32[2,1,32], index: 9, kind: input, shape index: {}]
  %s10 = inlined_call_operand.vmem [shape: f32[2,32,128], index: 10, kind: input, shape index: {}]
  %s11 = inlined_call_operand.vmem [shape: f32[2,1,128], index: 11, kind: input, shape index: {}]
  %s12 = inlined_call_operand.vmem [shape: f32[2,128,32], index: 12, kind: input, shape index: {}]
  %s13 = inlined_call_operand.vmem [shape: f32[2,1,32], index: 13, kind: input, shape index: {}]
  %s14 = inlined_call_operand.vmem [shape: f32[1,32], index: 14, kind: input, shape index: {}]
  %s15 = inlined_call_operand.vmem [shape: f32[1,32], index: 15, kind: input, shape index: {}]
  %s16 = inlined_call_operand.vmem [shape: f32[32,32], index: 16, kind: input, shape index: {}]
  %s17 = inlined_call_operand.hbm [shape: f32[2,32], index: 17, kind: output, shape index: {}]
  %s18 = sld [smem:[#allocation0]]
  $region105: #{encode_text_pallas.1} parent=0
    _
  %s20 = ssub.s32 1, %s18
  %s21 = scalar_select 0, %s20, %s18
  %s22 = sshll.u32 %s0, 4
  %s23 = int_to_ptr.vmem [resolvable:$true] %s22
  %25 = dma.vmem_to_smem %s23, 16, [#allocation4], [#allocation3]
  %26 = dma.done [#allocation3], 16
  %27 = sfence
  $region1: #{encode_text_pallas.1} parent=0
    #allocation5 [shape = 'u8[1024]{0}', space=vmem, size = 0x400, scoped, tag = 'output window, operand 0, single buffered']
    #allocation6 [shape = 's32[2]{0}', space=sflag, size = 0x8, scoped, tag = 'scoped memory for encode_text_pallas.1']
    %28 = vsyncpa [#allocation6], 0
    loop: start=0, step=1, limit=4
    $region2: #{encode_text_pallas.1} parent=1 // loop_pre_header
      _
    $region3: #{encode_text_pallas.1} parent=1 // loop_header
      %s30 = sphi 0, %s34
      %p31 = scmp.ge.s32.totalorder %s30, 4
      %s38 = sphi 0, %s38
      %s40 = sphi 0, %s38
      %s41 = sphi 0, %s40
      %s55 = sphi 0, %s41
      %s61 = sphi 0, %s63
      %s64 = sphi 0, %s61
      %s65 = sphi 0, %s64
      %s81 = sphi 0, %s65
      %s87 = sphi 0, %s89
      %s90 = sphi 0, %s87
      %s91 = sphi 0, %s90
      %s107 = sphi 0, %s91
      %s113 = sphi 0, %s115
      %s116 = sphi 0, %s113
      %s117 = sphi 0, %s116
      %s133 = sphi 0, %s117
      %s139 = sphi 0, %s141
      %s142 = sphi 0, %s139
      %s143 = sphi 0, %s142
      %s159 = sphi 0, %s143
      %s165 = sphi 0, %s167
      %s168 = sphi 0, %s165
      %s169 = sphi 0, %s168
      %s185 = sphi 0, %s169
      %s191 = sphi 0, %s193
      %s194 = sphi 0, %s191
      %s195 = sphi 0, %s194
      %s211 = sphi 0, %s195
      %s217 = sphi 0, %s219
      %s220 = sphi 0, %s217
      %s221 = sphi 0, %s220
      %s237 = sphi 0, %s221
      %s243 = sphi 0, %s245
      %s246 = sphi 0, %s243
      %s247 = sphi 0, %s246
      %s263 = sphi 0, %s247
      %s269 = sphi 0, %s271
      %s272 = sphi 0, %s269
      %s273 = sphi 0, %s272
      %s289 = sphi 0, %s273
      %s295 = sphi 0, %s297
      %s298 = sphi 0, %s295
      %s299 = sphi 0, %s298
      %s315 = sphi 0, %s299
      %s321 = sphi 0, %s323
      %s324 = sphi 0, %s321
      %s325 = sphi 0, %s324
      %s341 = sphi 0, %s325
      %s347 = sphi 0, %s349
      %s350 = sphi 0, %s347
      %s351 = sphi 0, %s350
      %s367 = sphi 0, %s351
      %s371 = sphi 0, %s371
      %s373 = sphi 0, %s371
      %s374 = sphi 0, %s373
      %s388 = sphi 0, %s374
      %s392 = sphi 0, %s392
      %s394 = sphi 0, %s392
      %s395 = sphi 0, %s394
      %s409 = sphi 0, %s395
      %s413 = sphi 0, %s413
      %s415 = sphi 0, %s413
      %s416 = sphi 0, %s415
      %s430 = sphi 0, %s416
      %s434 = sphi 0, %s434
      %s436 = sphi 0, %s434
      %s437 = sphi 0, %s436
      %s451 = sphi 0, %s437
    $region4: #{encode_text_pallas.1} parent=1 // loop_header_branch
      %33 = sbr.rel (%p31) target = $region8
    $region5: #{encode_text_pallas.1} parent=1 // loop_body
      %s35 = ssub.s32 %s30, 1
      %s36 = ssub.s32 %s30, 2
      %s37 = sadd.s32 %s30, 1
      %s39 = sadd.s32 %s38, 1
      %p42 = scmp.eq.s32.totalorder %s30, 1
      %p43 = scmp.ne.s32.totalorder %s38, %s40
      %p44 = scmp.eq.s32.totalorder %s30, 0
      %p45 = por %p43, %p44
      %p46 = scmp.ne.s32.totalorder %s38, %s40
      %p47 = scmp.eq.s32.totalorder %s35, 1
      %p48 = por %p46, %p47
      %p49 = scmp.ne.s32.totalorder %s40, %s41
      %p50 = scmp.eq.s32.totalorder %s35, 0
      %p51 = por %p49, %p50
      %p52 = scmp.ne.s32.totalorder %s40, %s41
      %p53 = scmp.eq.s32.totalorder %s36, 1
      %p54 = por %p52, %p53
      %p56 = scmp.ne.s32.totalorder %s41, %s55
      %p57 = scmp.eq.s32.totalorder %s36, 0
      %p58 = por %p56, %p57
      %s59 = ssub.s32 %s30, %s37
      %p60 = scmp.eq.s32.totalorder %s59, 0
      %s62 = sadd.s32 %s61, 1
      %s63 = scalar_select %p60, %s61, %s62
      %p66 = pneg %p60
      %p67 = scmp.eq.s32.totalorder %s30, 1
      %p68 = por %p66, %p67
      %p69 = scmp.ne.s32.totalorder %s61, %s64
      %p70 = scmp.eq.s32.totalorder %s30, 0
      %p71 = por %p69, %p70
      %p72 = scmp.ne.s32.totalorder %s61, %s64
      %p73 = scmp.eq.s32.totalorder %s35, 1
      %p74 = por %p72, %p73
      %p75 = scmp.ne.s32.totalorder %s64, %s65
      %p76 = scmp.eq.s32.totalorder %s35, 0
      %p77 = por %p75, %p76
      %p78 = scmp.ne.s32.totalorder %s64, %s65
      %p79 = scmp.eq.s32.totalorder %s36, 1
      %p80 = por %p78, %p79
      %p82 = scmp.ne.s32.totalorder %s65, %s81
      %p83 = scmp.eq.s32.totalorder %s36, 0
      %p84 = por %p82, %p83
      %s85 = ssub.s32 %s30, %s37
      %p86 = scmp.eq.s32.totalorder %s85, 0
      %s88 = sadd.s32 %s87, 1
      %s89 = scalar_select %p86, %s87, %s88
      %p92 = pneg %p86
      %p93 = scmp.eq.s32.totalorder %s30, 1
      %p94 = por %p92, %p93
      %p95 = scmp.ne.s32.totalorder %s87, %s90
      %p96 = scmp.eq.s32.totalorder %s30, 0
      %p97 = por %p95, %p96
      %p98 = scmp.ne.s32.totalorder %s87, %s90
      %p99 = scmp.eq.s32.totalorder %s35, 1
      %p100 = por %p98, %p99
      %p101 = scmp.ne.s32.totalorder %s90, %s91
      %p102 = scmp.eq.s32.totalorder %s35, 0
      %p103 = por %p101, %p102
      %p104 = scmp.ne.s32.totalorder %s90, %s91
      %p105 = scmp.eq.s32.totalorder %s36, 1
      %p106 = por %p104, %p105
      %p108 = scmp.ne.s32.totalorder %s91, %s107
      %p109 = scmp.eq.s32.totalorder %s36, 0
      %p110 = por %p108, %p109
      %s111 = ssub.s32 %s30, %s37
      %p112 = scmp.eq.s32.totalorder %s111, 0
      %s114 = sadd.s32 %s113, 1
      %s115 = scalar_select %p112, %s113, %s114
      %p118 = pneg %p112
      %p119 = scmp.eq.s32.totalorder %s30, 1
      %p120 = por %p118, %p119
      %p121 = scmp.ne.s32.totalorder %s113, %s116
      %p122 = scmp.eq.s32.totalorder %s30, 0
      %p123 = por %p121, %p122
      %p124 = scmp.ne.s32.totalorder %s113, %s116
      %p125 = scmp.eq.s32.totalorder %s35, 1
      %p126 = por %p124, %p125
      %p127 = scmp.ne.s32.totalorder %s116, %s117
      %p128 = scmp.eq.s32.totalorder %s35, 0
      %p129 = por %p127, %p128
      %p130 = scmp.ne.s32.totalorder %s116, %s117
      %p131 = scmp.eq.s32.totalorder %s36, 1
      %p132 = por %p130, %p131
      %p134 = scmp.ne.s32.totalorder %s117, %s133
      %p135 = scmp.eq.s32.totalorder %s36, 0
      %p136 = por %p134, %p135
      %s137 = ssub.s32 %s30, %s37
      %p138 = scmp.eq.s32.totalorder %s137, 0
      %s140 = sadd.s32 %s139, 1
      %s141 = scalar_select %p138, %s139, %s140
      %p144 = pneg %p138
      %p145 = scmp.eq.s32.totalorder %s30, 1
      %p146 = por %p144, %p145
      %p147 = scmp.ne.s32.totalorder %s139, %s142
      %p148 = scmp.eq.s32.totalorder %s30, 0
      %p149 = por %p147, %p148
      %p150 = scmp.ne.s32.totalorder %s139, %s142
      %p151 = scmp.eq.s32.totalorder %s35, 1
      %p152 = por %p150, %p151
      %p153 = scmp.ne.s32.totalorder %s142, %s143
      %p154 = scmp.eq.s32.totalorder %s35, 0
      %p155 = por %p153, %p154
      %p156 = scmp.ne.s32.totalorder %s142, %s143
      %p157 = scmp.eq.s32.totalorder %s36, 1
      %p158 = por %p156, %p157
      %p160 = scmp.ne.s32.totalorder %s143, %s159
      %p161 = scmp.eq.s32.totalorder %s36, 0
      %p162 = por %p160, %p161
      %s163 = ssub.s32 %s30, %s37
      %p164 = scmp.eq.s32.totalorder %s163, 0
      %s166 = sadd.s32 %s165, 1
      %s167 = scalar_select %p164, %s165, %s166
      %p170 = pneg %p164
      %p171 = scmp.eq.s32.totalorder %s30, 1
      %p172 = por %p170, %p171
      %p173 = scmp.ne.s32.totalorder %s165, %s168
      %p174 = scmp.eq.s32.totalorder %s30, 0
      %p175 = por %p173, %p174
      %p176 = scmp.ne.s32.totalorder %s165, %s168
      %p177 = scmp.eq.s32.totalorder %s35, 1
      %p178 = por %p176, %p177
      %p179 = scmp.ne.s32.totalorder %s168, %s169
      %p180 = scmp.eq.s32.totalorder %s35, 0
      %p181 = por %p179, %p180
      %p182 = scmp.ne.s32.totalorder %s168, %s169
      %p183 = scmp.eq.s32.totalorder %s36, 1
      %p184 = por %p182, %p183
      %p186 = scmp.ne.s32.totalorder %s169, %s185
      %p187 = scmp.eq.s32.totalorder %s36, 0
      %p188 = por %p186, %p187
      %s189 = ssub.s32 %s30, %s37
      %p190 = scmp.eq.s32.totalorder %s189, 0
      %s192 = sadd.s32 %s191, 1
      %s193 = scalar_select %p190, %s191, %s192
      %p196 = pneg %p190
      %p197 = scmp.eq.s32.totalorder %s30, 1
      %p198 = por %p196, %p197
      %p199 = scmp.ne.s32.totalorder %s191, %s194
      %p200 = scmp.eq.s32.totalorder %s30, 0
      %p201 = por %p199, %p200
      %p202 = scmp.ne.s32.totalorder %s191, %s194
      %p203 = scmp.eq.s32.totalorder %s35, 1
      %p204 = por %p202, %p203
      %p205 = scmp.ne.s32.totalorder %s194, %s195
      %p206 = scmp.eq.s32.totalorder %s35, 0
      %p207 = por %p205, %p206
      %p208 = scmp.ne.s32.totalorder %s194, %s195
      %p209 = scmp.eq.s32.totalorder %s36, 1
      %p210 = por %p208, %p209
      %p212 = scmp.ne.s32.totalorder %s195, %s211
      %p213 = scmp.eq.s32.totalorder %s36, 0
      %p214 = por %p212, %p213
      %s215 = ssub.s32 %s30, %s37
      %p216 = scmp.eq.s32.totalorder %s215, 0
      %s218 = sadd.s32 %s217, 1
      %s219 = scalar_select %p216, %s217, %s218
      %p222 = pneg %p216
      %p223 = scmp.eq.s32.totalorder %s30, 1
      %p224 = por %p222, %p223
      %p225 = scmp.ne.s32.totalorder %s217, %s220
      %p226 = scmp.eq.s32.totalorder %s30, 0
      %p227 = por %p225, %p226
      %p228 = scmp.ne.s32.totalorder %s217, %s220
      %p229 = scmp.eq.s32.totalorder %s35, 1
      %p230 = por %p228, %p229
      %p231 = scmp.ne.s32.totalorder %s220, %s221
      %p232 = scmp.eq.s32.totalorder %s35, 0
      %p233 = por %p231, %p232
      %p234 = scmp.ne.s32.totalorder %s220, %s221
      %p235 = scmp.eq.s32.totalorder %s36, 1
      %p236 = por %p234, %p235
      %p238 = scmp.ne.s32.totalorder %s221, %s237
      %p239 = scmp.eq.s32.totalorder %s36, 0
      %p240 = por %p238, %p239
      %s241 = ssub.s32 %s30, %s37
      %p242 = scmp.eq.s32.totalorder %s241, 0
      %s244 = sadd.s32 %s243, 1
      %s245 = scalar_select %p242, %s243, %s244
      %p248 = pneg %p242
      %p249 = scmp.eq.s32.totalorder %s30, 1
      %p250 = por %p248, %p249
      %p251 = scmp.ne.s32.totalorder %s243, %s246
      %p252 = scmp.eq.s32.totalorder %s30, 0
      %p253 = por %p251, %p252
      %p254 = scmp.ne.s32.totalorder %s243, %s246
      %p255 = scmp.eq.s32.totalorder %s35, 1
      %p256 = por %p254, %p255
      %p257 = scmp.ne.s32.totalorder %s246, %s247
      %p258 = scmp.eq.s32.totalorder %s35, 0
      %p259 = por %p257, %p258
      %p260 = scmp.ne.s32.totalorder %s246, %s247
      %p261 = scmp.eq.s32.totalorder %s36, 1
      %p262 = por %p260, %p261
      %p264 = scmp.ne.s32.totalorder %s247, %s263
      %p265 = scmp.eq.s32.totalorder %s36, 0
      %p266 = por %p264, %p265
      %s267 = ssub.s32 %s30, %s37
      %p268 = scmp.eq.s32.totalorder %s267, 0
      %s270 = sadd.s32 %s269, 1
      %s271 = scalar_select %p268, %s269, %s270
      %p274 = pneg %p268
      %p275 = scmp.eq.s32.totalorder %s30, 1
      %p276 = por %p274, %p275
      %p277 = scmp.ne.s32.totalorder %s269, %s272
      %p278 = scmp.eq.s32.totalorder %s30, 0
      %p279 = por %p277, %p278
      %p280 = scmp.ne.s32.totalorder %s269, %s272
      %p281 = scmp.eq.s32.totalorder %s35, 1
      %p282 = por %p280, %p281
      %p283 = scmp.ne.s32.totalorder %s272, %s273
      %p284 = scmp.eq.s32.totalorder %s35, 0
      %p285 = por %p283, %p284
      %p286 = scmp.ne.s32.totalorder %s272, %s273
      %p287 = scmp.eq.s32.totalorder %s36, 1
      %p288 = por %p286, %p287
      %p290 = scmp.ne.s32.totalorder %s273, %s289
      %p291 = scmp.eq.s32.totalorder %s36, 0
      %p292 = por %p290, %p291
      %s293 = ssub.s32 %s30, %s37
      %p294 = scmp.eq.s32.totalorder %s293, 0
      %s296 = sadd.s32 %s295, 1
      %s297 = scalar_select %p294, %s295, %s296
      %p300 = pneg %p294
      %p301 = scmp.eq.s32.totalorder %s30, 1
      %p302 = por %p300, %p301
      %p303 = scmp.ne.s32.totalorder %s295, %s298
      %p304 = scmp.eq.s32.totalorder %s30, 0
      %p305 = por %p303, %p304
      %p306 = scmp.ne.s32.totalorder %s295, %s298
      %p307 = scmp.eq.s32.totalorder %s35, 1
      %p308 = por %p306, %p307
      %p309 = scmp.ne.s32.totalorder %s298, %s299
      %p310 = scmp.eq.s32.totalorder %s35, 0
      %p311 = por %p309, %p310
      %p312 = scmp.ne.s32.totalorder %s298, %s299
      %p313 = scmp.eq.s32.totalorder %s36, 1
      %p314 = por %p312, %p313
      %p316 = scmp.ne.s32.totalorder %s299, %s315
      %p317 = scmp.eq.s32.totalorder %s36, 0
      %p318 = por %p316, %p317
      %s319 = ssub.s32 %s30, %s37
      %p320 = scmp.eq.s32.totalorder %s319, 0
      %s322 = sadd.s32 %s321, 1
      %s323 = scalar_select %p320, %s321, %s322
      %p326 = pneg %p320
      %p327 = scmp.eq.s32.totalorder %s30, 1
      %p328 = por %p326, %p327
      %p329 = scmp.ne.s32.totalorder %s321, %s324
      %p330 = scmp.eq.s32.totalorder %s30, 0
      %p331 = por %p329, %p330
      %p332 = scmp.ne.s32.totalorder %s321, %s324
      %p333 = scmp.eq.s32.totalorder %s35, 1
      %p334 = por %p332, %p333
      %p335 = scmp.ne.s32.totalorder %s324, %s325
      %p336 = scmp.eq.s32.totalorder %s35, 0
      %p337 = por %p335, %p336
      %p338 = scmp.ne.s32.totalorder %s324, %s325
      %p339 = scmp.eq.s32.totalorder %s36, 1
      %p340 = por %p338, %p339
      %p342 = scmp.ne.s32.totalorder %s325, %s341
      %p343 = scmp.eq.s32.totalorder %s36, 0
      %p344 = por %p342, %p343
      %s345 = ssub.s32 %s30, %s37
      %p346 = scmp.eq.s32.totalorder %s345, 0
      %s348 = sadd.s32 %s347, 1
      %s349 = scalar_select %p346, %s347, %s348
      %p352 = pneg %p346
      %p353 = scmp.eq.s32.totalorder %s30, 1
      %p354 = por %p352, %p353
      %p355 = scmp.ne.s32.totalorder %s347, %s350
      %p356 = scmp.eq.s32.totalorder %s30, 0
      %p357 = por %p355, %p356
      %p358 = scmp.ne.s32.totalorder %s347, %s350
      %p359 = scmp.eq.s32.totalorder %s35, 1
      %p360 = por %p358, %p359
      %p361 = scmp.ne.s32.totalorder %s350, %s351
      %p362 = scmp.eq.s32.totalorder %s35, 0
      %p363 = por %p361, %p362
      %p364 = scmp.ne.s32.totalorder %s350, %s351
      %p365 = scmp.eq.s32.totalorder %s36, 1
      %p366 = por %p364, %p365
      %p368 = scmp.ne.s32.totalorder %s351, %s367
      %p369 = scmp.eq.s32.totalorder %s36, 0
      %p370 = por %p368, %p369
      %s372 = sadd.s32 %s371, 1
      %p375 = scmp.eq.s32.totalorder %s30, 1
      %p376 = scmp.ne.s32.totalorder %s371, %s373
      %p377 = scmp.eq.s32.totalorder %s30, 0
      %p378 = por %p376, %p377
      %p379 = scmp.ne.s32.totalorder %s371, %s373
      %p380 = scmp.eq.s32.totalorder %s35, 1
      %p381 = por %p379, %p380
      %p382 = scmp.ne.s32.totalorder %s373, %s374
      %p383 = scmp.eq.s32.totalorder %s35, 0
      %p384 = por %p382, %p383
      %p385 = scmp.ne.s32.totalorder %s373, %s374
      %p386 = scmp.eq.s32.totalorder %s36, 1
      %p387 = por %p385, %p386
      %p389 = scmp.ne.s32.totalorder %s374, %s388
      %p390 = scmp.eq.s32.totalorder %s36, 0
      %p391 = por %p389, %p390
      %s393 = sadd.s32 %s392, 1
      %p396 = scmp.eq.s32.totalorder %s30, 1
      %p397 = scmp.ne.s32.totalorder %s392, %s394
      %p398 = scmp.eq.s32.totalorder %s30, 0
      %p399 = por %p397, %p398
      %p400 = scmp.ne.s32.totalorder %s392, %s394
      %p401 = scmp.eq.s32.totalorder %s35, 1
      %p402 = por %p400, %p401
      %p403 = scmp.ne.s32.totalorder %s394, %s395
      %p404 = scmp.eq.s32.totalorder %s35, 0
      %p405 = por %p403, %p404
      %p406 = scmp.ne.s32.totalorder %s394, %s395
      %p407 = scmp.eq.s32.totalorder %s36, 1
      %p408 = por %p406, %p407
      %p410 = scmp.ne.s32.totalorder %s395, %s409
      %p411 = scmp.eq.s32.totalorder %s36, 0
      %p412 = por %p410, %p411
      %s414 = sadd.s32 %s413, 1
      %p417 = scmp.eq.s32.totalorder %s30, 1
      %p418 = scmp.ne.s32.totalorder %s413, %s415
      %p419 = scmp.eq.s32.totalorder %s30, 0
      %p420 = por %p418, %p419
      %p421 = scmp.ne.s32.totalorder %s413, %s415
      %p422 = scmp.eq.s32.totalorder %s35, 1
      %p423 = por %p421, %p422
      %p424 = scmp.ne.s32.totalorder %s415, %s416
      %p425 = scmp.eq.s32.totalorder %s35, 0
      %p426 = por %p424, %p425
      %p427 = scmp.ne.s32.totalorder %s415, %s416
      %p428 = scmp.eq.s32.totalorder %s36, 1
      %p429 = por %p427, %p428
      %p431 = scmp.ne.s32.totalorder %s416, %s430
      %p432 = scmp.eq.s32.totalorder %s36, 0
      %p433 = por %p431, %p432
      %s435 = sadd.s32 %s434, 1
      %p438 = scmp.eq.s32.totalorder %s30, 1
      %p439 = scmp.ne.s32.totalorder %s434, %s436
      %p440 = scmp.eq.s32.totalorder %s30, 0
      %p441 = por %p439, %p440
      %p442 = scmp.ne.s32.totalorder %s434, %s436
      %p443 = scmp.eq.s32.totalorder %s35, 1
      %p444 = por %p442, %p443
      %p445 = scmp.ne.s32.totalorder %s436, %s437
      %p446 = scmp.eq.s32.totalorder %s35, 0
      %p447 = por %p445, %p446
      %p448 = scmp.ne.s32.totalorder %s436, %s437
      %p449 = scmp.eq.s32.totalorder %s36, 1
      %p450 = por %p448, %p449
      %p452 = scmp.ne.s32.totalorder %s437, %s451
      %p453 = scmp.eq.s32.totalorder %s36, 0
      %p454 = por %p452, %p453
      %p455 = scmp.le.s32.totalorder 1, %s30
      %p456 = scmp.lt.s32.totalorder %s30, 3
      %p457 = pnand %p455, %p456
      %p458 = pneg %p457
      // Predicated region
      $region9: #{encode_text_pallas.1} parent=5 // pred_check
        _
      $region10: #{encode_text_pallas.1} parent=5 // pred_check_branch
        %460 = sbr.rel (%p457) target = $region12
      $region11: #{encode_text_pallas.1} parent=5 // pred_region
        %s461 = ssub.s32 %s30, 1
        // Predicated region
        $region13: #{encode_text_pallas.1} parent=11 // pred_check
          %p462 = pneg %p51
        $region14: #{encode_text_pallas.1} parent=11 // pred_check_branch
          %464 = sbr.rel (%p462) target = $region16
        $region15: #{encode_text_pallas.1} parent=11 // pred_region
          _
        $region16: #{encode_text_pallas.1} parent=11 // pred_fallthru
          _
        // Predicated region
        $region17: #{encode_text_pallas.1} parent=11 // pred_check
          %p465 = pneg %p384
        $region18: #{encode_text_pallas.1} parent=11 // pred_check_branch
          %467 = sbr.rel (%p465) target = $region20
        $region19: #{encode_text_pallas.1} parent=11 // pred_region
          _
        $region20: #{encode_text_pallas.1} parent=11 // pred_fallthru
          _
        // Predicated region
        $region21: #{encode_text_pallas.1} parent=11 // pred_check
          %p468 = pneg %p405
        $region22: #{encode_text_pallas.1} parent=11 // pred_check_branch
          %470 = sbr.rel (%p468) target = $region24
        $region23: #{encode_text_pallas.1} parent=11 // pred_region
          _
        $region24: #{encode_text_pallas.1} parent=11 // pred_fallthru
          _
        // Predicated region
        $region25: #{encode_text_pallas.1} parent=11 // pred_check
          %p471 = pneg %p426
        $region26: #{encode_text_pallas.1} parent=11 // pred_check_branch
          %473 = sbr.rel (%p471) target = $region28
        $region27: #{encode_text_pallas.1} parent=11 // pred_region
          _
        $region28: #{encode_text_pallas.1} parent=11 // pred_fallthru
          _
      $region12: #{encode_text_pallas.1} parent=5 // pred_fallthru
        _
      %p474 = scmp.lt.s32.totalorder %s30, 2
      // Predicated region
      $region29: #{encode_text_pallas.1} parent=5 // pred_check
        %p475 = pneg %p474
      $region30: #{encode_text_pallas.1} parent=5 // pred_check_branch
        %477 = sbr.rel (%p475) target = $region32
      $region31: #{encode_text_pallas.1} parent=5 // pred_region
        // Predicated region
        $region33: #{encode_text_pallas.1} parent=31 // pred_check
          %p478 = pneg %p71
        $region34: #{encode_text_pallas.1} parent=31 // pred_check_branch
          %480 = sbr.rel (%p478) target = $region36
        $region35: #{encode_text_pallas.1} parent=31 // pred_region
          %p481 = scmp.lt.s32.totalorder %s30, 1
          %s482 = scalar_select %p481, %s30, 1
          %s483 = scalar_lea.vmem %s2, %s482
        $region36: #{encode_text_pallas.1} parent=31 // pred_fallthru
          _
        // Predicated region
        $region37: #{encode_text_pallas.1} parent=31 // pred_check
          %p484 = pneg %p97
        $region38: #{encode_text_pallas.1} parent=31 // pred_check_branch
          %486 = sbr.rel (%p484) target = $region40
        $region39: #{encode_text_pallas.1} parent=31 // pred_region
          %p487 = scmp.lt.s32.totalorder %s30, 1
          %s488 = scalar_select %p487, %s30, 1
          %s489 = scalar_lea.vmem %s3, %s488
        $region40: #{encode_text_pallas.1} parent=31 // pred_fallthru
          _
        // Predicated region
        $region41: #{encode_text_pallas.1} parent=31 // pred_check
          %p490 = pneg %p123
        $region42: #{encode_text_pallas.1} parent=31 // pred_check_branch
          %492 = sbr.rel (%p490) target = $region44
        $region43: #{encode_text_pallas.1} parent=31 // pred_region
          %p493 = scmp.lt.s32.totalorder %s30, 1
          %s494 = scalar_select %p493, %s30, 1
          %s495 = smul.addr %s494, 4
          %s496 = smul.addr %s495, 8
          %s497 = scalar_lea.vmem %s4, %s496
        $region44: #{encode_text_pallas.1} parent=31 // pred_fallthru
          _
        // Predicated region
        $region45: #{encode_text_pallas.1} parent=31 // pred_check
          %p498 = pneg %p149
        $region46: #{encode_text_pallas.1} parent=31 // pred_check_branch
          %500 = sbr.rel (%p498) target = $region48
        $region47: #{encode_text_pallas.1} parent=31 // pred_region
          %p501 = scmp.lt.s32.totalorder %s30, 1
          %s502 = scalar_select %p501, %s30, 1
          %s503 = scalar_lea.vmem %s5, %s502
        $region48: #{encode_text_pallas.1} parent=31 // pred_fallthru
          _
        // Predicated region
        $region49: #{encode_text_pallas.1} parent=31 // pred_check
          %p504 = pneg %p175
        $region50: #{encode_text_pallas.1} parent=31 // pred_check_branch
          %506 = sbr.rel (%p504) target = $region52
        $region51: #{encode_text_pallas.1} parent=31 // pred_region
          %p507 = scmp.lt.s32.totalorder %s30, 1
          %s508 = scalar_select %p507, %s30, 1
          %s509 = smul.addr %s508, 4
          %s510 = smul.addr %s509, 8
          %s511 = scalar_lea.vmem %s6, %s510
        $region52: #{encode_text_pallas.1} parent=31 // pred_fallthru
          _
        // Predicated region
        $region53: #{encode_text_pallas.1} parent=31 // pred_check
          %p512 = pneg %p201
        $region54: #{encode_text_pallas.1} parent=31 // pred_check_branch
          %514 = sbr.rel (%p512) target = $region56
        $region55: #{encode_text_pallas.1} parent=31 // pred_region
          %p515 = scmp.lt.s32.totalorder %s30, 1
          %s516 = scalar_select %p515, %s30, 1
          %s517 = scalar_lea.vmem %s7, %s516
        $region56: #{encode_text_pallas.1} parent=31 // pred_fallthru
          _
        // Predicated region
        $region57: #{encode_text_pallas.1} parent=31 // pred_check
          %p518 = pneg %p227
        $region58: #{encode_text_pallas.1} parent=31 // pred_check_branch
          %520 = sbr.rel (%p518) target = $region60
        $region59: #{encode_text_pallas.1} parent=31 // pred_region
          %p521 = scmp.lt.s32.totalorder %s30, 1
          %s522 = scalar_select %p521, %s30, 1
          %s523 = scalar_lea.vmem %s8, %s522
        $region60: #{encode_text_pallas.1} parent=31 // pred_fallthru
          _
        // Predicated region
        $region61: #{encode_text_pallas.1} parent=31 // pred_check
          %p524 = pneg %p253
        $region62: #{encode_text_pallas.1} parent=31 // pred_check_branch
          %526 = sbr.rel (%p524) target = $region64
        $region63: #{encode_text_pallas.1} parent=31 // pred_region
          %p527 = scmp.lt.s32.totalorder %s30, 1
          %s528 = scalar_select %p527, %s30, 1
          %s529 = scalar_lea.vmem %s9, %s528
        $region64: #{encode_text_pallas.1} parent=31 // pred_fallthru
          _
        // Predicated region
        $region65: #{encode_text_pallas.1} parent=31 // pred_check
          %p530 = pneg %p279
        $region66: #{encode_text_pallas.1} parent=31 // pred_check_branch
          %532 = sbr.rel (%p530) target = $region68
        $region67: #{encode_text_pallas.1} parent=31 // pred_region
          %p533 = scmp.lt.s32.totalorder %s30, 1
          %s534 = scalar_select %p533, %s30, 1
          %s535 = smul.addr %s534, 4
          %s536 = smul.addr %s535, 8
          %s537 = scalar_lea.vmem %s10, %s536
        $region68: #{encode_text_pallas.1} parent=31 // pred_fallthru
          _
        // Predicated region
        $region69: #{encode_text_pallas.1} parent=31 // pred_check
          %p538 = pneg %p305
        $region70: #{encode_text_pallas.1} parent=31 // pred_check_branch
          %540 = sbr.rel (%p538) target = $region72
        $region71: #{encode_text_pallas.1} parent=31 // pred_region
          %p541 = scmp.lt.s32.totalorder %s30, 1
          %s542 = scalar_select %p541, %s30, 1
          %s543 = scalar_lea.vmem %s11, %s542
        $region72: #{encode_text_pallas.1} parent=31 // pred_fallthru
          _
        // Predicated region
        $region73: #{encode_text_pallas.1} parent=31 // pred_check
          %p544 = pneg %p331
        $region74: #{encode_text_pallas.1} parent=31 // pred_check_branch
          %546 = sbr.rel (%p544) target = $region76
        $region75: #{encode_text_pallas.1} parent=31 // pred_region
          %p547 = scmp.lt.s32.totalorder %s30, 1
          %s548 = scalar_select %p547, %s30, 1
          %s549 = smul.addr %s548, 16
          %s550 = smul.addr %s549, 8
          %s551 = scalar_lea.vmem %s12, %s550
        $region76: #{encode_text_pallas.1} parent=31 // pred_fallthru
          _
        // Predicated region
        $region77: #{encode_text_pallas.1} parent=31 // pred_check
          %p552 = pneg %p357
        $region78: #{encode_text_pallas.1} parent=31 // pred_check_branch
          %554 = sbr.rel (%p552) target = $region80
        $region79: #{encode_text_pallas.1} parent=31 // pred_region
          %p555 = scmp.lt.s32.totalorder %s30, 1
          %s556 = scalar_select %p555, %s30, 1
          %s557 = scalar_lea.vmem %s13, %s556
        $region80: #{encode_text_pallas.1} parent=31 // pred_fallthru
          _
      $region32: #{encode_text_pallas.1} parent=5 // pred_fallthru
        _
      %p558 = scmp.le.s32.totalorder 1, %s30
      %p559 = scmp.lt.s32.totalorder %s30, 3
      %p560 = pnand %p558, %p559
      %p561 = pneg %p560
      // Predicated region
      $region81: #{encode_text_pallas.1} parent=5 // pred_check
        _
      $region82: #{encode_text_pallas.1} parent=5 // pred_check_branch
        %563 = sbr.rel (%p560) target = $region84
      $region83: #{encode_text_pallas.1} parent=5 // pred_region
        %s564 = ssub.s32 %s30, 1
        %p565 = pneg %p51
        %p566 = pneg %p48
        %p567 = scmp.lt.s32.totalorder %s35, 1
        %s568 = scalar_select %p567, %s35, 1
        %s569 = scalar_lea.vmem %s2, %s568
        %p570 = pneg %p77
        %p571 = pneg %p74
        %p572 = scmp.lt.s32.totalorder %s35, 1
        %s573 = scalar_select %p572, %s35, 1
        %s574 = scalar_lea.vmem %s3, %s573
        %p575 = pneg %p103
        %p576 = pneg %p100
        %p577 = scmp.lt.s32.totalorder %s35, 1
        %s578 = scalar_select %p577, %s35, 1
        %s579 = smul.addr %s578, 4
        %s580 = smul.addr %s579, 8
        %s581 = scalar_lea.vmem %s4, %s580
        %p582 = pneg %p129
        %p583 = pneg %p126
        %p584 = scmp.lt.s32.totalorder %s35, 1
        %s585 = scalar_select %p584, %s35, 1
        %s586 = scalar_lea.vmem %s5, %s585
        %p587 = pneg %p155
        %p588 = pneg %p152
        %p589 = scmp.lt.s32.totalorder %s35, 1
        %s590 = scalar_select %p589, %s35, 1
        %s591 = smul.addr %s590, 4
        %s592 = smul.addr %s591, 8
        %s593 = scalar_lea.vmem %s6, %s592
        %p594 = pneg %p181
        %p595 = pneg %p178
        %p596 = scmp.lt.s32.totalorder %s35, 1
        %s597 = scalar_select %p596, %s35, 1
        %s598 = scalar_lea.vmem %s7, %s597
        %p599 = pneg %p207
        %p600 = pneg %p204
        %p601 = scmp.lt.s32.totalorder %s35, 1
        %s602 = scalar_select %p601, %s35, 1
        %s603 = scalar_lea.vmem %s8, %s602
        %p604 = pneg %p233
        %p605 = pneg %p230
        %p606 = scmp.lt.s32.totalorder %s35, 1
        %s607 = scalar_select %p606, %s35, 1
        %s608 = scalar_lea.vmem %s9, %s607
        %p609 = pneg %p259
        %p610 = pneg %p256
        %p611 = scmp.lt.s32.totalorder %s35, 1
        %s612 = scalar_select %p611, %s35, 1
        %s613 = smul.addr %s612, 4
        %s614 = smul.addr %s613, 8
        %s615 = scalar_lea.vmem %s10, %s614
        %p616 = pneg %p285
        %p617 = pneg %p282
        %p618 = scmp.lt.s32.totalorder %s35, 1
        %s619 = scalar_select %p618, %s35, 1
        %s620 = scalar_lea.vmem %s11, %s619
        %p621 = pneg %p311
        %p622 = pneg %p308
        %p623 = scmp.lt.s32.totalorder %s35, 1
        %s624 = scalar_select %p623, %s35, 1
        %s625 = smul.addr %s624, 16
        %s626 = smul.addr %s625, 8
        %s627 = scalar_lea.vmem %s12, %s626
        %p628 = pneg %p337
        %p629 = pneg %p334
        %p630 = scmp.lt.s32.totalorder %s35, 1
        %s631 = scalar_select %p630, %s35, 1
        %s632 = scalar_lea.vmem %s13, %s631
        %p633 = pneg %p363
        %p634 = pneg %p360
        %p635 = pneg %p384
        %p636 = pneg %p381
        %p637 = pneg %p405
        %p638 = pneg %p402
        %p639 = pneg %p426
        %p640 = pneg %p423
        %p641 = pneg %p447
        %p642 = pneg %p444
        %p643 = scmp.lt.s32.totalorder %s35, 1
        %s644 = scalar_select %p643, %s35, 1
        %s645 = scalar_lea.vmem %s2, %s644
        %p646 = scmp.lt.s32.totalorder %s35, 1
        %s647 = scalar_select %p646, %s35, 1
        %s648 = scalar_lea.vmem %s3, %s647
        %p649 = scmp.lt.s32.totalorder %s35, 1
        %s650 = scalar_select %p649, %s35, 1
        %s651 = smul.addr %s650, 4
        %s652 = smul.addr %s651, 8
        %s653 = scalar_lea.vmem %s4, %s652
        %p654 = scmp.lt.s32.totalorder %s35, 1
        %s655 = scalar_select %p654, %s35, 1
        %s656 = scalar_lea.vmem %s5, %s655
        %p657 = scmp.lt.s32.totalorder %s35, 1
        %s658 = scalar_select %p657, %s35, 1
        %s659 = smul.addr %s658, 4
        %s660 = smul.addr %s659, 8
        %s661 = scalar_lea.vmem %s6, %s660
        %p662 = scmp.lt.s32.totalorder %s35, 1
        %s663 = scalar_select %p662, %s35, 1
        %s664 = scalar_lea.vmem %s7, %s663
        %p665 = scmp.lt.s32.totalorder %s35, 1
        %s666 = scalar_select %p665, %s35, 1
        %s667 = scalar_lea.vmem %s8, %s666
        %p668 = scmp.lt.s32.totalorder %s35, 1
        %s669 = scalar_select %p668, %s35, 1
        %s670 = scalar_lea.vmem %s9, %s669
        %p671 = scmp.lt.s32.totalorder %s35, 1
        %s672 = scalar_select %p671, %s35, 1
        %s673 = smul.addr %s672, 4
        %s674 = smul.addr %s673, 8
        %s675 = scalar_lea.vmem %s10, %s674
        %p676 = scmp.lt.s32.totalorder %s35, 1
        %s677 = scalar_select %p676, %s35, 1
        %s678 = scalar_lea.vmem %s11, %s677
        %p679 = scmp.lt.s32.totalorder %s35, 1
        %s680 = scalar_select %p679, %s35, 1
        %s681 = smul.addr %s680, 16
        %s682 = smul.addr %s681, 8
        %s683 = scalar_lea.vmem %s12, %s682
        %p684 = scmp.lt.s32.totalorder %s35, 1
        %s685 = scalar_select %p684, %s35, 1
        %s686 = scalar_lea.vmem %s13, %s685
        %p687 = scmp.eq.s32.totalorder %s35, 0
        // Predicated region
        $region85: #{encode_text_pallas.1} parent=83 // pred_check
          %p688 = pneg %p687
        $region86: #{encode_text_pallas.1} parent=83 // pred_check_branch
          %690 = sbr.rel (%p688) target = $region88
        $region87: #{encode_text_pallas.1} parent=83 // pred_region
          %v691 = vld [vmem:[%s1] sm:$0xff]
          %v692 = vld [vmem:[%s1 + $0x8] sm:$0xff]
          %vm693 = vcmask 261120
          %694 = vst.msk [vmem:[#allocation2] sm:$0xff] %vm693, %v691
          %695 = vst.msk [vmem:[#allocation2 + $0x8] sm:$0xff] %vm693, %v692
        $region88: #{encode_text_pallas.1} parent=83 // pred_fallthru
          _
        %v696 = vld [vmem:[#allocation2] sm:$0xff]
        %v697 = vld [vmem:[#allocation2 + $0x8] sm:$0xff]
        %v698 = vld [vmem:[%s645] sm:$0x1]
        %v699 = vld [vmem:[%s648] sm:$0x1]
        %vm700 = vcmask 261120
        %v701 = vsel %vm700, %v696, 0.0
        %702 = vadd.xlane.f32.xlu0 %v701
        %v703 = vpop.xlane.xlu0 %702
        %v704 = vsel %vm700, %v697, 0.0
        %705 = vadd.xlane.f32.xlu0 %v704
        %v706 = vpop.xlane.xlu0 %705
        %v707 = vrcp.pop 32.0
        %v708 = vmul.f32 %v703, %v707
        %v709 = vmul.f32 %v706, %v707
        %v710 = vsub.f32 %v696, %v708
        %v711 = vsub.f32 %v697, %v709
        %v712 = vmul.f32 %v710, %v710
        %v713 = vmul.f32 %v711, %v711
        %v714 = vsel %vm700, %v712, 0.0
        %715 = vadd.xlane.f32.xlu0 %v714
        %v716 = vpop.xlane.xlu0 %715
        %v717 = vsel %vm700, %v713, 0.0
        %718 = vadd.xlane.f32.xlu0 %v717
        %v719 = vpop.xlane.xlu0 %718
        %v720 = vmul.f32 %v716, %v707
        %v721 = vmul.f32 %v719, %v707
        %v722 = vadd.f32 %v720, 1e-05
        %v723 = vadd.f32 %v721, 1e-05
        %v724 = vrsqrt.pop %v722
        %v725 = vrsqrt.pop %v723
        %v726 = vmul.f32 %v710, %v724
        %v727 = vmul.f32 %v711, %v725
        %v729 = vlaneseq
        %v730 = vshrl.u32 %v729, 7
        %v731 = vsub.s32 0, %v730
        %v732 = vrot.slane %v698, %v731
        %v734 = vmul.f32 %v726, %v732
        %v735 = vmul.f32 %v727, %v732
        %v737 = vlaneseq
        %v738 = vshrl.u32 %v737, 7
        %v739 = vsub.s32 0, %v738
        %v740 = vrot.slane %v699, %v739
        %v742 = vadd.f32 %v734, %v740
        %v743 = vadd.f32 %v735, %v740
        %v744 = vld [vmem:[%s653] sm:$0xff]
        %v745 = vld [vmem:[%s653 + $0x8] sm:$0xff]
        %v746 = vld [vmem:[%s653 + $0x10] sm:$0xff]
        %v747 = vld [vmem:[%s653 + $0x18] sm:$0xff]
        %v748 = vld [vmem:[%s656] sm:$0x1]
        %v750 = vlaneseq
        %v751 = vshrl.u32 %v750, 7
        %v752 = vsub.s32 0, %v751
        %v753 = vrot.slane %v748, %v752
        %v756 = vsel %vm700, %v742, 0
        %v759 = vsel %vm700, %v743, 0
        %761 = vmatprep.subr.mxu0 0.0
        %762 = vmatpush1.msra.mxu0 0.0
        %763 = vmatprep.subr.mxu0 0.0
        %764 = vmatpush1.msra.mxu0 0.0
        %765 = vmatprep.subr.mxu0 0.0
        %766 = vmatpush1.msra.mxu0 0.0
        %767 = vmatprep.subr.mxu0 0.0
        %768 = vmatpush1.msra.mxu0 0.0
        %769 = vmatprep.subr.mxu0 0.0
        %770 = vmatpush1.msra.mxu0 0.0
        %771 = vmatprep.subr.mxu0 0.0
        %772 = vmatpush1.msra.mxu0 0.0
        %773 = vmatprep.subr.mxu0 0.0
        %774 = vmatpush1.msra.mxu0 0.0
        %775 = vmatprep.subr.mxu0 0.0
        %776 = vmatpush1.msra.mxu0 0.0
        %777 = vmatprep.subr.mxu0 0.0
        %778 = vmatpush1.msra.mxu0 0.0
        %779 = vmatprep.subr.mxu0 0.0
        %780 = vmatpush1.msra.mxu0 0.0
        %781 = vmatprep.subr.mxu0 0.0
        %782 = vmatpush1.msra.mxu0 0.0
        %783 = vmatprep.subr.mxu0 0.0
        %784 = vmatpush1.msra.mxu0 0.0
        %785 = vmatprep.subr.mxu0 0.0
        %786 = vmatpush1.msra.mxu0 %v747
        %787 = vmatprep.subr.mxu0 0.0
        %788 = vmatpush1.msra.mxu0 %v746
        %789 = vmatprep.subr.mxu0 0.0
        %790 = vmatpush1.msra.mxu0 %v745
        %791 = vmatprep.subr.mxu0 0.0
        %792 = vmatpush1.msra.mxu0 %v744
        %793 = vmatprep.subr.mxu0 0.0
        %794 = vmatpush2.msra.mxu0 0.0
        %795 = vmatprep.subr.mxu0 0.0
        %796 = vmatpush2.msra.mxu0 0.0
        %797 = vmatprep.subr.mxu0 0.0
        %798 = vmatpush2.msra.mxu0 0.0
        %799 = vmatprep.subr.mxu0 0.0
        %800 = vmatpush2.msra.mxu0 0.0
        %801 = vmatprep.subr.mxu0 0.0
        %802 = vmatpush2.msra.mxu0 0.0
        %803 = vmatprep.subr.mxu0 0.0
        %804 = vmatpush2.msra.mxu0 0.0
        %805 = vmatprep.subr.mxu0 0.0
        %806 = vmatpush2.msra.mxu0 0.0
        %807 = vmatprep.subr.mxu0 0.0
        %808 = vmatpush2.msra.mxu0 0.0
        %809 = vmatprep.subr.mxu0 0.0
        %810 = vmatpush2.msra.mxu0 0.0
        %811 = vmatprep.subr.mxu0 0.0
        %812 = vmatpush2.msra.mxu0 0.0
        %813 = vmatprep.subr.mxu0 0.0
        %814 = vmatpush2.msra.mxu0 0.0
        %815 = vmatprep.subr.mxu0 0.0
        %816 = vmatpush2.msra.mxu0 0.0
        %817 = vmatprep.subr.mxu0 0.0
        %818 = vmatpush2.msra.mxu0 0.0
        %819 = vmatprep.subr.mxu0 0.0
        %820 = vmatpush2.msra.mxu0 0.0
        %821 = vmatprep.subr.mxu0 0.0
        %822 = vmatpush2.msra.mxu0 0.0
        %823 = vmatprep.subr.mxu0 0.0
        %824 = vmatpush2.msra.mxu0 0.0
        %825 = vmatprep.mubr.f32.mxu0 0.0
        %826 = vmatmul.mubr.f32.gmra.mxu0 %v756
        %v827 = vpop.f32.mrf.mxu0
        %v828 = vadd.f32 %v753, %v827
        %v829 = vpop.f32.mrf.mxu0
        %830 = vmatprep.mubr.f32.mxu0 0.0
        %831 = vmatmul.mubr.f32.gmra.mxu0 %v759
        %v832 = vpop.f32.mrf.mxu0
        %v833 = vadd.f32 %v753, %v832
        %v834 = vpop.f32.mrf.mxu0
        %835 = vdwg.mxu0
        %v836 = vmul.f32 %v828, 0.35355338
        %v837 = vmul.f32 %v833, 0.35355338
        %v838 = vlaneseq
        %v839 = vshrl.u32 %v838, 7
        %v840 = vlaneseq
        %v841 = vand.u32 %v840, 127
        %vm842 = vcmp.gt.s32.totalorder %v841, %v839
        %v843 = vsel %vm842, -1e+09, 0.0
        %845 = vrot.lane.b32.xlu0 %v828, 96
        %v846 = vpop.permute.xlu0 %845
        %vm847 = vcmask 64512
        %v849 = vsel %vm847, %v836, 0
        %v851 = vsel %vm847, %v846, 0
        %853 = vmatprep.subr.mxu0 0.0
        %854 = vmatpush1.xpose.msra.mxu0 0.0
        %855 = vmatprep.subr.mxu0 0.0
        %856 = vmatpush1.xpose.msra.mxu0 0.0
        %857 = vmatprep.subr.mxu0 0.0
        %858 = vmatpush1.xpose.msra.mxu0 0.0
        %859 = vmatprep.subr.mxu0 0.0
        %860 = vmatpush1.xpose.msra.mxu0 0.0
        %861 = vmatprep.subr.mxu0 0.0
        %862 = vmatpush1.xpose.msra.mxu0 0.0
        %863 = vmatprep.subr.mxu0 0.0
        %864 = vmatpush1.xpose.msra.mxu0 0.0
        %865 = vmatprep.subr.mxu0 0.0
        %866 = vmatpush1.xpose.msra.mxu0 0.0
        %867 = vmatprep.subr.mxu0 0.0
        %868 = vmatpush1.xpose.msra.mxu0 0.0
        %869 = vmatprep.subr.mxu0 0.0
        %870 = vmatpush1.xpose.msra.mxu0 0.0
        %871 = vmatprep.subr.mxu0 0.0
        %872 = vmatpush1.xpose.msra.mxu0 0.0
        %873 = vmatprep.subr.mxu0 0.0
        %874 = vmatpush1.xpose.msra.mxu0 0.0
        %875 = vmatprep.subr.mxu0 0.0
        %876 = vmatpush1.xpose.msra.mxu0 0.0
        %877 = vmatprep.subr.mxu0 0.0
        %878 = vmatpush1.xpose.msra.mxu0 0.0
        %879 = vmatprep.subr.mxu0 0.0
        %880 = vmatpush1.xpose.msra.mxu0 0.0
        %881 = vmatprep.subr.mxu0 0.0
        %882 = vmatpush1.xpose.msra.mxu0 0.0
        %883 = vmatprep.subr.mxu0 0.0
        %884 = vmatpush1.xpose.msra.mxu0 %v851
        %885 = vmatprep.subr.mxu0 0.0
        %886 = vmatpush2.xpose.msra.mxu0 0.0
        %887 = vmatprep.subr.mxu0 0.0
        %888 = vmatpush2.xpose.msra.mxu0 0.0
        %889 = vmatprep.subr.mxu0 0.0
        %890 = vmatpush2.xpose.msra.mxu0 0.0
        %891 = vmatprep.subr.mxu0 0.0
        %892 = vmatpush2.xpose.msra.mxu0 0.0
        %893 = vmatprep.subr.mxu0 0.0
        %894 = vmatpush2.xpose.msra.mxu0 0.0
        %895 = vmatprep.subr.mxu0 0.0
        %896 = vmatpush2.xpose.msra.mxu0 0.0
        %897 = vmatprep.subr.mxu0 0.0
        %898 = vmatpush2.xpose.msra.mxu0 0.0
        %899 = vmatprep.subr.mxu0 0.0
        %900 = vmatpush2.xpose.msra.mxu0 0.0
        %901 = vmatprep.subr.mxu0 0.0
        %902 = vmatpush2.xpose.msra.mxu0 0.0
        %903 = vmatprep.subr.mxu0 0.0
        %904 = vmatpush2.xpose.msra.mxu0 0.0
        %905 = vmatprep.subr.mxu0 0.0
        %906 = vmatpush2.xpose.msra.mxu0 0.0
        %907 = vmatprep.subr.mxu0 0.0
        %908 = vmatpush2.xpose.msra.mxu0 0.0
        %909 = vmatprep.subr.mxu0 0.0
        %910 = vmatpush2.xpose.msra.mxu0 0.0
        %911 = vmatprep.subr.mxu0 0.0
        %912 = vmatpush2.xpose.msra.mxu0 0.0
        %913 = vmatprep.subr.mxu0 0.0
        %914 = vmatpush2.xpose.msra.mxu0 0.0
        %915 = vmatprep.subr.mxu0 0.0
        %916 = vmatpush2.xpose.msra.mxu0 0.0
        %917 = vmatprep.mubr.f32.mxu0 0.0
        %918 = vmatmul.mubr.f32.gmra.mxu0 %v849
        %v919 = vpop.f32.mrf.mxu0
        %v920 = vadd.f32 %v843, %v919
        %v921 = vpop.f32.mrf.mxu0
        %922 = vdwg.mxu0
        %924 = vrot.lane.b32.xlu0 %v833, 96
        %v925 = vpop.permute.xlu0 %924
        %v927 = vsel %vm847, %v837, 0
        %v929 = vsel %vm847, %v925, 0
        %931 = vmatprep.subr.mxu0 0.0
        %932 = vmatpush1.xpose.msra.mxu0 0.0
        %933 = vmatprep.subr.mxu0 0.0
        %934 = vmatpush1.xpose.msra.mxu0 0.0
        %935 = vmatprep.subr.mxu0 0.0
        %936 = vmatpush1.xpose.msra.mxu0 0.0
        %937 = vmatprep.subr.mxu0 0.0
        %938 = vmatpush1.xpose.msra.mxu0 0.0
        %939 = vmatprep.subr.mxu0 0.0
        %940 = vmatpush1.xpose.msra.mxu0 0.0
        %941 = vmatprep.subr.mxu0 0.0
        %942 = vmatpush1.xpose.msra.mxu0 0.0
        %943 = vmatprep.subr.mxu0 0.0
        %944 = vmatpush1.xpose.msra.mxu0 0.0
        %945 = vmatprep.subr.mxu0 0.0
        %946 = vmatpush1.xpose.msra.mxu0 0.0
        %947 = vmatprep.subr.mxu0 0.0
        %948 = vmatpush1.xpose.msra.mxu0 0.0
        %949 = vmatprep.subr.mxu0 0.0
        %950 = vmatpush1.xpose.msra.mxu0 0.0
        %951 = vmatprep.subr.mxu0 0.0
        %952 = vmatpush1.xpose.msra.mxu0 0.0
        %953 = vmatprep.subr.mxu0 0.0
        %954 = vmatpush1.xpose.msra.mxu0 0.0
        %955 = vmatprep.subr.mxu0 0.0
        %956 = vmatpush1.xpose.msra.mxu0 0.0
        %957 = vmatprep.subr.mxu0 0.0
        %958 = vmatpush1.xpose.msra.mxu0 0.0
        %959 = vmatprep.subr.mxu0 0.0
        %960 = vmatpush1.xpose.msra.mxu0 0.0
        %961 = vmatprep.subr.mxu0 0.0
        %962 = vmatpush1.xpose.msra.mxu0 %v929
        %963 = vmatprep.subr.mxu0 0.0
        %964 = vmatpush2.xpose.msra.mxu0 0.0
        %965 = vmatprep.subr.mxu0 0.0
        %966 = vmatpush2.xpose.msra.mxu0 0.0
        %967 = vmatprep.subr.mxu0 0.0
        %968 = vmatpush2.xpose.msra.mxu0 0.0
        %969 = vmatprep.subr.mxu0 0.0
        %970 = vmatpush2.xpose.msra.mxu0 0.0
        %971 = vmatprep.subr.mxu0 0.0
        %972 = vmatpush2.xpose.msra.mxu0 0.0
        %973 = vmatprep.subr.mxu0 0.0
        %974 = vmatpush2.xpose.msra.mxu0 0.0
        %975 = vmatprep.subr.mxu0 0.0
        %976 = vmatpush2.xpose.msra.mxu0 0.0
        %977 = vmatprep.subr.mxu0 0.0
        %978 = vmatpush2.xpose.msra.mxu0 0.0
        %979 = vmatprep.subr.mxu0 0.0
        %980 = vmatpush2.xpose.msra.mxu0 0.0
        %981 = vmatprep.subr.mxu0 0.0
        %982 = vmatpush2.xpose.msra.mxu0 0.0
        %983 = vmatprep.subr.mxu0 0.0
        %984 = vmatpush2.xpose.msra.mxu0 0.0
        %985 = vmatprep.subr.mxu0 0.0
        %986 = vmatpush2.xpose.msra.mxu0 0.0
        %987 = vmatprep.subr.mxu0 0.0
        %988 = vmatpush2.xpose.msra.mxu0 0.0
        %989 = vmatprep.subr.mxu0 0.0
        %990 = vmatpush2.xpose.msra.mxu0 0.0
        %991 = vmatprep.subr.mxu0 0.0
        %992 = vmatpush2.xpose.msra.mxu0 0.0
        %993 = vmatprep.subr.mxu0 0.0
        %994 = vmatpush2.xpose.msra.mxu0 0.0
        %995 = vmatprep.mubr.f32.mxu0 0.0
        %996 = vmatmul.mubr.f32.gmra.mxu0 %v927
        %v997 = vpop.f32.mrf.mxu0
        %v998 = vadd.f32 %v843, %v997
        %v999 = vpop.f32.mrf.mxu0
        %1000 = vdwg.mxu0
        %v1001 = vsel %vm847, %v920, -inf
        %1002 = vmax.xlane.f32.xlu0 %v1001
        %v1003 = vpop.xlane.xlu0 %1002
        %v1004 = vsel %vm847, %v998, -inf
        %1005 = vmax.xlane.f32.xlu0 %v1004
        %v1006 = vpop.xlane.xlu0 %1005
        %v1007 = vsub.f32 %v920, %v1003
        %v1008 = vsub.f32 %v998, %v1006
        %v1009 = vmul.f32 %v1007, 1.442695
        %v1010 = vpow.pop %v1009
        %v1011 = vmul.f32 %v1008, 1.442695
        %v1012 = vpow.pop %v1011
        %v1013 = vsel %vm847, %v1010, 0.0
        %1014 = vadd.xlane.f32.xlu0 %v1013
        %v1015 = vpop.xlane.xlu0 %1014
        %v1016 = vsel %vm847, %v1012, 0.0
        %1017 = vadd.xlane.f32.xlu0 %v1016
        %v1018 = vpop.xlane.xlu0 %1017
        %v1019 = vrcp.pop %v1015
        %v1020 = vmul.f32 %v1010, %v1019
        %v1021 = vrcp.pop %v1018
        %v1022 = vmul.f32 %v1012, %v1021
        %1023 = vrot.lane.b32.xlu0 %v828, 64
        %v1024 = vpop.permute.xlu0 %1023
        %v1027 = vsel %vm847, %v1020, 0
        %1029 = vmatprep.subr.mxu0 0.0
        %1030 = vmatpush1.msra.mxu0 0.0
        %1031 = vmatprep.subr.mxu0 0.0
        %1032 = vmatpush1.msra.mxu0 0.0
        %1033 = vmatprep.subr.mxu0 0.0
        %1034 = vmatpush1.msra.mxu0 0.0
        %1035 = vmatprep.subr.mxu0 0.0
        %1036 = vmatpush1.msra.mxu0 0.0
        %1037 = vmatprep.subr.mxu0 0.0
        %1038 = vmatpush1.msra.mxu0 0.0
        %1039 = vmatprep.subr.mxu0 0.0
        %1040 = vmatpush1.msra.mxu0 0.0
        %1041 = vmatprep.subr.mxu0 0.0
        %1042 = vmatpush1.msra.mxu0 0.0
        %1043 = vmatprep.subr.mxu0 0.0
        %1044 = vmatpush1.msra.mxu0 0.0
        %1045 = vmatprep.subr.mxu0 0.0
        %1046 = vmatpush1.msra.mxu0 0.0
        %1047 = vmatprep.subr.mxu0 0.0
        %1048 = vmatpush1.msra.mxu0 0.0
        %1049 = vmatprep.subr.mxu0 0.0
        %1050 = vmatpush1.msra.mxu0 0.0
        %1051 = vmatprep.subr.mxu0 0.0
        %1052 = vmatpush1.msra.mxu0 0.0
        %1053 = vmatprep.subr.mxu0 0.0
        %1054 = vmatpush1.msra.mxu0 0.0
        %1055 = vmatprep.subr.mxu0 0.0
        %1056 = vmatpush1.msra.mxu0 0.0
        %1057 = vmatprep.subr.mxu0 0.0
        %1058 = vmatpush1.msra.mxu0 0.0
        %1059 = vmatprep.subr.mxu0 0.0
        %1060 = vmatpush1.msra.mxu0 %v1024
        %1061 = vmatprep.subr.mxu0 0.0
        %1062 = vmatpush2.msra.mxu0 0.0
        %1063 = vmatprep.subr.mxu0 0.0
        %1064 = vmatpush2.msra.mxu0 0.0
        %1065 = vmatprep.subr.mxu0 0.0
        %1066 = vmatpush2.msra.mxu0 0.0
        %1067 = vmatprep.subr.mxu0 0.0
        %1068 = vmatpush2.msra.mxu0 0.0
        %1069 = vmatprep.subr.mxu0 0.0
        %1070 = vmatpush2.msra.mxu0 0.0
        %1071 = vmatprep.subr.mxu0 0.0
        %1072 = vmatpush2.msra.mxu0 0.0
        %1073 = vmatprep.subr.mxu0 0.0
        %1074 = vmatpush2.msra.mxu0 0.0
        %1075 = vmatprep.subr.mxu0 0.0
        %1076 = vmatpush2.msra.mxu0 0.0
        %1077 = vmatprep.subr.mxu0 0.0
        %1078 = vmatpush2.msra.mxu0 0.0
        %1079 = vmatprep.subr.mxu0 0.0
        %1080 = vmatpush2.msra.mxu0 0.0
        %1081 = vmatprep.subr.mxu0 0.0
        %1082 = vmatpush2.msra.mxu0 0.0
        %1083 = vmatprep.subr.mxu0 0.0
        %1084 = vmatpush2.msra.mxu0 0.0
        %1085 = vmatprep.subr.mxu0 0.0
        %1086 = vmatpush2.msra.mxu0 0.0
        %1087 = vmatprep.subr.mxu0 0.0
        %1088 = vmatpush2.msra.mxu0 0.0
        %1089 = vmatprep.subr.mxu0 0.0
        %1090 = vmatpush2.msra.mxu0 0.0
        %1091 = vmatprep.subr.mxu0 0.0
        %1092 = vmatpush2.msra.mxu0 0.0
        %1093 = vmatprep.mubr.f32.mxu0 0.0
        %1094 = vmatmul.mubr.f32.gmra.mxu0 %v1027
        %v1095 = vpop.f32.mrf.mxu0
        %v1096 = vadd.f32 0.0, %v1095
        %v1097 = vpop.f32.mrf.mxu0
        %1098 = vdwg.mxu0
        %1099 = vrot.lane.b32.xlu0 %v833, 64
        %v1100 = vpop.permute.xlu0 %1099
        %v1103 = vsel %vm847, %v1022, 0
        %1105 = vmatprep.subr.mxu0 0.0
        %1106 = vmatpush1.msra.mxu0 0.0
        %1107 = vmatprep.subr.mxu0 0.0
        %1108 = vmatpush1.msra.mxu0 0.0
        %1109 = vmatprep.subr.mxu0 0.0
        %1110 = vmatpush1.msra.mxu0 0.0
        %1111 = vmatprep.subr.mxu0 0.0
        %1112 = vmatpush1.msra.mxu0 0.0
        %1113 = vmatprep.subr.mxu0 0.0
        %1114 = vmatpush1.msra.mxu0 0.0
        %1115 = vmatprep.subr.mxu0 0.0
        %1116 = vmatpush1.msra.mxu0 0.0
        %1117 = vmatprep.subr.mxu0 0.0
        %1118 = vmatpush1.msra.mxu0 0.0
        %1119 = vmatprep.subr.mxu0 0.0
        %1120 = vmatpush1.msra.mxu0 0.0
        %1121 = vmatprep.subr.mxu0 0.0
        %1122 = vmatpush1.msra.mxu0 0.0
        %1123 = vmatprep.subr.mxu0 0.0
        %1124 = vmatpush1.msra.mxu0 0.0
        %1125 = vmatprep.subr.mxu0 0.0
        %1126 = vmatpush1.msra.mxu0 0.0
        %1127 = vmatprep.subr.mxu0 0.0
        %1128 = vmatpush1.msra.mxu0 0.0
        %1129 = vmatprep.subr.mxu0 0.0
        %1130 = vmatpush1.msra.mxu0 0.0
        %1131 = vmatprep.subr.mxu0 0.0
        %1132 = vmatpush1.msra.mxu0 0.0
        %1133 = vmatprep.subr.mxu0 0.0
        %1134 = vmatpush1.msra.mxu0 0.0
        %1135 = vmatprep.subr.mxu0 0.0
        %1136 = vmatpush1.msra.mxu0 %v1100
        %1137 = vmatprep.subr.mxu0 0.0
        %1138 = vmatpush2.msra.mxu0 0.0
        %1139 = vmatprep.subr.mxu0 0.0
        %1140 = vmatpush2.msra.mxu0 0.0
        %1141 = vmatprep.subr.mxu0 0.0
        %1142 = vmatpush2.msra.mxu0 0.0
        %1143 = vmatprep.subr.mxu0 0.0
        %1144 = vmatpush2.msra.mxu0 0.0
        %1145 = vmatprep.subr.mxu0 0.0
        %1146 = vmatpush2.msra.mxu0 0.0
        %1147 = vmatprep.subr.mxu0 0.0
        %1148 = vmatpush2.msra.mxu0 0.0
        %1149 = vmatprep.subr.mxu0 0.0
        %1150 = vmatpush2.msra.mxu0 0.0
        %1151 = vmatprep.subr.mxu0 0.0
        %1152 = vmatpush2.msra.mxu0 0.0
        %1153 = vmatprep.subr.mxu0 0.0
        %1154 = vmatpush2.msra.mxu0 0.0
        %1155 = vmatprep.subr.mxu0 0.0
        %1156 = vmatpush2.msra.mxu0 0.0
        %1157 = vmatprep.subr.mxu0 0.0
        %1158 = vmatpush2.msra.mxu0 0.0
        %1159 = vmatprep.subr.mxu0 0.0
        %1160 = vmatpush2.msra.mxu0 0.0
        %1161 = vmatprep.subr.mxu0 0.0
        %1162 = vmatpush2.msra.mxu0 0.0
        %1163 = vmatprep.subr.mxu0 0.0
        %1164 = vmatpush2.msra.mxu0 0.0
        %1165 = vmatprep.subr.mxu0 0.0
        %1166 = vmatpush2.msra.mxu0 0.0
        %1167 = vmatprep.subr.mxu0 0.0
        %1168 = vmatpush2.msra.mxu0 0.0
        %1169 = vmatprep.mubr.f32.mxu0 0.0
        %1170 = vmatmul.mubr.f32.gmra.mxu0 %v1103
        %v1171 = vpop.f32.mrf.mxu0
        %v1172 = vadd.f32 0.0, %v1171
        %v1173 = vpop.f32.mrf.mxu0
        %1174 = vdwg.mxu0
        %v1175 = vld [vmem:[%s661] sm:$0xff]
        %1176 = vrot.lane.b32.xlu0 %v836, 120
        %v1177 = vpop.permute.xlu0 %1176
        %1178 = vrot.lane.b32.xlu0 %v828, 88
        %v1179 = vpop.permute.xlu0 %1178
        %v1180 = vsel %vm847, %v1177, 0
        %v1182 = vsel %vm847, %v1179, 0
        %1184 = vmatprep.subr.mxu0 0.0
        %1185 = vmatpush1.xpose.msra.mxu0 0.0
        %1186 = vmatprep.subr.mxu0 0.0
        %1187 = vmatpush1.xpose.msra.mxu0 0.0
        %1188 = vmatprep.subr.mxu0 0.0
        %1189 = vmatpush1.xpose.msra.mxu0 0.0
        %1190 = vmatprep.subr.mxu0 0.0
        %1191 = vmatpush1.xpose.msra.mxu0 0.0
        %1192 = vmatprep.subr.mxu0 0.0
        %1193 = vmatpush1.xpose.msra.mxu0 0.0
        %1194 = vmatprep.subr.mxu0 0.0
        %1195 = vmatpush1.xpose.msra.mxu0 0.0
        %1196 = vmatprep.subr.mxu0 0.0
        %1197 = vmatpush1.xpose.msra.mxu0 0.0
        %1198 = vmatprep.subr.mxu0 0.0
        %1199 = vmatpush1.xpose.msra.mxu0 0.0
        %1200 = vmatprep.subr.mxu0 0.0
        %1201 = vmatpush1.xpose.msra.mxu0 0.0
        %1202 = vmatprep.subr.mxu0 0.0
        %1203 = vmatpush1.xpose.msra.mxu0 0.0
        %1204 = vmatprep.subr.mxu0 0.0
        %1205 = vmatpush1.xpose.msra.mxu0 0.0
        %1206 = vmatprep.subr.mxu0 0.0
        %1207 = vmatpush1.xpose.msra.mxu0 0.0
        %1208 = vmatprep.subr.mxu0 0.0
        %1209 = vmatpush1.xpose.msra.mxu0 0.0
        %1210 = vmatprep.subr.mxu0 0.0
        %1211 = vmatpush1.xpose.msra.mxu0 0.0
        %1212 = vmatprep.subr.mxu0 0.0
        %1213 = vmatpush1.xpose.msra.mxu0 0.0
        %1214 = vmatprep.subr.mxu0 0.0
        %1215 = vmatpush1.xpose.msra.mxu0 %v1182
        %1216 = vmatprep.subr.mxu0 0.0
        %1217 = vmatpush2.xpose.msra.mxu0 0.0
        %1218 = vmatprep.subr.mxu0 0.0
        %1219 = vmatpush2.xpose.msra.mxu0 0.0
        %1220 = vmatprep.subr.mxu0 0.0
        %1221 = vmatpush2.xpose.msra.mxu0 0.0
        %1222 = vmatprep.subr.mxu0 0.0
        %1223 = vmatpush2.xpose.msra.mxu0 0.0
        %1224 = vmatprep.subr.mxu0 0.0
        %1225 = vmatpush2.xpose.msra.mxu0 0.0
        %1226 = vmatprep.subr.mxu0 0.0
        %1227 = vmatpush2.xpose.msra.mxu0 0.0
        %1228 = vmatprep.subr.mxu0 0.0
        %1229 = vmatpush2.xpose.msra.mxu0 0.0
        %1230 = vmatprep.subr.mxu0 0.0
        %1231 = vmatpush2.xpose.msra.mxu0 0.0
        %1232 = vmatprep.subr.mxu0 0.0
        %1233 = vmatpush2.xpose.msra.mxu0 0.0
        %1234 = vmatprep.subr.mxu0 0.0
        %1235 = vmatpush2.xpose.msra.mxu0 0.0
        %1236 = vmatprep.subr.mxu0 0.0
        %1237 = vmatpush2.xpose.msra.mxu0 0.0
        %1238 = vmatprep.subr.mxu0 0.0
        %1239 = vmatpush2.xpose.msra.mxu0 0.0
        %1240 = vmatprep.subr.mxu0 0.0
        %1241 = vmatpush2.xpose.msra.mxu0 0.0
        %1242 = vmatprep.subr.mxu0 0.0
        %1243 = vmatpush2.xpose.msra.mxu0 0.0
        %1244 = vmatprep.subr.mxu0 0.0
        %1245 = vmatpush2.xpose.msra.mxu0 0.0
        %1246 = vmatprep.subr.mxu0 0.0
        %1247 = vmatpush2.xpose.msra.mxu0 0.0
        %1248 = vmatprep.mubr.f32.mxu0 0.0
        %1249 = vmatmul.mubr.f32.gmra.mxu0 %v1180
        %v1250 = vpop.f32.mrf.mxu0
        %v1251 = vadd.f32 %v843, %v1250
        %v1252 = vpop.f32.mrf.mxu0
        %1253 = vdwg.mxu0
        %1254 = vrot.lane.b32.xlu0 %v837, 120
        %v1255 = vpop.permute.xlu0 %1254
        %1256 = vrot.lane.b32.xlu0 %v833, 88
        %v1257 = vpop.permute.xlu0 %1256
        %v1258 = vsel %vm847, %v1255, 0
        %v1260 = vsel %vm847, %v1257, 0
        %1262 = vmatprep.subr.mxu0 0.0
        %1263 = vmatpush1.xpose.msra.mxu0 0.0
        %1264 = vmatprep.subr.mxu0 0.0
        %1265 = vmatpush1.xpose.msra.mxu0 0.0
        %1266 = vmatprep.subr.mxu0 0.0
        %1267 = vmatpush1.xpose.msra.mxu0 0.0
        %1268 = vmatprep.subr.mxu0 0.0
        %1269 = vmatpush1.xpose.msra.mxu0 0.0
        %1270 = vmatprep.subr.mxu0 0.0
        %1271 = vmatpush1.xpose.msra.mxu0 0.0
        %1272 = vmatprep.subr.mxu0 0.0
        %1273 = vmatpush1.xpose.msra.mxu0 0.0
        %1274 = vmatprep.subr.mxu0 0.0
        %1275 = vmatpush1.xpose.msra.mxu0 0.0
        %1276 = vmatprep.subr.mxu0 0.0
        %1277 = vmatpush1.xpose.msra.mxu0 0.0
        %1278 = vmatprep.subr.mxu0 0.0
        %1279 = vmatpush1.xpose.msra.mxu0 0.0
        %1280 = vmatprep.subr.mxu0 0.0
        %1281 = vmatpush1.xpose.msra.mxu0 0.0
        %1282 = vmatprep.subr.mxu0 0.0
        %1283 = vmatpush1.xpose.msra.mxu0 0.0
        %1284 = vmatprep.subr.mxu0 0.0
        %1285 = vmatpush1.xpose.msra.mxu0 0.0
        %1286 = vmatprep.subr.mxu0 0.0
        %1287 = vmatpush1.xpose.msra.mxu0 0.0
        %1288 = vmatprep.subr.mxu0 0.0
        %1289 = vmatpush1.xpose.msra.mxu0 0.0
        %1290 = vmatprep.subr.mxu0 0.0
        %1291 = vmatpush1.xpose.msra.mxu0 0.0
        %1292 = vmatprep.subr.mxu0 0.0
        %1293 = vmatpush1.xpose.msra.mxu0 %v1260
        %1294 = vmatprep.subr.mxu0 0.0
        %1295 = vmatpush2.xpose.msra.mxu0 0.0
        %1296 = vmatprep.subr.mxu0 0.0
        %1297 = vmatpush2.xpose.msra.mxu0 0.0
        %1298 = vmatprep.subr.mxu0 0.0
        %1299 = vmatpush2.xpose.msra.mxu0 0.0
        %1300 = vmatprep.subr.mxu0 0.0
        %1301 = vmatpush2.xpose.msra.mxu0 0.0
        %1302 = vmatprep.subr.mxu0 0.0
        %1303 = vmatpush2.xpose.msra.mxu0 0.0
        %1304 = vmatprep.subr.mxu0 0.0
        %1305 = vmatpush2.xpose.msra.mxu0 0.0
        %1306 = vmatprep.subr.mxu0 0.0
        %1307 = vmatpush2.xpose.msra.mxu0 0.0
        %1308 = vmatprep.subr.mxu0 0.0
        %1309 = vmatpush2.xpose.msra.mxu0 0.0
        %1310 = vmatprep.subr.mxu0 0.0
        %1311 = vmatpush2.xpose.msra.mxu0 0.0
        %1312 = vmatprep.subr.mxu0 0.0
        %1313 = vmatpush2.xpose.msra.mxu0 0.0
        %1314 = vmatprep.subr.mxu0 0.0
        %1315 = vmatpush2.xpose.msra.mxu0 0.0
        %1316 = vmatprep.subr.mxu0 0.0
        %1317 = vmatpush2.xpose.msra.mxu0 0.0
        %1318 = vmatprep.subr.mxu0 0.0
        %1319 = vmatpush2.xpose.msra.mxu0 0.0
        %1320 = vmatprep.subr.mxu0 0.0
        %1321 = vmatpush2.xpose.msra.mxu0 0.0
        %1322 = vmatprep.subr.mxu0 0.0
        %1323 = vmatpush2.xpose.msra.mxu0 0.0
        %1324 = vmatprep.subr.mxu0 0.0
        %1325 = vmatpush2.xpose.msra.mxu0 0.0
        %1326 = vmatprep.mubr.f32.mxu0 0.0
        %1327 = vmatmul.mubr.f32.gmra.mxu0 %v1258
        %v1328 = vpop.f32.mrf.mxu0
        %v1329 = vadd.f32 %v843, %v1328
        %v1330 = vpop.f32.mrf.mxu0
        %1331 = vdwg.mxu0
        %v1332 = vsel %vm847, %v1251, -inf
        %1333 = vmax.xlane.f32.xlu0 %v1332
        %v1334 = vpop.xlane.xlu0 %1333
        %v1335 = vsel %vm847, %v1329, -inf
        %1336 = vmax.xlane.f32.xlu0 %v1335
        %v1337 = vpop.xlane.xlu0 %1336
        %v1338 = vsub.f32 %v1251, %v1334
        %v1339 = vsub.f32 %v1329, %v1337
        %v1340 = vmul.f32 %v1338, 1.442695
        %v1341 = vpow.pop %v1340
        %v1342 = vmul.f32 %v1339, 1.442695
        %v1343 = vpow.pop %v1342
        %v1344 = vsel %vm847, %v1341, 0.0
        %1345 = vadd.xlane.f32.xlu0 %v1344
        %v1346 = vpop.xlane.xlu0 %1345
        %v1347 = vsel %vm847, %v1343, 0.0
        %1348 = vadd.xlane.f32.xlu0 %v1347
        %v1349 = vpop.xlane.xlu0 %1348
        %v1350 = vrcp.pop %v1346
        %v1351 = vmul.f32 %v1341, %v1350
        %v1352 = vrcp.pop %v1349
        %v1353 = vmul.f32 %v1343, %v1352
        %1354 = vrot.lane.b32.xlu0 %v828, 56
        %v1355 = vpop.permute.xlu0 %1354
        %v1358 = vsel %vm847, %v1351, 0
        %1360 = vmatprep.subr.mxu0 0.0
        %1361 = vmatpush1.msra.mxu0 0.0
        %1362 = vmatprep.subr.mxu0 0.0
        %1363 = vmatpush1.msra.mxu0 0.0
        %1364 = vmatprep.subr.mxu0 0.0
        %1365 = vmatpush1.msra.mxu0 0.0
        %1366 = vmatprep.subr.mxu0 0.0
        %1367 = vmatpush1.msra.mxu0 0.0
        %1368 = vmatprep.subr.mxu0 0.0
        %1369 = vmatpush1.msra.mxu0 0.0
        %1370 = vmatprep.subr.mxu0 0.0
        %1371 = vmatpush1.msra.mxu0 0.0
        %1372 = vmatprep.subr.mxu0 0.0
        %1373 = vmatpush1.msra.mxu0 0.0
        %1374 = vmatprep.subr.mxu0 0.0
        %1375 = vmatpush1.msra.mxu0 0.0
        %1376 = vmatprep.subr.mxu0 0.0
        %1377 = vmatpush1.msra.mxu0 0.0
        %1378 = vmatprep.subr.mxu0 0.0
        %1379 = vmatpush1.msra.mxu0 0.0
        %1380 = vmatprep.subr.mxu0 0.0
        %1381 = vmatpush1.msra.mxu0 0.0
        %1382 = vmatprep.subr.mxu0 0.0
        %1383 = vmatpush1.msra.mxu0 0.0
        %1384 = vmatprep.subr.mxu0 0.0
        %1385 = vmatpush1.msra.mxu0 0.0
        %1386 = vmatprep.subr.mxu0 0.0
        %1387 = vmatpush1.msra.mxu0 0.0
        %1388 = vmatprep.subr.mxu0 0.0
        %1389 = vmatpush1.msra.mxu0 0.0
        %1390 = vmatprep.subr.mxu0 0.0
        %1391 = vmatpush1.msra.mxu0 %v1355
        %1392 = vmatprep.subr.mxu0 0.0
        %1393 = vmatpush2.msra.mxu0 0.0
        %1394 = vmatprep.subr.mxu0 0.0
        %1395 = vmatpush2.msra.mxu0 0.0
        %1396 = vmatprep.subr.mxu0 0.0
        %1397 = vmatpush2.msra.mxu0 0.0
        %1398 = vmatprep.subr.mxu0 0.0
        %1399 = vmatpush2.msra.mxu0 0.0
        %1400 = vmatprep.subr.mxu0 0.0
        %1401 = vmatpush2.msra.mxu0 0.0
        %1402 = vmatprep.subr.mxu0 0.0
        %1403 = vmatpush2.msra.mxu0 0.0
        %1404 = vmatprep.subr.mxu0 0.0
        %1405 = vmatpush2.msra.mxu0 0.0
        %1406 = vmatprep.subr.mxu0 0.0
        %1407 = vmatpush2.msra.mxu0 0.0
        %1408 = vmatprep.subr.mxu0 0.0
        %1409 = vmatpush2.msra.mxu0 0.0
        %1410 = vmatprep.subr.mxu0 0.0
        %1411 = vmatpush2.msra.mxu0 0.0
        %1412 = vmatprep.subr.mxu0 0.0
        %1413 = vmatpush2.msra.mxu0 0.0
        %1414 = vmatprep.subr.mxu0 0.0
        %1415 = vmatpush2.msra.mxu0 0.0
        %1416 = vmatprep.subr.mxu0 0.0
        %1417 = vmatpush2.msra.mxu0 0.0
        %1418 = vmatprep.subr.mxu0 0.0
        %1419 = vmatpush2.msra.mxu0 0.0
        %1420 = vmatprep.subr.mxu0 0.0
        %1421 = vmatpush2.msra.mxu0 0.0
        %1422 = vmatprep.subr.mxu0 0.0
        %1423 = vmatpush2.msra.mxu0 0.0
        %1424 = vmatprep.mubr.f32.mxu0 0.0
        %1425 = vmatmul.mubr.f32.gmra.mxu0 %v1358
        %v1426 = vpop.f32.mrf.mxu0
        %v1427 = vadd.f32 0.0, %v1426
        %v1428 = vpop.f32.mrf.mxu0
        %1429 = vdwg.mxu0
        %1430 = vrot.lane.b32.xlu0 %v833, 56
        %v1431 = vpop.permute.xlu0 %1430
        %v1434 = vsel %vm847, %v1353, 0
        %1436 = vmatprep.subr.mxu0 0.0
        %1437 = vmatpush1.msra.mxu0 0.0
        %1438 = vmatprep.subr.mxu0 0.0
        %1439 = vmatpush1.msra.mxu0 0.0
        %1440 = vmatprep.subr.mxu0 0.0
        %1441 = vmatpush1.msra.mxu0 0.0
        %1442 = vmatprep.subr.mxu0 0.0
        %1443 = vmatpush1.msra.mxu0 0.0
        %1444 = vmatprep.subr.mxu0 0.0
        %1445 = vmatpush1.msra.mxu0 0.0
        %1446 = vmatprep.subr.mxu0 0.0
        %1447 = vmatpush1.msra.mxu0 0.0
        %1448 = vmatprep.subr.mxu0 0.0
        %1449 = vmatpush1.msra.mxu0 0.0
        %1450 = vmatprep.subr.mxu0 0.0
        %1451 = vmatpush1.msra.mxu0 0.0
        %1452 = vmatprep.subr.mxu0 0.0
        %1453 = vmatpush1.msra.mxu0 0.0
        %1454 = vmatprep.subr.mxu0 0.0
        %1455 = vmatpush1.msra.mxu0 0.0
        %1456 = vmatprep.subr.mxu0 0.0
        %1457 = vmatpush1.msra.mxu0 0.0
        %1458 = vmatprep.subr.mxu0 0.0
        %1459 = vmatpush1.msra.mxu0 0.0
        %1460 = vmatprep.subr.mxu0 0.0
        %1461 = vmatpush1.msra.mxu0 0.0
        %1462 = vmatprep.subr.mxu0 0.0
        %1463 = vmatpush1.msra.mxu0 0.0
        %1464 = vmatprep.subr.mxu0 0.0
        %1465 = vmatpush1.msra.mxu0 0.0
        %1466 = vmatprep.subr.mxu0 0.0
        %1467 = vmatpush1.msra.mxu0 %v1431
        %1468 = vmatprep.subr.mxu0 0.0
        %1469 = vmatpush2.msra.mxu0 0.0
        %1470 = vmatprep.subr.mxu0 0.0
        %1471 = vmatpush2.msra.mxu0 0.0
        %1472 = vmatprep.subr.mxu0 0.0
        %1473 = vmatpush2.msra.mxu0 0.0
        %1474 = vmatprep.subr.mxu0 0.0
        %1475 = vmatpush2.msra.mxu0 0.0
        %1476 = vmatprep.subr.mxu0 0.0
        %1477 = vmatpush2.msra.mxu0 0.0
        %1478 = vmatprep.subr.mxu0 0.0
        %1479 = vmatpush2.msra.mxu0 0.0
        %1480 = vmatprep.subr.mxu0 0.0
        %1481 = vmatpush2.msra.mxu0 0.0
        %1482 = vmatprep.subr.mxu0 0.0
        %1483 = vmatpush2.msra.mxu0 0.0
        %1484 = vmatprep.subr.mxu0 0.0
        %1485 = vmatpush2.msra.mxu0 0.0
        %1486 = vmatprep.subr.mxu0 0.0
        %1487 = vmatpush2.msra.mxu0 0.0
        %1488 = vmatprep.subr.mxu0 0.0
        %1489 = vmatpush2.msra.mxu0 0.0
        %1490 = vmatprep.subr.mxu0 0.0
        %1491 = vmatpush2.msra.mxu0 0.0
        %1492 = vmatprep.subr.mxu0 0.0
        %1493 = vmatpush2.msra.mxu0 0.0
        %1494 = vmatprep.subr.mxu0 0.0
        %1495 = vmatpush2.msra.mxu0 0.0
        %1496 = vmatprep.subr.mxu0 0.0
        %1497 = vmatpush2.msra.mxu0 0.0
        %1498 = vmatprep.subr.mxu0 0.0
        %1499 = vmatpush2.msra.mxu0 0.0
        %1500 = vmatprep.mubr.f32.mxu0 0.0
        %1501 = vmatmul.mubr.f32.gmra.mxu0 %v1434
        %v1502 = vpop.f32.mrf.mxu0
        %v1503 = vadd.f32 0.0, %v1502
        %v1504 = vpop.f32.mrf.mxu0
        %1505 = vdwg.mxu0
        %v1506 = vld [vmem:[%s661 + $0x8] sm:$0xff]
        %v1508 = vsel %vm847, %v1427, 0
        %v1511 = vsel %vm847, %v1503, 0
        %1513 = vmatprep.subr.mxu0 0.0
        %1514 = vmatpush1.msra.mxu0 0.0
        %1515 = vmatprep.subr.mxu0 0.0
        %1516 = vmatpush1.msra.mxu0 0.0
        %1517 = vmatprep.subr.mxu0 0.0
        %1518 = vmatpush1.msra.mxu0 0.0
        %1519 = vmatprep.subr.mxu0 0.0
        %1520 = vmatpush1.msra.mxu0 0.0
        %1521 = vmatprep.subr.mxu0 0.0
        %1522 = vmatpush1.msra.mxu0 0.0
        %1523 = vmatprep.subr.mxu0 0.0
        %1524 = vmatpush1.msra.mxu0 0.0
        %1525 = vmatprep.subr.mxu0 0.0
        %1526 = vmatpush1.msra.mxu0 0.0
        %1527 = vmatprep.subr.mxu0 0.0
        %1528 = vmatpush1.msra.mxu0 0.0
        %1529 = vmatprep.subr.mxu0 0.0
        %1530 = vmatpush1.msra.mxu0 0.0
        %1531 = vmatprep.subr.mxu0 0.0
        %1532 = vmatpush1.msra.mxu0 0.0
        %1533 = vmatprep.subr.mxu0 0.0
        %1534 = vmatpush1.msra.mxu0 0.0
        %1535 = vmatprep.subr.mxu0 0.0
        %1536 = vmatpush1.msra.mxu0 0.0
        %1537 = vmatprep.subr.mxu0 0.0
        %1538 = vmatpush1.msra.mxu0 0.0
        %1539 = vmatprep.subr.mxu0 0.0
        %1540 = vmatpush1.msra.mxu0 0.0
        %1541 = vmatprep.subr.mxu0 0.0
        %1542 = vmatpush1.msra.mxu0 0.0
        %1543 = vmatprep.subr.mxu0 0.0
        %1544 = vmatpush1.msra.mxu0 %v1506
        %1545 = vmatprep.subr.mxu0 0.0
        %1546 = vmatpush2.msra.mxu0 0.0
        %1547 = vmatprep.subr.mxu0 0.0
        %1548 = vmatpush2.msra.mxu0 0.0
        %1549 = vmatprep.subr.mxu0 0.0
        %1550 = vmatpush2.msra.mxu0 0.0
        %1551 = vmatprep.subr.mxu0 0.0
        %1552 = vmatpush2.msra.mxu0 0.0
        %1553 = vmatprep.subr.mxu0 0.0
        %1554 = vmatpush2.msra.mxu0 0.0
        %1555 = vmatprep.subr.mxu0 0.0
        %1556 = vmatpush2.msra.mxu0 0.0
        %1557 = vmatprep.subr.mxu0 0.0
        %1558 = vmatpush2.msra.mxu0 0.0
        %1559 = vmatprep.subr.mxu0 0.0
        %1560 = vmatpush2.msra.mxu0 0.0
        %1561 = vmatprep.subr.mxu0 0.0
        %1562 = vmatpush2.msra.mxu0 0.0
        %1563 = vmatprep.subr.mxu0 0.0
        %1564 = vmatpush2.msra.mxu0 0.0
        %1565 = vmatprep.subr.mxu0 0.0
        %1566 = vmatpush2.msra.mxu0 0.0
        %1567 = vmatprep.subr.mxu0 0.0
        %1568 = vmatpush2.msra.mxu0 0.0
        %1569 = vmatprep.subr.mxu0 0.0
        %1570 = vmatpush2.msra.mxu0 0.0
        %1571 = vmatprep.subr.mxu0 0.0
        %1572 = vmatpush2.msra.mxu0 0.0
        %1573 = vmatprep.subr.mxu0 0.0
        %1574 = vmatpush2.msra.mxu0 0.0
        %1575 = vmatprep.subr.mxu0 0.0
        %1576 = vmatpush2.msra.mxu0 0.0
        %1577 = vmatprep.mubr.f32.mxu0 0.0
        %1578 = vmatmul.mubr.f32.gmra.mxu0 %v1508
        %v1579 = vpop.f32.mrf.mxu0
        %v1580 = vadd.f32 0.0, %v1579
        %v1581 = vpop.f32.mrf.mxu0
        %1582 = vmatprep.mubr.f32.mxu0 0.0
        %1583 = vmatmul.mubr.f32.gmra.mxu0 %v1511
        %v1584 = vpop.f32.mrf.mxu0
        %v1585 = vadd.f32 0.0, %v1584
        %v1586 = vpop.f32.mrf.mxu0
        %1587 = vdwg.mxu0
        %v1589 = vsel %vm847, %v1096, 0
        %v1592 = vsel %vm847, %v1172, 0
        %1594 = vmatprep.subr.mxu0 0.0
        %1595 = vmatpush1.msra.mxu0 0.0
        %1596 = vmatprep.subr.mxu0 0.0
        %1597 = vmatpush1.msra.mxu0 0.0
        %1598 = vmatprep.subr.mxu0 0.0
        %1599 = vmatpush1.msra.mxu0 0.0
        %1600 = vmatprep.subr.mxu0 0.0
        %1601 = vmatpush1.msra.mxu0 0.0
        %1602 = vmatprep.subr.mxu0 0.0
        %1603 = vmatpush1.msra.mxu0 0.0
        %1604 = vmatprep.subr.mxu0 0.0
        %1605 = vmatpush1.msra.mxu0 0.0
        %1606 = vmatprep.subr.mxu0 0.0
        %1607 = vmatpush1.msra.mxu0 0.0
        %1608 = vmatprep.subr.mxu0 0.0
        %1609 = vmatpush1.msra.mxu0 0.0
        %1610 = vmatprep.subr.mxu0 0.0
        %1611 = vmatpush1.msra.mxu0 0.0
        %1612 = vmatprep.subr.mxu0 0.0
        %1613 = vmatpush1.msra.mxu0 0.0
        %1614 = vmatprep.subr.mxu0 0.0
        %1615 = vmatpush1.msra.mxu0 0.0
        %1616 = vmatprep.subr.mxu0 0.0
        %1617 = vmatpush1.msra.mxu0 0.0
        %1618 = vmatprep.subr.mxu0 0.0
        %1619 = vmatpush1.msra.mxu0 0.0
        %1620 = vmatprep.subr.mxu0 0.0
        %1621 = vmatpush1.msra.mxu0 0.0
        %1622 = vmatprep.subr.mxu0 0.0
        %1623 = vmatpush1.msra.mxu0 0.0
        %1624 = vmatprep.subr.mxu0 0.0
        %1625 = vmatpush1.msra.mxu0 %v1175
        %1626 = vmatprep.subr.mxu0 0.0
        %1627 = vmatpush2.msra.mxu0 0.0
        %1628 = vmatprep.subr.mxu0 0.0
        %1629 = vmatpush2.msra.mxu0 0.0
        %1630 = vmatprep.subr.mxu0 0.0
        %1631 = vmatpush2.msra.mxu0 0.0
        %1632 = vmatprep.subr.mxu0 0.0
        %1633 = vmatpush2.msra.mxu0 0.0
        %1634 = vmatprep.subr.mxu0 0.0
        %1635 = vmatpush2.msra.mxu0 0.0
        %1636 = vmatprep.subr.mxu0 0.0
        %1637 = vmatpush2.msra.mxu0 0.0
        %1638 = vmatprep.subr.mxu0 0.0
        %1639 = vmatpush2.msra.mxu0 0.0
        %1640 = vmatprep.subr.mxu0 0.0
        %1641 = vmatpush2.msra.mxu0 0.0
        %1642 = vmatprep.subr.mxu0 0.0
        %1643 = vmatpush2.msra.mxu0 0.0
        %1644 = vmatprep.subr.mxu0 0.0
        %1645 = vmatpush2.msra.mxu0 0.0
        %1646 = vmatprep.subr.mxu0 0.0
        %1647 = vmatpush2.msra.mxu0 0.0
        %1648 = vmatprep.subr.mxu0 0.0
        %1649 = vmatpush2.msra.mxu0 0.0
        %1650 = vmatprep.subr.mxu0 0.0
        %1651 = vmatpush2.msra.mxu0 0.0
        %1652 = vmatprep.subr.mxu0 0.0
        %1653 = vmatpush2.msra.mxu0 0.0
        %1654 = vmatprep.subr.mxu0 0.0
        %1655 = vmatpush2.msra.mxu0 0.0
        %1656 = vmatprep.subr.mxu0 0.0
        %1657 = vmatpush2.msra.mxu0 0.0
        %1658 = vmatprep.mubr.f32.mxu0 0.0
        %1659 = vmatmul.mubr.f32.gmra.mxu0 %v1589
        %v1660 = vpop.f32.mrf.mxu0
        %v1661 = vadd.f32 %v1580, %v1660
        %v1662 = vpop.f32.mrf.mxu0
        %1663 = vmatprep.mubr.f32.mxu0 0.0
        %1664 = vmatmul.mubr.f32.gmra.mxu0 %v1592
        %v1665 = vpop.f32.mrf.mxu0
        %v1666 = vadd.f32 %v1585, %v1665
        %v1667 = vpop.f32.mrf.mxu0
        %1668 = vdwg.mxu0
        %1669 = vrot.lane.b32.xlu0 %v836, 112
        %v1670 = vpop.permute.xlu0 %1669
        %1671 = vrot.lane.b32.xlu0 %v828, 80
        %v1672 = vpop.permute.xlu0 %1671
        %v1673 = vsel %vm847, %v1670, 0
        %v1675 = vsel %vm847, %v1672, 0
        %1677 = vmatprep.subr.mxu0 0.0
        %1678 = vmatpush1.xpose.msra.mxu0 0.0
        %1679 = vmatprep.subr.mxu0 0.0
        %1680 = vmatpush1.xpose.msra.mxu0 0.0
        %1681 = vmatprep.subr.mxu0 0.0
        %1682 = vmatpush1.xpose.msra.mxu0 0.0
        %1683 = vmatprep.subr.mxu0 0.0
        %1684 = vmatpush1.xpose.msra.mxu0 0.0
        %1685 = vmatprep.subr.mxu0 0.0
        %1686 = vmatpush1.xpose.msra.mxu0 0.0
        %1687 = vmatprep.subr.mxu0 0.0
        %1688 = vmatpush1.xpose.msra.mxu0 0.0
        %1689 = vmatprep.subr.mxu0 0.0
        %1690 = vmatpush1.xpose.msra.mxu0 0.0
        %1691 = vmatprep.subr.mxu0 0.0
        %1692 = vmatpush1.xpose.msra.mxu0 0.0
        %1693 = vmatprep.subr.mxu0 0.0
        %1694 = vmatpush1.xpose.msra.mxu0 0.0
        %1695 = vmatprep.subr.mxu0 0.0
        %1696 = vmatpush1.xpose.msra.mxu0 0.0
        %1697 = vmatprep.subr.mxu0 0.0
        %1698 = vmatpush1.xpose.msra.mxu0 0.0
        %1699 = vmatprep.subr.mxu0 0.0
        %1700 = vmatpush1.xpose.msra.mxu0 0.0
        %1701 = vmatprep.subr.mxu0 0.0
        %1702 = vmatpush1.xpose.msra.mxu0 0.0
        %1703 = vmatprep.subr.mxu0 0.0
        %1704 = vmatpush1.xpose.msra.mxu0 0.0
        %1705 = vmatprep.subr.mxu0 0.0
        %1706 = vmatpush1.xpose.msra.mxu0 0.0
        %1707 = vmatprep.subr.mxu0 0.0
        %1708 = vmatpush1.xpose.msra.mxu0 %v1675
        %1709 = vmatprep.subr.mxu0 0.0
        %1710 = vmatpush2.xpose.msra.mxu0 0.0
        %1711 = vmatprep.subr.mxu0 0.0
        %1712 = vmatpush2.xpose.msra.mxu0 0.0
        %1713 = vmatprep.subr.mxu0 0.0
        %1714 = vmatpush2.xpose.msra.mxu0 0.0
        %1715 = vmatprep.subr.mxu0 0.0
        %1716 = vmatpush2.xpose.msra.mxu0 0.0
        %1717 = vmatprep.subr.mxu0 0.0
        %1718 = vmatpush2.xpose.msra.mxu0 0.0
        %1719 = vmatprep.subr.mxu0 0.0
        %1720 = vmatpush2.xpose.msra.mxu0 0.0
        %1721 = vmatprep.subr.mxu0 0.0
        %1722 = vmatpush2.xpose.msra.mxu0 0.0
        %1723 = vmatprep.subr.mxu0 0.0
        %1724 = vmatpush2.xpose.msra.mxu0 0.0
        %1725 = vmatprep.subr.mxu0 0.0
        %1726 = vmatpush2.xpose.msra.mxu0 0.0
        %1727 = vmatprep.subr.mxu0 0.0
        %1728 = vmatpush2.xpose.msra.mxu0 0.0
        %1729 = vmatprep.subr.mxu0 0.0
        %1730 = vmatpush2.xpose.msra.mxu0 0.0
        %1731 = vmatprep.subr.mxu0 0.0
        %1732 = vmatpush2.xpose.msra.mxu0 0.0
        %1733 = vmatprep.subr.mxu0 0.0
        %1734 = vmatpush2.xpose.msra.mxu0 0.0
        %1735 = vmatprep.subr.mxu0 0.0
        %1736 = vmatpush2.xpose.msra.mxu0 0.0
        %1737 = vmatprep.subr.mxu0 0.0
        %1738 = vmatpush2.xpose.msra.mxu0 0.0
        %1739 = vmatprep.subr.mxu0 0.0
        %1740 = vmatpush2.xpose.msra.mxu0 0.0
        %1741 = vmatprep.mubr.f32.mxu0 0.0
        %1742 = vmatmul.mubr.f32.gmra.mxu0 %v1673
        %v1743 = vpop.f32.mrf.mxu0
        %v1744 = vadd.f32 %v843, %v1743
        %v1745 = vpop.f32.mrf.mxu0
        %1746 = vdwg.mxu0
        %1747 = vrot.lane.b32.xlu0 %v837, 112
        %v1748 = vpop.permute.xlu0 %1747
        %1749 = vrot.lane.b32.xlu0 %v833, 80
        %v1750 = vpop.permute.xlu0 %1749
        %v1751 = vsel %vm847, %v1748, 0
        %v1753 = vsel %vm847, %v1750, 0
        %1755 = vmatprep.subr.mxu0 0.0
        %1756 = vmatpush1.xpose.msra.mxu0 0.0
        %1757 = vmatprep.subr.mxu0 0.0
        %1758 = vmatpush1.xpose.msra.mxu0 0.0
        %1759 = vmatprep.subr.mxu0 0.0
        %1760 = vmatpush1.xpose.msra.mxu0 0.0
        %1761 = vmatprep.subr.mxu0 0.0
        %1762 = vmatpush1.xpose.msra.mxu0 0.0
        %1763 = vmatprep.subr.mxu0 0.0
        %1764 = vmatpush1.xpose.msra.mxu0 0.0
        %1765 = vmatprep.subr.mxu0 0.0
        %1766 = vmatpush1.xpose.msra.mxu0 0.0
        %1767 = vmatprep.subr.mxu0 0.0
        %1768 = vmatpush1.xpose.msra.mxu0 0.0
        %1769 = vmatprep.subr.mxu0 0.0
        %1770 = vmatpush1.xpose.msra.mxu0 0.0
        %1771 = vmatprep.subr.mxu0 0.0
        %1772 = vmatpush1.xpose.msra.mxu0 0.0
        %1773 = vmatprep.subr.mxu0 0.0
        %1774 = vmatpush1.xpose.msra.mxu0 0.0
        %1775 = vmatprep.subr.mxu0 0.0
        %1776 = vmatpush1.xpose.msra.mxu0 0.0
        %1777 = vmatprep.subr.mxu0 0.0
        %1778 = vmatpush1.xpose.msra.mxu0 0.0
        %1779 = vmatprep.subr.mxu0 0.0
        %1780 = vmatpush1.xpose.msra.mxu0 0.0
        %1781 = vmatprep.subr.mxu0 0.0
        %1782 = vmatpush1.xpose.msra.mxu0 0.0
        %1783 = vmatprep.subr.mxu0 0.0
        %1784 = vmatpush1.xpose.msra.mxu0 0.0
        %1785 = vmatprep.subr.mxu0 0.0
        %1786 = vmatpush1.xpose.msra.mxu0 %v1753
        %1787 = vmatprep.subr.mxu0 0.0
        %1788 = vmatpush2.xpose.msra.mxu0 0.0
        %1789 = vmatprep.subr.mxu0 0.0
        %1790 = vmatpush2.xpose.msra.mxu0 0.0
        %1791 = vmatprep.subr.mxu0 0.0
        %1792 = vmatpush2.xpose.msra.mxu0 0.0
        %1793 = vmatprep.subr.mxu0 0.0
        %1794 = vmatpush2.xpose.msra.mxu0 0.0
        %1795 = vmatprep.subr.mxu0 0.0
        %1796 = vmatpush2.xpose.msra.mxu0 0.0
        %1797 = vmatprep.subr.mxu0 0.0
        %1798 = vmatpush2.xpose.msra.mxu0 0.0
        %1799 = vmatprep.subr.mxu0 0.0
        %1800 = vmatpush2.xpose.msra.mxu0 0.0
        %1801 = vmatprep.subr.mxu0 0.0
        %1802 = vmatpush2.xpose.msra.mxu0 0.0
        %1803 = vmatprep.subr.mxu0 0.0
        %1804 = vmatpush2.xpose.msra.mxu0 0.0
        %1805 = vmatprep.subr.mxu0 0.0
        %1806 = vmatpush2.xpose.msra.mxu0 0.0
        %1807 = vmatprep.subr.mxu0 0.0
        %1808 = vmatpush2.xpose.msra.mxu0 0.0
        %1809 = vmatprep.subr.mxu0 0.0
        %1810 = vmatpush2.xpose.msra.mxu0 0.0
        %1811 = vmatprep.subr.mxu0 0.0
        %1812 = vmatpush2.xpose.msra.mxu0 0.0
        %1813 = vmatprep.subr.mxu0 0.0
        %1814 = vmatpush2.xpose.msra.mxu0 0.0
        %1815 = vmatprep.subr.mxu0 0.0
        %1816 = vmatpush2.xpose.msra.mxu0 0.0
        %1817 = vmatprep.subr.mxu0 0.0
        %1818 = vmatpush2.xpose.msra.mxu0 0.0
        %1819 = vmatprep.mubr.f32.mxu0 0.0
        %1820 = vmatmul.mubr.f32.gmra.mxu0 %v1751
        %v1821 = vpop.f32.mrf.mxu0
        %v1822 = vadd.f32 %v843, %v1821
        %v1823 = vpop.f32.mrf.mxu0
        %1824 = vdwg.mxu0
        %v1825 = vsel %vm847, %v1744, -inf
        %1826 = vmax.xlane.f32.xlu0 %v1825
        %v1827 = vpop.xlane.xlu0 %1826
        %v1828 = vsel %vm847, %v1822, -inf
        %1829 = vmax.xlane.f32.xlu0 %v1828
        %v1830 = vpop.xlane.xlu0 %1829
        %v1831 = vsub.f32 %v1744, %v1827
        %v1832 = vsub.f32 %v1822, %v1830
        %v1833 = vmul.f32 %v1831, 1.442695
        %v1834 = vpow.pop %v1833
        %v1835 = vmul.f32 %v1832, 1.442695
        %v1836 = vpow.pop %v1835
        %v1837 = vsel %vm847, %v1834, 0.0
        %1838 = vadd.xlane.f32.xlu0 %v1837
        %v1839 = vpop.xlane.xlu0 %1838
        %v1840 = vsel %vm847, %v1836, 0.0
        %1841 = vadd.xlane.f32.xlu0 %v1840
        %v1842 = vpop.xlane.xlu0 %1841
        %v1843 = vrcp.pop %v1839
        %v1844 = vmul.f32 %v1834, %v1843
        %v1845 = vrcp.pop %v1842
        %v1846 = vmul.f32 %v1836, %v1845
        %1847 = vrot.lane.b32.xlu0 %v828, 48
        %v1848 = vpop.permute.xlu0 %1847
        %v1851 = vsel %vm847, %v1844, 0
        %1853 = vmatprep.subr.mxu0 0.0
        %1854 = vmatpush1.msra.mxu0 0.0
        %1855 = vmatprep.subr.mxu0 0.0
        %1856 = vmatpush1.msra.mxu0 0.0
        %1857 = vmatprep.subr.mxu0 0.0
        %1858 = vmatpush1.msra.mxu0 0.0
        %1859 = vmatprep.subr.mxu0 0.0
        %1860 = vmatpush1.msra.mxu0 0.0
        %1861 = vmatprep.subr.mxu0 0.0
        %1862 = vmatpush1.msra.mxu0 0.0
        %1863 = vmatprep.subr.mxu0 0.0
        %1864 = vmatpush1.msra.mxu0 0.0
        %1865 = vmatprep.subr.mxu0 0.0
        %1866 = vmatpush1.msra.mxu0 0.0
        %1867 = vmatprep.subr.mxu0 0.0
        %1868 = vmatpush1.msra.mxu0 0.0
        %1869 = vmatprep.subr.mxu0 0.0
        %1870 = vmatpush1.msra.mxu0 0.0
        %1871 = vmatprep.subr.mxu0 0.0
        %1872 = vmatpush1.msra.mxu0 0.0
        %1873 = vmatprep.subr.mxu0 0.0
        %1874 = vmatpush1.msra.mxu0 0.0
        %1875 = vmatprep.subr.mxu0 0.0
        %1876 = vmatpush1.msra.mxu0 0.0
        %1877 = vmatprep.subr.mxu0 0.0
        %1878 = vmatpush1.msra.mxu0 0.0
        %1879 = vmatprep.subr.mxu0 0.0
        %1880 = vmatpush1.msra.mxu0 0.0
        %1881 = vmatprep.subr.mxu0 0.0
        %1882 = vmatpush1.msra.mxu0 0.0
        %1883 = vmatprep.subr.mxu0 0.0
        %1884 = vmatpush1.msra.mxu0 %v1848
        %1885 = vmatprep.subr.mxu0 0.0
        %1886 = vmatpush2.msra.mxu0 0.0
        %1887 = vmatprep.subr.mxu0 0.0
        %1888 = vmatpush2.msra.mxu0 0.0
        %1889 = vmatprep.subr.mxu0 0.0
        %1890 = vmatpush2.msra.mxu0 0.0
        %1891 = vmatprep.subr.mxu0 0.0
        %1892 = vmatpush2.msra.mxu0 0.0
        %1893 = vmatprep.subr.mxu0 0.0
        %1894 = vmatpush2.msra.mxu0 0.0
        %1895 = vmatprep.subr.mxu0 0.0
        %1896 = vmatpush2.msra.mxu0 0.0
        %1897 = vmatprep.subr.mxu0 0.0
        %1898 = vmatpush2.msra.mxu0 0.0
        %1899 = vmatprep.subr.mxu0 0.0
        %1900 = vmatpush2.msra.mxu0 0.0
        %1901 = vmatprep.subr.mxu0 0.0
        %1902 = vmatpush2.msra.mxu0 0.0
        %1903 = vmatprep.subr.mxu0 0.0
        %1904 = vmatpush2.msra.mxu0 0.0
        %1905 = vmatprep.subr.mxu0 0.0
        %1906 = vmatpush2.msra.mxu0 0.0
        %1907 = vmatprep.subr.mxu0 0.0
        %1908 = vmatpush2.msra.mxu0 0.0
        %1909 = vmatprep.subr.mxu0 0.0
        %1910 = vmatpush2.msra.mxu0 0.0
        %1911 = vmatprep.subr.mxu0 0.0
        %1912 = vmatpush2.msra.mxu0 0.0
        %1913 = vmatprep.subr.mxu0 0.0
        %1914 = vmatpush2.msra.mxu0 0.0
        %1915 = vmatprep.subr.mxu0 0.0
        %1916 = vmatpush2.msra.mxu0 0.0
        %1917 = vmatprep.mubr.f32.mxu0 0.0
        %1918 = vmatmul.mubr.f32.gmra.mxu0 %v1851
        %v1919 = vpop.f32.mrf.mxu0
        %v1920 = vadd.f32 0.0, %v1919
        %v1921 = vpop.f32.mrf.mxu0
        %1922 = vdwg.mxu0
        %1923 = vrot.lane.b32.xlu0 %v833, 48
        %v1924 = vpop.permute.xlu0 %1923
        %v1927 = vsel %vm847, %v1846, 0
        %1929 = vmatprep.subr.mxu0 0.0
        %1930 = vmatpush1.msra.mxu0 0.0
        %1931 = vmatprep.subr.mxu0 0.0
        %1932 = vmatpush1.msra.mxu0 0.0
        %1933 = vmatprep.subr.mxu0 0.0
        %1934 = vmatpush1.msra.mxu0 0.0
        %1935 = vmatprep.subr.mxu0 0.0
        %1936 = vmatpush1.msra.mxu0 0.0
        %1937 = vmatprep.subr.mxu0 0.0
        %1938 = vmatpush1.msra.mxu0 0.0
        %1939 = vmatprep.subr.mxu0 0.0
        %1940 = vmatpush1.msra.mxu0 0.0
        %1941 = vmatprep.subr.mxu0 0.0
        %1942 = vmatpush1.msra.mxu0 0.0
        %1943 = vmatprep.subr.mxu0 0.0
        %1944 = vmatpush1.msra.mxu0 0.0
        %1945 = vmatprep.subr.mxu0 0.0
        %1946 = vmatpush1.msra.mxu0 0.0
        %1947 = vmatprep.subr.mxu0 0.0
        %1948 = vmatpush1.msra.mxu0 0.0
        %1949 = vmatprep.subr.mxu0 0.0
        %1950 = vmatpush1.msra.mxu0 0.0
        %1951 = vmatprep.subr.mxu0 0.0
        %1952 = vmatpush1.msra.mxu0 0.0
        %1953 = vmatprep.subr.mxu0 0.0
        %1954 = vmatpush1.msra.mxu0 0.0
        %1955 = vmatprep.subr.mxu0 0.0
        %1956 = vmatpush1.msra.mxu0 0.0
        %1957 = vmatprep.subr.mxu0 0.0
        %1958 = vmatpush1.msra.mxu0 0.0
        %1959 = vmatprep.subr.mxu0 0.0
        %1960 = vmatpush1.msra.mxu0 %v1924
        %1961 = vmatprep.subr.mxu0 0.0
        %1962 = vmatpush2.msra.mxu0 0.0
        %1963 = vmatprep.subr.mxu0 0.0
        %1964 = vmatpush2.msra.mxu0 0.0
        %1965 = vmatprep.subr.mxu0 0.0
        %1966 = vmatpush2.msra.mxu0 0.0
        %1967 = vmatprep.subr.mxu0 0.0
        %1968 = vmatpush2.msra.mxu0 0.0
        %1969 = vmatprep.subr.mxu0 0.0
        %1970 = vmatpush2.msra.mxu0 0.0
        %1971 = vmatprep.subr.mxu0 0.0
        %1972 = vmatpush2.msra.mxu0 0.0
        %1973 = vmatprep.subr.mxu0 0.0
        %1974 = vmatpush2.msra.mxu0 0.0
        %1975 = vmatprep.subr.mxu0 0.0
        %1976 = vmatpush2.msra.mxu0 0.0
        %1977 = vmatprep.subr.mxu0 0.0
        %1978 = vmatpush2.msra.mxu0 0.0
        %1979 = vmatprep.subr.mxu0 0.0
        %1980 = vmatpush2.msra.mxu0 0.0
        %1981 = vmatprep.subr.mxu0 0.0
        %1982 = vmatpush2.msra.mxu0 0.0
        %1983 = vmatprep.subr.mxu0 0.0
        %1984 = vmatpush2.msra.mxu0 0.0
        %1985 = vmatprep.subr.mxu0 0.0
        %1986 = vmatpush2.msra.mxu0 0.0
        %1987 = vmatprep.subr.mxu0 0.0
        %1988 = vmatpush2.msra.mxu0 0.0
        %1989 = vmatprep.subr.mxu0 0.0
        %1990 = vmatpush2.msra.mxu0 0.0
        %1991 = vmatprep.subr.mxu0 0.0
        %1992 = vmatpush2.msra.mxu0 0.0
        %1993 = vmatprep.mubr.f32.mxu0 0.0
        %1994 = vmatmul.mubr.f32.gmra.mxu0 %v1927
        %v1995 = vpop.f32.mrf.mxu0
        %v1996 = vadd.f32 0.0, %v1995
        %v1997 = vpop.f32.mrf.mxu0
        %1998 = vdwg.mxu0
        %v1999 = vld [vmem:[%s661 + $0x10] sm:$0xff]
        %v2001 = vsel %vm847, %v1920, 0
        %v2004 = vsel %vm847, %v1996, 0
        %2006 = vmatprep.subr.mxu0 0.0
        %2007 = vmatpush1.msra.mxu0 0.0
        %2008 = vmatprep.subr.mxu0 0.0
        %2009 = vmatpush1.msra.mxu0 0.0
        %2010 = vmatprep.subr.mxu0 0.0
        %2011 = vmatpush1.msra.mxu0 0.0
        %2012 = vmatprep.subr.mxu0 0.0
        %2013 = vmatpush1.msra.mxu0 0.0
        %2014 = vmatprep.subr.mxu0 0.0
        %2015 = vmatpush1.msra.mxu0 0.0
        %2016 = vmatprep.subr.mxu0 0.0
        %2017 = vmatpush1.msra.mxu0 0.0
        %2018 = vmatprep.subr.mxu0 0.0
        %2019 = vmatpush1.msra.mxu0 0.0
        %2020 = vmatprep.subr.mxu0 0.0
        %2021 = vmatpush1.msra.mxu0 0.0
        %2022 = vmatprep.subr.mxu0 0.0
        %2023 = vmatpush1.msra.mxu0 0.0
        %2024 = vmatprep.subr.mxu0 0.0
        %2025 = vmatpush1.msra.mxu0 0.0
        %2026 = vmatprep.subr.mxu0 0.0
        %2027 = vmatpush1.msra.mxu0 0.0
        %2028 = vmatprep.subr.mxu0 0.0
        %2029 = vmatpush1.msra.mxu0 0.0
        %2030 = vmatprep.subr.mxu0 0.0
        %2031 = vmatpush1.msra.mxu0 0.0
        %2032 = vmatprep.subr.mxu0 0.0
        %2033 = vmatpush1.msra.mxu0 0.0
        %2034 = vmatprep.subr.mxu0 0.0
        %2035 = vmatpush1.msra.mxu0 0.0
        %2036 = vmatprep.subr.mxu0 0.0
        %2037 = vmatpush1.msra.mxu0 %v1999
        %2038 = vmatprep.subr.mxu0 0.0
        %2039 = vmatpush2.msra.mxu0 0.0
        %2040 = vmatprep.subr.mxu0 0.0
        %2041 = vmatpush2.msra.mxu0 0.0
        %2042 = vmatprep.subr.mxu0 0.0
        %2043 = vmatpush2.msra.mxu0 0.0
        %2044 = vmatprep.subr.mxu0 0.0
        %2045 = vmatpush2.msra.mxu0 0.0
        %2046 = vmatprep.subr.mxu0 0.0
        %2047 = vmatpush2.msra.mxu0 0.0
        %2048 = vmatprep.subr.mxu0 0.0
        %2049 = vmatpush2.msra.mxu0 0.0
        %2050 = vmatprep.subr.mxu0 0.0
        %2051 = vmatpush2.msra.mxu0 0.0
        %2052 = vmatprep.subr.mxu0 0.0
        %2053 = vmatpush2.msra.mxu0 0.0
        %2054 = vmatprep.subr.mxu0 0.0
        %2055 = vmatpush2.msra.mxu0 0.0
        %2056 = vmatprep.subr.mxu0 0.0
        %2057 = vmatpush2.msra.mxu0 0.0
        %2058 = vmatprep.subr.mxu0 0.0
        %2059 = vmatpush2.msra.mxu0 0.0
        %2060 = vmatprep.subr.mxu0 0.0
        %2061 = vmatpush2.msra.mxu0 0.0
        %2062 = vmatprep.subr.mxu0 0.0
        %2063 = vmatpush2.msra.mxu0 0.0
        %2064 = vmatprep.subr.mxu0 0.0
        %2065 = vmatpush2.msra.mxu0 0.0
        %2066 = vmatprep.subr.mxu0 0.0
        %2067 = vmatpush2.msra.mxu0 0.0
        %2068 = vmatprep.subr.mxu0 0.0
        %2069 = vmatpush2.msra.mxu0 0.0
        %2070 = vmatprep.mubr.f32.mxu0 0.0
        %2071 = vmatmul.mubr.f32.gmra.mxu0 %v2001
        %v2072 = vpop.f32.mrf.mxu0
        %v2073 = vadd.f32 0.0, %v2072
        %v2074 = vpop.f32.mrf.mxu0
        %2075 = vmatprep.mubr.f32.mxu0 0.0
        %2076 = vmatmul.mubr.f32.gmra.mxu0 %v2004
        %v2077 = vpop.f32.mrf.mxu0
        %v2078 = vadd.f32 0.0, %v2077
        %v2079 = vpop.f32.mrf.mxu0
        %2080 = vdwg.mxu0
        %v2081 = vadd.f32 %v1661, %v2073
        %v2082 = vadd.f32 %v1666, %v2078
        %2083 = vrot.lane.b32.xlu0 %v836, 104
        %v2084 = vpop.permute.xlu0 %2083
        %2085 = vrot.lane.b32.xlu0 %v828, 72
        %v2086 = vpop.permute.xlu0 %2085
        %v2087 = vsel %vm847, %v2084, 0
        %v2089 = vsel %vm847, %v2086, 0
        %2091 = vmatprep.subr.mxu0 0.0
        %2092 = vmatpush1.xpose.msra.mxu0 0.0
        %2093 = vmatprep.subr.mxu0 0.0
        %2094 = vmatpush1.xpose.msra.mxu0 0.0
        %2095 = vmatprep.subr.mxu0 0.0
        %2096 = vmatpush1.xpose.msra.mxu0 0.0
        %2097 = vmatprep.subr.mxu0 0.0
        %2098 = vmatpush1.xpose.msra.mxu0 0.0
        %2099 = vmatprep.subr.mxu0 0.0
        %2100 = vmatpush1.xpose.msra.mxu0 0.0
        %2101 = vmatprep.subr.mxu0 0.0
        %2102 = vmatpush1.xpose.msra.mxu0 0.0
        %2103 = vmatprep.subr.mxu0 0.0
        %2104 = vmatpush1.xpose.msra.mxu0 0.0
        %2105 = vmatprep.subr.mxu0 0.0
        %2106 = vmatpush1.xpose.msra.mxu0 0.0
        %2107 = vmatprep.subr.mxu0 0.0
        %2108 = vmatpush1.xpose.msra.mxu0 0.0
        %2109 = vmatprep.subr.mxu0 0.0
        %2110 = vmatpush1.xpose.msra.mxu0 0.0
        %2111 = vmatprep.subr.mxu0 0.0
        %2112 = vmatpush1.xpose.msra.mxu0 0.0
        %2113 = vmatprep.subr.mxu0 0.0
        %2114 = vmatpush1.xpose.msra.mxu0 0.0
        %2115 = vmatprep.subr.mxu0 0.0
        %2116 = vmatpush1.xpose.msra.mxu0 0.0
        %2117 = vmatprep.subr.mxu0 0.0
        %2118 = vmatpush1.xpose.msra.mxu0 0.0
        %2119 = vmatprep.subr.mxu0 0.0
        %2120 = vmatpush1.xpose.msra.mxu0 0.0
        %2121 = vmatprep.subr.mxu0 0.0
        %2122 = vmatpush1.xpose.msra.mxu0 %v2089
        %2123 = vmatprep.subr.mxu0 0.0
        %2124 = vmatpush2.xpose.msra.mxu0 0.0
        %2125 = vmatprep.subr.mxu0 0.0
        %2126 = vmatpush2.xpose.msra.mxu0 0.0
        %2127 = vmatprep.subr.mxu0 0.0
        %2128 = vmatpush2.xpose.msra.mxu0 0.0
        %2129 = vmatprep.subr.mxu0 0.0
        %2130 = vmatpush2.xpose.msra.mxu0 0.0
        %2131 = vmatprep.subr.mxu0 0.0
        %2132 = vmatpush2.xpose.msra.mxu0 0.0
        %2133 = vmatprep.subr.mxu0 0.0
        %2134 = vmatpush2.xpose.msra.mxu0 0.0
        %2135 = vmatprep.subr.mxu0 0.0
        %2136 = vmatpush2.xpose.msra.mxu0 0.0
        %2137 = vmatprep.subr.mxu0 0.0
        %2138 = vmatpush2.xpose.msra.mxu0 0.0
        %2139 = vmatprep.subr.mxu0 0.0
        %2140 = vmatpush2.xpose.msra.mxu0 0.0
        %2141 = vmatprep.subr.mxu0 0.0
        %2142 = vmatpush2.xpose.msra.mxu0 0.0
        %2143 = vmatprep.subr.mxu0 0.0
        %2144 = vmatpush2.xpose.msra.mxu0 0.0
        %2145 = vmatprep.subr.mxu0 0.0
        %2146 = vmatpush2.xpose.msra.mxu0 0.0
        %2147 = vmatprep.subr.mxu0 0.0
        %2148 = vmatpush2.xpose.msra.mxu0 0.0
        %2149 = vmatprep.subr.mxu0 0.0
        %2150 = vmatpush2.xpose.msra.mxu0 0.0
        %2151 = vmatprep.subr.mxu0 0.0
        %2152 = vmatpush2.xpose.msra.mxu0 0.0
        %2153 = vmatprep.subr.mxu0 0.0
        %2154 = vmatpush2.xpose.msra.mxu0 0.0
        %2155 = vmatprep.mubr.f32.mxu0 0.0
        %2156 = vmatmul.mubr.f32.gmra.mxu0 %v2087
        %v2157 = vpop.f32.mrf.mxu0
        %v2158 = vadd.f32 %v843, %v2157
        %v2159 = vpop.f32.mrf.mxu0
        %2160 = vdwg.mxu0
        %2161 = vrot.lane.b32.xlu0 %v837, 104
        %v2162 = vpop.permute.xlu0 %2161
        %2163 = vrot.lane.b32.xlu0 %v833, 72
        %v2164 = vpop.permute.xlu0 %2163
        %v2165 = vsel %vm847, %v2162, 0
        %v2167 = vsel %vm847, %v2164, 0
        %2169 = vmatprep.subr.mxu0 0.0
        %2170 = vmatpush1.xpose.msra.mxu0 0.0
        %2171 = vmatprep.subr.mxu0 0.0
        %2172 = vmatpush1.xpose.msra.mxu0 0.0
        %2173 = vmatprep.subr.mxu0 0.0
        %2174 = vmatpush1.xpose.msra.mxu0 0.0
        %2175 = vmatprep.subr.mxu0 0.0
        %2176 = vmatpush1.xpose.msra.mxu0 0.0
        %2177 = vmatprep.subr.mxu0 0.0
        %2178 = vmatpush1.xpose.msra.mxu0 0.0
        %2179 = vmatprep.subr.mxu0 0.0
        %2180 = vmatpush1.xpose.msra.mxu0 0.0
        %2181 = vmatprep.subr.mxu0 0.0
        %2182 = vmatpush1.xpose.msra.mxu0 0.0
        %2183 = vmatprep.subr.mxu0 0.0
        %2184 = vmatpush1.xpose.msra.mxu0 0.0
        %2185 = vmatprep.subr.mxu0 0.0
        %2186 = vmatpush1.xpose.msra.mxu0 0.0
        %2187 = vmatprep.subr.mxu0 0.0
        %2188 = vmatpush1.xpose.msra.mxu0 0.0
        %2189 = vmatprep.subr.mxu0 0.0
        %2190 = vmatpush1.xpose.msra.mxu0 0.0
        %2191 = vmatprep.subr.mxu0 0.0
        %2192 = vmatpush1.xpose.msra.mxu0 0.0
        %2193 = vmatprep.subr.mxu0 0.0
        %2194 = vmatpush1.xpose.msra.mxu0 0.0
        %2195 = vmatprep.subr.mxu0 0.0
        %2196 = vmatpush1.xpose.msra.mxu0 0.0
        %2197 = vmatprep.subr.mxu0 0.0
        %2198 = vmatpush1.xpose.msra.mxu0 0.0
        %2199 = vmatprep.subr.mxu0 0.0
        %2200 = vmatpush1.xpose.msra.mxu0 %v2167
        %2201 = vmatprep.subr.mxu0 0.0
        %2202 = vmatpush2.xpose.msra.mxu0 0.0
        %2203 = vmatprep.subr.mxu0 0.0
        %2204 = vmatpush2.xpose.msra.mxu0 0.0
        %2205 = vmatprep.subr.mxu0 0.0
        %2206 = vmatpush2.xpose.msra.mxu0 0.0
        %2207 = vmatprep.subr.mxu0 0.0
        %2208 = vmatpush2.xpose.msra.mxu0 0.0
        %2209 = vmatprep.subr.mxu0 0.0
        %2210 = vmatpush2.xpose.msra.mxu0 0.0
        %2211 = vmatprep.subr.mxu0 0.0
        %2212 = vmatpush2.xpose.msra.mxu0 0.0
        %2213 = vmatprep.subr.mxu0 0.0
        %2214 = vmatpush2.xpose.msra.mxu0 0.0
        %2215 = vmatprep.subr.mxu0 0.0
        %2216 = vmatpush2.xpose.msra.mxu0 0.0
        %2217 = vmatprep.subr.mxu0 0.0
        %2218 = vmatpush2.xpose.msra.mxu0 0.0
        %2219 = vmatprep.subr.mxu0 0.0
        %2220 = vmatpush2.xpose.msra.mxu0 0.0
        %2221 = vmatprep.subr.mxu0 0.0
        %2222 = vmatpush2.xpose.msra.mxu0 0.0
        %2223 = vmatprep.subr.mxu0 0.0
        %2224 = vmatpush2.xpose.msra.mxu0 0.0
        %2225 = vmatprep.subr.mxu0 0.0
        %2226 = vmatpush2.xpose.msra.mxu0 0.0
        %2227 = vmatprep.subr.mxu0 0.0
        %2228 = vmatpush2.xpose.msra.mxu0 0.0
        %2229 = vmatprep.subr.mxu0 0.0
        %2230 = vmatpush2.xpose.msra.mxu0 0.0
        %2231 = vmatprep.subr.mxu0 0.0
        %2232 = vmatpush2.xpose.msra.mxu0 0.0
        %2233 = vmatprep.mubr.f32.mxu0 0.0
        %2234 = vmatmul.mubr.f32.gmra.mxu0 %v2165
        %v2235 = vpop.f32.mrf.mxu0
        %v2236 = vadd.f32 %v843, %v2235
        %v2237 = vpop.f32.mrf.mxu0
        %2238 = vdwg.mxu0
        %v2239 = vsel %vm847, %v2158, -inf
        %2240 = vmax.xlane.f32.xlu0 %v2239
        %v2241 = vpop.xlane.xlu0 %2240
        %v2242 = vsel %vm847, %v2236, -inf
        %2243 = vmax.xlane.f32.xlu0 %v2242
        %v2244 = vpop.xlane.xlu0 %2243
        %v2245 = vsub.f32 %v2158, %v2241
        %v2246 = vsub.f32 %v2236, %v2244
        %v2247 = vmul.f32 %v2245, 1.442695
        %v2248 = vpow.pop %v2247
        %v2249 = vmul.f32 %v2246, 1.442695
        %v2250 = vpow.pop %v2249
        %v2251 = vsel %vm847, %v2248, 0.0
        %2252 = vadd.xlane.f32.xlu0 %v2251
        %v2253 = vpop.xlane.xlu0 %2252
        %v2254 = vsel %vm847, %v2250, 0.0
        %2255 = vadd.xlane.f32.xlu0 %v2254
        %v2256 = vpop.xlane.xlu0 %2255
        %v2257 = vrcp.pop %v2253
        %v2258 = vmul.f32 %v2248, %v2257
        %v2259 = vrcp.pop %v2256
        %v2260 = vmul.f32 %v2250, %v2259
        %2261 = vrot.lane.b32.xlu0 %v828, 40
        %v2262 = vpop.permute.xlu0 %2261
        %v2265 = vsel %vm847, %v2258, 0
        %2267 = vmatprep.subr.mxu0 0.0
        %2268 = vmatpush1.msra.mxu0 0.0
        %2269 = vmatprep.subr.mxu0 0.0
        %2270 = vmatpush1.msra.mxu0 0.0
        %2271 = vmatprep.subr.mxu0 0.0
        %2272 = vmatpush1.msra.mxu0 0.0
        %2273 = vmatprep.subr.mxu0 0.0
        %2274 = vmatpush1.msra.mxu0 0.0
        %2275 = vmatprep.subr.mxu0 0.0
        %2276 = vmatpush1.msra.mxu0 0.0
        %2277 = vmatprep.subr.mxu0 0.0
        %2278 = vmatpush1.msra.mxu0 0.0
        %2279 = vmatprep.subr.mxu0 0.0
        %2280 = vmatpush1.msra.mxu0 0.0
        %2281 = vmatprep.subr.mxu0 0.0
        %2282 = vmatpush1.msra.mxu0 0.0
        %2283 = vmatprep.subr.mxu0 0.0
        %2284 = vmatpush1.msra.mxu0 0.0
        %2285 = vmatprep.subr.mxu0 0.0
        %2286 = vmatpush1.msra.mxu0 0.0
        %2287 = vmatprep.subr.mxu0 0.0
        %2288 = vmatpush1.msra.mxu0 0.0
        %2289 = vmatprep.subr.mxu0 0.0
        %2290 = vmatpush1.msra.mxu0 0.0
        %2291 = vmatprep.subr.mxu0 0.0
        %2292 = vmatpush1.msra.mxu0 0.0
        %2293 = vmatprep.subr.mxu0 0.0
        %2294 = vmatpush1.msra.mxu0 0.0
        %2295 = vmatprep.subr.mxu0 0.0
        %2296 = vmatpush1.msra.mxu0 0.0
        %2297 = vmatprep.subr.mxu0 0.0
        %2298 = vmatpush1.msra.mxu0 %v2262
        %2299 = vmatprep.subr.mxu0 0.0
        %2300 = vmatpush2.msra.mxu0 0.0
        %2301 = vmatprep.subr.mxu0 0.0
        %2302 = vmatpush2.msra.mxu0 0.0
        %2303 = vmatprep.subr.mxu0 0.0
        %2304 = vmatpush2.msra.mxu0 0.0
        %2305 = vmatprep.subr.mxu0 0.0
        %2306 = vmatpush2.msra.mxu0 0.0
        %2307 = vmatprep.subr.mxu0 0.0
        %2308 = vmatpush2.msra.mxu0 0.0
        %2309 = vmatprep.subr.mxu0 0.0
        %2310 = vmatpush2.msra.mxu0 0.0
        %2311 = vmatprep.subr.mxu0 0.0
        %2312 = vmatpush2.msra.mxu0 0.0
        %2313 = vmatprep.subr.mxu0 0.0
        %2314 = vmatpush2.msra.mxu0 0.0
        %2315 = vmatprep.subr.mxu0 0.0
        %2316 = vmatpush2.msra.mxu0 0.0
        %2317 = vmatprep.subr.mxu0 0.0
        %2318 = vmatpush2.msra.mxu0 0.0
        %2319 = vmatprep.subr.mxu0 0.0
        %2320 = vmatpush2.msra.mxu0 0.0
        %2321 = vmatprep.subr.mxu0 0.0
        %2322 = vmatpush2.msra.mxu0 0.0
        %2323 = vmatprep.subr.mxu0 0.0
        %2324 = vmatpush2.msra.mxu0 0.0
        %2325 = vmatprep.subr.mxu0 0.0
        %2326 = vmatpush2.msra.mxu0 0.0
        %2327 = vmatprep.subr.mxu0 0.0
        %2328 = vmatpush2.msra.mxu0 0.0
        %2329 = vmatprep.subr.mxu0 0.0
        %2330 = vmatpush2.msra.mxu0 0.0
        %2331 = vmatprep.mubr.f32.mxu0 0.0
        %2332 = vmatmul.mubr.f32.gmra.mxu0 %v2265
        %v2333 = vpop.f32.mrf.mxu0
        %v2334 = vadd.f32 0.0, %v2333
        %v2335 = vpop.f32.mrf.mxu0
        %2336 = vdwg.mxu0
        %2337 = vrot.lane.b32.xlu0 %v833, 40
        %v2338 = vpop.permute.xlu0 %2337
        %v2341 = vsel %vm847, %v2260, 0
        %2343 = vmatprep.subr.mxu0 0.0
        %2344 = vmatpush1.msra.mxu0 0.0
        %2345 = vmatprep.subr.mxu0 0.0
        %2346 = vmatpush1.msra.mxu0 0.0
        %2347 = vmatprep.subr.mxu0 0.0
        %2348 = vmatpush1.msra.mxu0 0.0
        %2349 = vmatprep.subr.mxu0 0.0
        %2350 = vmatpush1.msra.mxu0 0.0
        %2351 = vmatprep.subr.mxu0 0.0
        %2352 = vmatpush1.msra.mxu0 0.0
        %2353 = vmatprep.subr.mxu0 0.0
        %2354 = vmatpush1.msra.mxu0 0.0
        %2355 = vmatprep.subr.mxu0 0.0
        %2356 = vmatpush1.msra.mxu0 0.0
        %2357 = vmatprep.subr.mxu0 0.0
        %2358 = vmatpush1.msra.mxu0 0.0
        %2359 = vmatprep.subr.mxu0 0.0
        %2360 = vmatpush1.msra.mxu0 0.0
        %2361 = vmatprep.subr.mxu0 0.0
        %2362 = vmatpush1.msra.mxu0 0.0
        %2363 = vmatprep.subr.mxu0 0.0
        %2364 = vmatpush1.msra.mxu0 0.0
        %2365 = vmatprep.subr.mxu0 0.0
        %2366 = vmatpush1.msra.mxu0 0.0
        %2367 = vmatprep.subr.mxu0 0.0
        %2368 = vmatpush1.msra.mxu0 0.0
        %2369 = vmatprep.subr.mxu0 0.0
        %2370 = vmatpush1.msra.mxu0 0.0
        %2371 = vmatprep.subr.mxu0 0.0
        %2372 = vmatpush1.msra.mxu0 0.0
        %2373 = vmatprep.subr.mxu0 0.0
        %2374 = vmatpush1.msra.mxu0 %v2338
        %2375 = vmatprep.subr.mxu0 0.0
        %2376 = vmatpush2.msra.mxu0 0.0
        %2377 = vmatprep.subr.mxu0 0.0
        %2378 = vmatpush2.msra.mxu0 0.0
        %2379 = vmatprep.subr.mxu0 0.0
        %2380 = vmatpush2.msra.mxu0 0.0
        %2381 = vmatprep.subr.mxu0 0.0
        %2382 = vmatpush2.msra.mxu0 0.0
        %2383 = vmatprep.subr.mxu0 0.0
        %2384 = vmatpush2.msra.mxu0 0.0
        %2385 = vmatprep.subr.mxu0 0.0
        %2386 = vmatpush2.msra.mxu0 0.0
        %2387 = vmatprep.subr.mxu0 0.0
        %2388 = vmatpush2.msra.mxu0 0.0
        %2389 = vmatprep.subr.mxu0 0.0
        %2390 = vmatpush2.msra.mxu0 0.0
        %2391 = vmatprep.subr.mxu0 0.0
        %2392 = vmatpush2.msra.mxu0 0.0
        %2393 = vmatprep.subr.mxu0 0.0
        %2394 = vmatpush2.msra.mxu0 0.0
        %2395 = vmatprep.subr.mxu0 0.0
        %2396 = vmatpush2.msra.mxu0 0.0
        %2397 = vmatprep.subr.mxu0 0.0
        %2398 = vmatpush2.msra.mxu0 0.0
        %2399 = vmatprep.subr.mxu0 0.0
        %2400 = vmatpush2.msra.mxu0 0.0
        %2401 = vmatprep.subr.mxu0 0.0
        %2402 = vmatpush2.msra.mxu0 0.0
        %2403 = vmatprep.subr.mxu0 0.0
        %2404 = vmatpush2.msra.mxu0 0.0
        %2405 = vmatprep.subr.mxu0 0.0
        %2406 = vmatpush2.msra.mxu0 0.0
        %2407 = vmatprep.mubr.f32.mxu0 0.0
        %2408 = vmatmul.mubr.f32.gmra.mxu0 %v2341
        %v2409 = vpop.f32.mrf.mxu0
        %v2410 = vadd.f32 0.0, %v2409
        %v2411 = vpop.f32.mrf.mxu0
        %2412 = vdwg.mxu0
        %v2413 = vld [vmem:[%s661 + $0x18] sm:$0xff]
        %v2415 = vsel %vm847, %v2334, 0
        %v2418 = vsel %vm847, %v2410, 0
        %2420 = vmatprep.subr.mxu0 0.0
        %2421 = vmatpush1.msra.mxu0 0.0
        %2422 = vmatprep.subr.mxu0 0.0
        %2423 = vmatpush1.msra.mxu0 0.0
        %2424 = vmatprep.subr.mxu0 0.0
        %2425 = vmatpush1.msra.mxu0 0.0
        %2426 = vmatprep.subr.mxu0 0.0
        %2427 = vmatpush1.msra.mxu0 0.0
        %2428 = vmatprep.subr.mxu0 0.0
        %2429 = vmatpush1.msra.mxu0 0.0
        %2430 = vmatprep.subr.mxu0 0.0
        %2431 = vmatpush1.msra.mxu0 0.0
        %2432 = vmatprep.subr.mxu0 0.0
        %2433 = vmatpush1.msra.mxu0 0.0
        %2434 = vmatprep.subr.mxu0 0.0
        %2435 = vmatpush1.msra.mxu0 0.0
        %2436 = vmatprep.subr.mxu0 0.0
        %2437 = vmatpush1.msra.mxu0 0.0
        %2438 = vmatprep.subr.mxu0 0.0
        %2439 = vmatpush1.msra.mxu0 0.0
        %2440 = vmatprep.subr.mxu0 0.0
        %2441 = vmatpush1.msra.mxu0 0.0
        %2442 = vmatprep.subr.mxu0 0.0
        %2443 = vmatpush1.msra.mxu0 0.0
        %2444 = vmatprep.subr.mxu0 0.0
        %2445 = vmatpush1.msra.mxu0 0.0
        %2446 = vmatprep.subr.mxu0 0.0
        %2447 = vmatpush1.msra.mxu0 0.0
        %2448 = vmatprep.subr.mxu0 0.0
        %2449 = vmatpush1.msra.mxu0 0.0
        %2450 = vmatprep.subr.mxu0 0.0
        %2451 = vmatpush1.msra.mxu0 %v2413
        %2452 = vmatprep.subr.mxu0 0.0
        %2453 = vmatpush2.msra.mxu0 0.0
        %2454 = vmatprep.subr.mxu0 0.0
        %2455 = vmatpush2.msra.mxu0 0.0
        %2456 = vmatprep.subr.mxu0 0.0
        %2457 = vmatpush2.msra.mxu0 0.0
        %2458 = vmatprep.subr.mxu0 0.0
        %2459 = vmatpush2.msra.mxu0 0.0
        %2460 = vmatprep.subr.mxu0 0.0
        %2461 = vmatpush2.msra.mxu0 0.0
        %2462 = vmatprep.subr.mxu0 0.0
        %2463 = vmatpush2.msra.mxu0 0.0
        %2464 = vmatprep.subr.mxu0 0.0
        %2465 = vmatpush2.msra.mxu0 0.0
        %2466 = vmatprep.subr.mxu0 0.0
        %2467 = vmatpush2.msra.mxu0 0.0
        %2468 = vmatprep.subr.mxu0 0.0
        %2469 = vmatpush2.msra.mxu0 0.0
        %2470 = vmatprep.subr.mxu0 0.0
        %2471 = vmatpush2.msra.mxu0 0.0
        %2472 = vmatprep.subr.mxu0 0.0
        %2473 = vmatpush2.msra.mxu0 0.0
        %2474 = vmatprep.subr.mxu0 0.0
        %2475 = vmatpush2.msra.mxu0 0.0
        %2476 = vmatprep.subr.mxu0 0.0
        %2477 = vmatpush2.msra.mxu0 0.0
        %2478 = vmatprep.subr.mxu0 0.0
        %2479 = vmatpush2.msra.mxu0 0.0
        %2480 = vmatprep.subr.mxu0 0.0
        %2481 = vmatpush2.msra.mxu0 0.0
        %2482 = vmatprep.subr.mxu0 0.0
        %2483 = vmatpush2.msra.mxu0 0.0
        %2484 = vmatprep.mubr.f32.mxu0 0.0
        %2485 = vmatmul.mubr.f32.gmra.mxu0 %v2415
        %v2486 = vpop.f32.mrf.mxu0
        %v2487 = vadd.f32 0.0, %v2486
        %v2488 = vpop.f32.mrf.mxu0
        %2489 = vmatprep.mubr.f32.mxu0 0.0
        %2490 = vmatmul.mubr.f32.gmra.mxu0 %v2418
        %v2491 = vpop.f32.mrf.mxu0
        %v2492 = vadd.f32 0.0, %v2491
        %v2493 = vpop.f32.mrf.mxu0
        %2494 = vdwg.mxu0
        %v2495 = vadd.f32 %v2081, %v2487
        %v2496 = vadd.f32 %v2082, %v2492
        %v2497 = vadd.f32 %v696, %v2495
        %v2498 = vadd.f32 %v697, %v2496
        %v2499 = vld [vmem:[%s664] sm:$0x1]
        %v2501 = vlaneseq
        %v2502 = vshrl.u32 %v2501, 7
        %v2503 = vsub.s32 0, %v2502
        %v2504 = vrot.slane %v2499, %v2503
        %v2506 = vadd.f32 %v2497, %v2504
        %v2507 = vadd.f32 %v2498, %v2504
        %v2508 = vld [vmem:[%s667] sm:$0x1]
        %v2509 = vld [vmem:[%s670] sm:$0x1]
        %v2510 = vsel %vm700, %v2506, 0.0
        %2511 = vadd.xlane.f32.xlu0 %v2510
        %v2512 = vpop.xlane.xlu0 %2511
        %v2513 = vsel %vm700, %v2507, 0.0
        %2514 = vadd.xlane.f32.xlu0 %v2513
        %v2515 = vpop.xlane.xlu0 %2514
        %v2516 = vmul.f32 %v2512, %v707
        %v2517 = vmul.f32 %v2515, %v707
        %v2518 = vsub.f32 %v2506, %v2516
        %v2519 = vsub.f32 %v2507, %v2517
        %v2520 = vmul.f32 %v2518, %v2518
        %v2521 = vmul.f32 %v2519, %v2519
        %v2522 = vsel %vm700, %v2520, 0.0
        %2523 = vadd.xlane.f32.xlu0 %v2522
        %v2524 = vpop.xlane.xlu0 %2523
        %v2525 = vsel %vm700, %v2521, 0.0
        %2526 = vadd.xlane.f32.xlu0 %v2525
        %v2527 = vpop.xlane.xlu0 %2526
        %v2528 = vmul.f32 %v2524, %v707
        %v2529 = vmul.f32 %v2527, %v707
        %v2530 = vadd.f32 %v2528, 1e-05
        %v2531 = vadd.f32 %v2529, 1e-05
        %v2532 = vrsqrt.pop %v2530
        %v2533 = vrsqrt.pop %v2531
        %v2534 = vmul.f32 %v2518, %v2532
        %v2535 = vmul.f32 %v2519, %v2533
        %v2537 = vlaneseq
        %v2538 = vshrl.u32 %v2537, 7
        %v2539 = vsub.s32 0, %v2538
        %v2540 = vrot.slane %v2508, %v2539
        %v2542 = vmul.f32 %v2534, %v2540
        %v2543 = vmul.f32 %v2535, %v2540
        %v2545 = vlaneseq
        %v2546 = vshrl.u32 %v2545, 7
        %v2547 = vsub.s32 0, %v2546
        %v2548 = vrot.slane %v2509, %v2547
        %v2550 = vadd.f32 %v2542, %v2548
        %v2551 = vadd.f32 %v2543, %v2548
        %v2552 = vld [vmem:[%s675] sm:$0xff]
        %v2553 = vld [vmem:[%s675 + $0x8] sm:$0xff]
        %v2554 = vld [vmem:[%s675 + $0x10] sm:$0xff]
        %v2555 = vld [vmem:[%s675 + $0x18] sm:$0xff]
        %v2556 = vld [vmem:[%s678] sm:$0x1]
        %v2558 = vlaneseq
        %v2559 = vshrl.u32 %v2558, 7
        %v2560 = vsub.s32 0, %v2559
        %v2561 = vrot.slane %v2556, %v2560
        %v2564 = vsel %vm700, %v2550, 0
        %v2567 = vsel %vm700, %v2551, 0
        %2569 = vmatprep.subr.mxu0 0.0
        %2570 = vmatpush1.msra.mxu0 0.0
        %2571 = vmatprep.subr.mxu0 0.0
        %2572 = vmatpush1.msra.mxu0 0.0
        %2573 = vmatprep.subr.mxu0 0.0
        %2574 = vmatpush1.msra.mxu0 0.0
        %2575 = vmatprep.subr.mxu0 0.0
        %2576 = vmatpush1.msra.mxu0 0.0
        %2577 = vmatprep.subr.mxu0 0.0
        %2578 = vmatpush1.msra.mxu0 0.0
        %2579 = vmatprep.subr.mxu0 0.0
        %2580 = vmatpush1.msra.mxu0 0.0
        %2581 = vmatprep.subr.mxu0 0.0
        %2582 = vmatpush1.msra.mxu0 0.0
        %2583 = vmatprep.subr.mxu0 0.0
        %2584 = vmatpush1.msra.mxu0 0.0
        %2585 = vmatprep.subr.mxu0 0.0
        %2586 = vmatpush1.msra.mxu0 0.0
        %2587 = vmatprep.subr.mxu0 0.0
        %2588 = vmatpush1.msra.mxu0 0.0
        %2589 = vmatprep.subr.mxu0 0.0
        %2590 = vmatpush1.msra.mxu0 0.0
        %2591 = vmatprep.subr.mxu0 0.0
        %2592 = vmatpush1.msra.mxu0 0.0
        %2593 = vmatprep.subr.mxu0 0.0
        %2594 = vmatpush1.msra.mxu0 %v2555
        %2595 = vmatprep.subr.mxu0 0.0
        %2596 = vmatpush1.msra.mxu0 %v2554
        %2597 = vmatprep.subr.mxu0 0.0
        %2598 = vmatpush1.msra.mxu0 %v2553
        %2599 = vmatprep.subr.mxu0 0.0
        %2600 = vmatpush1.msra.mxu0 %v2552
        %2601 = vmatprep.subr.mxu0 0.0
        %2602 = vmatpush2.msra.mxu0 0.0
        %2603 = vmatprep.subr.mxu0 0.0
        %2604 = vmatpush2.msra.mxu0 0.0
        %2605 = vmatprep.subr.mxu0 0.0
        %2606 = vmatpush2.msra.mxu0 0.0
        %2607 = vmatprep.subr.mxu0 0.0
        %2608 = vmatpush2.msra.mxu0 0.0
        %2609 = vmatprep.subr.mxu0 0.0
        %2610 = vmatpush2.msra.mxu0 0.0
        %2611 = vmatprep.subr.mxu0 0.0
        %2612 = vmatpush2.msra.mxu0 0.0
        %2613 = vmatprep.subr.mxu0 0.0
        %2614 = vmatpush2.msra.mxu0 0.0
        %2615 = vmatprep.subr.mxu0 0.0
        %2616 = vmatpush2.msra.mxu0 0.0
        %2617 = vmatprep.subr.mxu0 0.0
        %2618 = vmatpush2.msra.mxu0 0.0
        %2619 = vmatprep.subr.mxu0 0.0
        %2620 = vmatpush2.msra.mxu0 0.0
        %2621 = vmatprep.subr.mxu0 0.0
        %2622 = vmatpush2.msra.mxu0 0.0
        %2623 = vmatprep.subr.mxu0 0.0
        %2624 = vmatpush2.msra.mxu0 0.0
        %2625 = vmatprep.subr.mxu0 0.0
        %2626 = vmatpush2.msra.mxu0 0.0
        %2627 = vmatprep.subr.mxu0 0.0
        %2628 = vmatpush2.msra.mxu0 0.0
        %2629 = vmatprep.subr.mxu0 0.0
        %2630 = vmatpush2.msra.mxu0 0.0
        %2631 = vmatprep.subr.mxu0 0.0
        %2632 = vmatpush2.msra.mxu0 0.0
        %2633 = vmatprep.mubr.f32.mxu0 0.0
        %2634 = vmatmul.mubr.f32.gmra.mxu0 %v2564
        %v2635 = vpop.f32.mrf.mxu0
        %v2636 = vadd.f32 %v2561, %v2635
        %v2637 = vpop.f32.mrf.mxu0
        %2638 = vmatprep.mubr.f32.mxu0 0.0
        %2639 = vmatmul.mubr.f32.gmra.mxu0 %v2567
        %v2640 = vpop.f32.mrf.mxu0
        %v2641 = vadd.f32 %v2561, %v2640
        %v2642 = vpop.f32.mrf.mxu0
        %2643 = vdwg.mxu0
        %v2644 = vmul.f32 %v2636, 1.702
        %v2645 = vmul.f32 %v2641, 1.702
        %v2646 = vxor.u32 %v2644, 2147483648
        %v2647 = vxor.u32 %v2645, 2147483648
        %v2648 = vmul.f32 %v2646, 1.442695
        %v2649 = vpow.pop %v2648
        %v2650 = vmul.f32 %v2647, 1.442695
        %v2651 = vpow.pop %v2650
        %v2652 = vadd.f32 %v2649, 1.0
        %v2653 = vadd.f32 %v2651, 1.0
        %v2654 = vrcp.pop %v2652
        %v2655 = vmul.f32 1.0, %v2654
        %v2656 = vrcp.pop %v2653
        %v2657 = vmul.f32 1.0, %v2656
        %v2658 = vmul.f32 %v2636, %v2655
        %v2659 = vmul.f32 %v2641, %v2657
        %v2660 = vld [vmem:[%s683] sm:$0xff]
        %v2661 = vld [vmem:[%s683 + $0x8] sm:$0xff]
        %v2662 = vld [vmem:[%s683 + $0x10] sm:$0xff]
        %v2663 = vld [vmem:[%s683 + $0x18] sm:$0xff]
        %v2664 = vld [vmem:[%s683 + $0x20] sm:$0xff]
        %v2665 = vld [vmem:[%s683 + $0x28] sm:$0xff]
        %v2666 = vld [vmem:[%s683 + $0x30] sm:$0xff]
        %v2667 = vld [vmem:[%s683 + $0x38] sm:$0xff]
        %v2668 = vld [vmem:[%s683 + $0x40] sm:$0xff]
        %v2669 = vld [vmem:[%s683 + $0x48] sm:$0xff]
        %v2670 = vld [vmem:[%s683 + $0x50] sm:$0xff]
        %v2671 = vld [vmem:[%s683 + $0x58] sm:$0xff]
        %v2672 = vld [vmem:[%s683 + $0x60] sm:$0xff]
        %v2673 = vld [vmem:[%s683 + $0x68] sm:$0xff]
        %v2674 = vld [vmem:[%s683 + $0x70] sm:$0xff]
        %v2675 = vld [vmem:[%s683 + $0x78] sm:$0xff]
        %2676 = vmatprep.subr.mxu0 0.0
        %2677 = vmatpush1.msra.mxu0 %v2675
        %2678 = vmatprep.subr.mxu0 0.0
        %2679 = vmatpush1.msra.mxu0 %v2674
        %2680 = vmatprep.subr.mxu0 0.0
        %2681 = vmatpush1.msra.mxu0 %v2673
        %2682 = vmatprep.subr.mxu0 0.0
        %2683 = vmatpush1.msra.mxu0 %v2672
        %2684 = vmatprep.subr.mxu0 0.0
        %2685 = vmatpush1.msra.mxu0 %v2671
        %2686 = vmatprep.subr.mxu0 0.0
        %2687 = vmatpush1.msra.mxu0 %v2670
        %2688 = vmatprep.subr.mxu0 0.0
        %2689 = vmatpush1.msra.mxu0 %v2669
        %2690 = vmatprep.subr.mxu0 0.0
        %2691 = vmatpush1.msra.mxu0 %v2668
        %2692 = vmatprep.subr.mxu0 0.0
        %2693 = vmatpush1.msra.mxu0 %v2667
        %2694 = vmatprep.subr.mxu0 0.0
        %2695 = vmatpush1.msra.mxu0 %v2666
        %2696 = vmatprep.subr.mxu0 0.0
        %2697 = vmatpush1.msra.mxu0 %v2665
        %2698 = vmatprep.subr.mxu0 0.0
        %2699 = vmatpush1.msra.mxu0 %v2664
        %2700 = vmatprep.subr.mxu0 0.0
        %2701 = vmatpush1.msra.mxu0 %v2663
        %2702 = vmatprep.subr.mxu0 0.0
        %2703 = vmatpush1.msra.mxu0 %v2662
        %2704 = vmatprep.subr.mxu0 0.0
        %2705 = vmatpush1.msra.mxu0 %v2661
        %2706 = vmatprep.subr.mxu0 0.0
        %2707 = vmatpush1.msra.mxu0 %v2660
        %2708 = vmatprep.subr.mxu0 0.0
        %2709 = vmatpush2.msra.mxu0 0.0
        %2710 = vmatprep.subr.mxu0 0.0
        %2711 = vmatpush2.msra.mxu0 0.0
        %2712 = vmatprep.subr.mxu0 0.0
        %2713 = vmatpush2.msra.mxu0 0.0
        %2714 = vmatprep.subr.mxu0 0.0
        %2715 = vmatpush2.msra.mxu0 0.0
        %2716 = vmatprep.subr.mxu0 0.0
        %2717 = vmatpush2.msra.mxu0 0.0
        %2718 = vmatprep.subr.mxu0 0.0
        %2719 = vmatpush2.msra.mxu0 0.0
        %2720 = vmatprep.subr.mxu0 0.0
        %2721 = vmatpush2.msra.mxu0 0.0
        %2722 = vmatprep.subr.mxu0 0.0
        %2723 = vmatpush2.msra.mxu0 0.0
        %2724 = vmatprep.subr.mxu0 0.0
        %2725 = vmatpush2.msra.mxu0 0.0
        %2726 = vmatprep.subr.mxu0 0.0
        %2727 = vmatpush2.msra.mxu0 0.0
        %2728 = vmatprep.subr.mxu0 0.0
        %2729 = vmatpush2.msra.mxu0 0.0
        %2730 = vmatprep.subr.mxu0 0.0
        %2731 = vmatpush2.msra.mxu0 0.0
        %2732 = vmatprep.subr.mxu0 0.0
        %2733 = vmatpush2.msra.mxu0 0.0
        %2734 = vmatprep.subr.mxu0 0.0
        %2735 = vmatpush2.msra.mxu0 0.0
        %2736 = vmatprep.subr.mxu0 0.0
        %2737 = vmatpush2.msra.mxu0 0.0
        %2738 = vmatprep.subr.mxu0 0.0
        %2739 = vmatpush2.msra.mxu0 0.0
        %2740 = vmatprep.mubr.f32.mxu0 0.0
        %2741 = vmatmul.mubr.f32.gmra.mxu0 %v2658
        %v2742 = vpop.f32.mrf.mxu0
        %v2743 = vadd.f32 0.0, %v2742
        %v2744 = vpop.f32.mrf.mxu0
        %2745 = vmatprep.mubr.f32.mxu0 0.0
        %2746 = vmatmul.mubr.f32.gmra.mxu0 %v2659
        %v2747 = vpop.f32.mrf.mxu0
        %v2748 = vadd.f32 0.0, %v2747
        %v2749 = vpop.f32.mrf.mxu0
        %2750 = vdwg.mxu0
        %v2751 = vadd.f32 %v2506, %v2743
        %v2752 = vadd.f32 %v2507, %v2748
        %v2753 = vld [vmem:[%s686] sm:$0x1]
        %v2755 = vlaneseq
        %v2756 = vshrl.u32 %v2755, 7
        %v2757 = vsub.s32 0, %v2756
        %v2758 = vrot.slane %v2753, %v2757
        %v2760 = vadd.f32 %v2751, %v2758
        %v2761 = vadd.f32 %v2752, %v2758
        %2762 = vst.msk [vmem:[#allocation2] sm:$0xff] %vm700, %v2760
        %2763 = vst.msk [vmem:[#allocation2 + $0x8] sm:$0xff] %vm700, %v2761
        %p2764 = scmp.eq.s32.totalorder %s35, 1
        // Predicated region
        $region89: #{encode_text_pallas.1} parent=83 // pred_check
          %p2765 = pneg %p2764
        $region90: #{encode_text_pallas.1} parent=83 // pred_check_branch
          %2767 = sbr.rel (%p2765) target = $region92
        $region91: #{encode_text_pallas.1} parent=83 // pred_region
          %s2768 = sld [smem:[#allocation4]]
          %s2769 = scalar_lea.vmem [#allocation2], %s2768
          %v2770 = vld [vmem:[%s2769] sm:$0x1]
          %s2771 = sld [smem:[#allocation4 + $0x1]]
          %s2772 = sadd.s32 %s2771, 8
          %s2773 = scalar_lea.vmem [#allocation2], %s2772
          %v2774 = vld [vmem:[%s2773] sm:$0x1]
          %v2776 = vrot.slane %v2774, 7
          %vm2778 = vcmask 1040384
          %v2779 = vsel %vm2778, %v2770, %v2776
          %v2780 = vld [vmem:[%s14] sm:$0x1]
          %v2781 = vld [vmem:[%s15] sm:$0x1]
          %vm2782 = vcmask 254976
          %v2783 = vsel %vm2782, %v2779, 0.0
          %2784 = vadd.xlane.f32.xlu0 %v2783
          %v2785 = vpop.xlane.xlu0 %2784
          %v2786 = vmul.f32 %v2785, %v707
          %v2787 = vsub.f32 %v2779, %v2786
          %v2788 = vmul.f32 %v2787, %v2787
          %v2789 = vsel %vm2782, %v2788, 0.0
          %2790 = vadd.xlane.f32.xlu0 %v2789
          %v2791 = vpop.xlane.xlu0 %2790
          %v2792 = vmul.f32 %v2791, %v707
          %v2793 = vadd.f32 %v2792, 1e-05
          %v2794 = vrsqrt.pop %v2793
          %v2795 = vmul.f32 %v2787, %v2794
          %v2797 = vlaneseq
          %v2798 = vshrl.u32 %v2797, 7
          %v2799 = vsub.s32 0, %v2798
          %v2800 = vrot.slane %v2780, %v2799
          %v2802 = vmul.f32 %v2795, %v2800
          %v2804 = vlaneseq
          %v2805 = vshrl.u32 %v2804, 7
          %v2806 = vsub.s32 0, %v2805
          %v2807 = vrot.slane %v2781, %v2806
          %v2809 = vadd.f32 %v2802, %v2807
          %v2810 = vld [vmem:[%s16] sm:$0xff]
          %v2811 = vld [vmem:[%s16 + $0x8] sm:$0xff]
          %v2812 = vld [vmem:[%s16 + $0x10] sm:$0xff]
          %v2813 = vld [vmem:[%s16 + $0x18] sm:$0xff]
          %v2815 = vsel %vm700, %v2809, 0
          %2817 = vmatprep.subr.mxu0 0.0
          %2818 = vmatpush1.msra.mxu0 0.0
          %2819 = vmatprep.subr.mxu0 0.0
          %2820 = vmatpush1.msra.mxu0 0.0
          %2821 = vmatprep.subr.mxu0 0.0
          %2822 = vmatpush1.msra.mxu0 0.0
          %2823 = vmatprep.subr.mxu0 0.0
          %2824 = vmatpush1.msra.mxu0 0.0
          %2825 = vmatprep.subr.mxu0 0.0
          %2826 = vmatpush1.msra.mxu0 0.0
          %2827 = vmatprep.subr.mxu0 0.0
          %2828 = vmatpush1.msra.mxu0 0.0
          %2829 = vmatprep.subr.mxu0 0.0
          %2830 = vmatpush1.msra.mxu0 0.0
          %2831 = vmatprep.subr.mxu0 0.0
          %2832 = vmatpush1.msra.mxu0 0.0
          %2833 = vmatprep.subr.mxu0 0.0
          %2834 = vmatpush1.msra.mxu0 0.0
          %2835 = vmatprep.subr.mxu0 0.0
          %2836 = vmatpush1.msra.mxu0 0.0
          %2837 = vmatprep.subr.mxu0 0.0
          %2838 = vmatpush1.msra.mxu0 0.0
          %2839 = vmatprep.subr.mxu0 0.0
          %2840 = vmatpush1.msra.mxu0 0.0
          %2841 = vmatprep.subr.mxu0 0.0
          %2842 = vmatpush1.msra.mxu0 %v2813
          %2843 = vmatprep.subr.mxu0 0.0
          %2844 = vmatpush1.msra.mxu0 %v2812
          %2845 = vmatprep.subr.mxu0 0.0
          %2846 = vmatpush1.msra.mxu0 %v2811
          %2847 = vmatprep.subr.mxu0 0.0
          %2848 = vmatpush1.msra.mxu0 %v2810
          %2849 = vmatprep.subr.mxu0 0.0
          %2850 = vmatpush2.msra.mxu0 0.0
          %2851 = vmatprep.subr.mxu0 0.0
          %2852 = vmatpush2.msra.mxu0 0.0
          %2853 = vmatprep.subr.mxu0 0.0
          %2854 = vmatpush2.msra.mxu0 0.0
          %2855 = vmatprep.subr.mxu0 0.0
          %2856 = vmatpush2.msra.mxu0 0.0
          %2857 = vmatprep.subr.mxu0 0.0
          %2858 = vmatpush2.msra.mxu0 0.0
          %2859 = vmatprep.subr.mxu0 0.0
          %2860 = vmatpush2.msra.mxu0 0.0
          %2861 = vmatprep.subr.mxu0 0.0
          %2862 = vmatpush2.msra.mxu0 0.0
          %2863 = vmatprep.subr.mxu0 0.0
          %2864 = vmatpush2.msra.mxu0 0.0
          %2865 = vmatprep.subr.mxu0 0.0
          %2866 = vmatpush2.msra.mxu0 0.0
          %2867 = vmatprep.subr.mxu0 0.0
          %2868 = vmatpush2.msra.mxu0 0.0
          %2869 = vmatprep.subr.mxu0 0.0
          %2870 = vmatpush2.msra.mxu0 0.0
          %2871 = vmatprep.subr.mxu0 0.0
          %2872 = vmatpush2.msra.mxu0 0.0
          %2873 = vmatprep.subr.mxu0 0.0
          %2874 = vmatpush2.msra.mxu0 0.0
          %2875 = vmatprep.subr.mxu0 0.0
          %2876 = vmatpush2.msra.mxu0 0.0
          %2877 = vmatprep.subr.mxu0 0.0
          %2878 = vmatpush2.msra.mxu0 0.0
          %2879 = vmatprep.subr.mxu0 0.0
          %2880 = vmatpush2.msra.mxu0 0.0
          %2881 = vmatprep.mubr.f32.mxu0 0.0
          %2882 = vmatmul.mubr.f32.gmra.mxu0 %v2815
          %v2883 = vpop.f32.mrf.mxu0
          %v2884 = vadd.f32 0.0, %v2883
          %v2885 = vpop.f32.mrf.mxu0
          %2886 = vdwg.mxu0
          %2887 = vst.msk [vmem:[#allocation5] sm:$0x3] %vm2782, %v2884
        $region92: #{encode_text_pallas.1} parent=83 // pred_fallthru
          _
        // Predicated region
        $region93: #{encode_text_pallas.1} parent=83 // pred_check
          %p2888 = pneg %p444
        $region94: #{encode_text_pallas.1} parent=83 // pred_check_branch
          %2890 = sbr.rel (%p2888) target = $region96
        $region95: #{encode_text_pallas.1} parent=83 // pred_region
          %s2892 = ssub.s32 32, 32
          %2893 = vsyncadd [#allocation6], %s2892
          %s2895 = sshll.u32 [#allocation5], 4
          %s2896 = int_to_ptr.vmem [resolvable:$true] %s2895
          %2898 = dma.vmem_to_hbm [thread:$0]  %s2896, 32, %s17, [#allocation6]
        $region96: #{encode_text_pallas.1} parent=83 // pred_fallthru
          _
        // Predicated region
        $region97: #{encode_text_pallas.1} parent=83 // pred_check
          %p2899 = pneg %p444
        $region98: #{encode_text_pallas.1} parent=83 // pred_check_branch
          %2901 = sbr.rel (%p2899) target = $region100
        $region99: #{encode_text_pallas.1} parent=83 // pred_region
          %2902 = dma.done [#allocation6], 32
        $region100: #{encode_text_pallas.1} parent=83 // pred_fallthru
          _
      $region84: #{encode_text_pallas.1} parent=5 // pred_fallthru
        _
      %p2903 = scmp.le.s32.totalorder 2, %s30
      // Predicated region
      $region101: #{encode_text_pallas.1} parent=5 // pred_check
        %p2904 = pneg %p2903
      $region102: #{encode_text_pallas.1} parent=5 // pred_check_branch
        %2906 = sbr.rel (%p2904) target = $region104
      $region103: #{encode_text_pallas.1} parent=5 // pred_region
        %s2907 = ssub.s32 %s30, 2
      $region104: #{encode_text_pallas.1} parent=5 // pred_fallthru
        _
    $region6: #{encode_text_pallas.1} parent=1 // loop_footer
      %s34 = sadd.s32 1, %s30
    $region7: #{encode_text_pallas.1} parent=1 // loop_footer_branch
      %29 = sbr.rel target = $region3
    $region8: #{encode_text_pallas.1} parent=1 // loop_exit
      _
    %2908 = vsyncpa [#allocation6], 1
    %s2909 = scalar_lea.sflag [#allocation6], 1
    %2910 = vsyncpa %s2909, 1

</llo_original>
